<compile_context>
chip_gen: v7x
topology: tpu7x:2x2x1
jax: 0.10.0
libtpu: 0.0.40
codegen_flags: <defaults>
</compile_context>

<pallas_src>
import functools

import jax
import jax.numpy as jnp
from jax import lax
from jax.experimental import pallas as pl
from jax.experimental.pallas import tpu as pltpu


def _attention_kernel(x_ref, wqkv_ref, wout_ref, bout_ref, o_ref, out_all_ref,
                      *, heads, dim_head, scale):
    """One grid step = one batch sample; all heads processed in-kernel."""
    D = dim_head
    hidden = heads * D

    x = x_ref[0, :, :].astype(jnp.float32)                    # (C, HW)
    wqkv = wqkv_ref[...].astype(jnp.float32)                  # (3*hidden, C)

    # Fused 1x1-conv QKV projection for ALL heads: one M=3*hidden matmul.
    qkv = jnp.dot(wqkv, x, preferred_element_type=jnp.float32)  # (3*hidden, HW)

    for h in range(heads):                                     # heads=4, static
        q = qkv[h * D:(h + 1) * D, :] * scale                  # (D, HW), f32
        k = qkv[hidden + h * D:hidden + (h + 1) * D, :]        # (D, HW)
        v = qkv[2 * hidden + h * D:2 * hidden + (h + 1) * D, :]

        # sim_T[j, i] = sum_d k[d, j] * q[d, i]; softmax runs over j (axis 0),
        # so max / denom land directly as a lane-oriented (1, HW) row.
        sim_t = lax.dot_general(
            k.astype(jnp.bfloat16), q.astype(jnp.bfloat16),
            (((0,), (0,)), ((), ())),
            preferred_element_type=jnp.float32)                # (HW_j, HW_i)

        m = jnp.max(sim_t, axis=0, keepdims=True)              # (1, HW)
        p = jnp.exp(sim_t - m)                                 # (HW_j, HW_i) f32
        denom = jnp.sum(p, axis=0, keepdims=True)              # (1, HW)
        recip = pl.reciprocal(denom, approx=True)              # EUP, ~free slot

        # out[d, i] = sum_j v[d, j] * p[j, i]  (softmax normalization deferred)
        out_dh = jnp.dot(v.astype(jnp.bfloat16), p.astype(jnp.bfloat16),
                         preferred_element_type=jnp.float32)   # (D, HW)

        # Sublane-aligned (multiple-of-32) row slice of the per-sample scratch.
        out_all_ref[h * D:(h + 1) * D, :] = out_dh * recip

    # Output 1x1 conv: ONE K=hidden matmul across all heads, then bias.
    wo = wout_ref[...].astype(jnp.float32)                     # (C, hidden)
    bias = bout_ref[...].astype(jnp.float32)                   # (C, 1)
    y = jnp.dot(wo, out_all_ref[...], preferred_element_type=jnp.float32)
    o_ref[0, :, :] = (y + bias).astype(o_ref.dtype)            # (C, HW)


def attention_pallas(x, w_qkv, w_out, b_out, *, heads, dim_head):
    """Attention.forward on NCHW input via one fused Pallas kernel."""
    B, C, H, W = x.shape
    HW = H * W
    D = dim_head
    hidden = heads * D
    assert w_qkv.shape == (3 * hidden, C)
    assert w_out.shape == (C, hidden)
    assert b_out.shape == (C,)
    scale = float(D) ** -0.5

    x_flat = x.reshape(B, C, HW)
    bout = b_out.reshape(C, 1)   # no other host-side weight reshuffling needed

    kernel = functools.partial(_attention_kernel, heads=heads, dim_head=D,
                               scale=scale)

    out = pl.pallas_call(
        kernel,
        out_shape=jax.ShapeDtypeStruct((B, C, HW), x.dtype),
        grid_spec=pltpu.PrefetchScalarGridSpec(
            num_scalar_prefetch=0,
            grid=(B,),
            in_specs=[
                pl.BlockSpec((1, C, HW), lambda b: (b, 0, 0)),        # x
                pl.BlockSpec((3 * hidden, C), lambda b: (0, 0)),      # W_qkv
                pl.BlockSpec((C, hidden), lambda b: (0, 0)),          # W_out
                pl.BlockSpec((C, 1), lambda b: (0, 0)),               # bias
            ],
            out_specs=pl.BlockSpec((1, C, HW), lambda b: (b, 0, 0)),
            scratch_shapes=[pltpu.VMEM((hidden, HW), jnp.float32)],
        ),
        compiler_params=pltpu.CompilerParams(
            dimension_semantics=("parallel",),
        ),
    )(x_flat, w_qkv, w_out, bout)
    return out.reshape(B, C, H, W)


def _reference_attention(x, w_qkv, w_out, b_out, *, heads, dim_head):
    """Pure-JAX (f32) mirror of the PyTorch Attention.forward."""
    B, C, H, W = x.shape
    HW = H * W
    D = dim_head
    hidden = heads * D
    scale = float(D) ** -0.5

    xf = x.reshape(B, C, HW).astype(jnp.float32)
    qkv = jnp.einsum("oc,bcn->bon", w_qkv.astype(jnp.float32), xf)
    q = qkv[:, 0 * hidden:1 * hidden].reshape(B, heads, D, HW) * scale
    k = qkv[:, 1 * hidden:2 * hidden].reshape(B, heads, D, HW)
    v = qkv[:, 2 * hidden:3 * hidden].reshape(B, heads, D, HW)

    sim = jnp.einsum("bhdi,bhdj->bhij", q, k)
    sim = sim - jnp.max(sim, axis=-1, keepdims=True)
    attn = jax.nn.softmax(sim, axis=-1)
    out = jnp.einsum("bhij,bhdj->bhid", attn, v)             # (B, heads, HW, D)
    out = out.transpose(0, 1, 3, 2).reshape(B, hidden, HW)   # b (h d) (x y)
    y = jnp.einsum("co,bon->bcn", w_out.astype(jnp.float32), out)
    y = y + b_out.astype(jnp.float32)[None, :, None]
    return y.reshape(B, C, H, W).astype(x.dtype)


if __name__ == "__main__":
    key = jax.random.PRNGKey(0)
    B, C, H, W = 2, 4, 16, 16          # dim = 4
    heads, dim_head = 4, 32
    hidden = heads * dim_head

    k1, k2, k3, k4 = jax.random.split(key, 4)
    x = jax.random.normal(k1, (B, C, H, W), dtype=jnp.float32)
    # nn.Conv2d default init: U(-1/sqrt(fan_in), 1/sqrt(fan_in)).
    bq = 1.0 / (C ** 0.5)
    w_qkv = jax.random.uniform(k2, (3 * hidden, C), jnp.float32, -bq, bq)
    bo = 1.0 / (hidden ** 0.5)
    w_out = jax.random.uniform(k3, (C, hidden), jnp.float32, -bo, bo)
    b_out = jax.random.uniform(k4, (C,), jnp.float32, -bo, bo)

    out = attention_pallas(x, w_qkv, w_out, b_out, heads=heads,
                           dim_head=dim_head)
    out = jax.block_until_ready(out)

    ref = _reference_attention(x, w_qkv, w_out, b_out, heads=heads,
                               dim_head=dim_head)
    assert out.shape == (B, C, H, W)
    max_err = float(jnp.max(jnp.abs(out - ref)))
    # bf16 MXU operands + approx reciprocal give ~1e-3-level deltas vs the
    # f32 reference; tolerance widened accordingly.
    assert jnp.allclose(out, ref, atol=2e-2, rtol=2e-2), (
        f"mismatch vs reference, max abs err {max_err}")

    print("KERNEL_OK")
</pallas_src>

<mosaic_0001>
module attributes {stable_mosaic.version = 11 : i64} {
  func.func @_attention_kernel(%arg0: i32, %arg1: memref<1x4x256xf32, #tpu.memory_space<vmem>>, %arg2: memref<384x4xf32, #tpu.memory_space<vmem>>, %arg3: memref<4x128xf32, #tpu.memory_space<vmem>>, %arg4: memref<4x1xf32, #tpu.memory_space<vmem>>, %arg5: memref<1x4x256xf32, #tpu.memory_space<vmem>>, %arg6: memref<128x256xf32, #tpu.memory_space<vmem>>) attributes {dimension_semantics = [#tpu.dimension_semantics<parallel>], iteration_bounds = array<i64: 2>, scalar_prefetch = 0 : i64, scratch_operands = 1 : i64, tpu.core_type = #tpu.core_type<tc>, window_params = [{transform_indices = @transform_0, window_bounds = array<i64: 1, 4, 256>}, {pipeline_mode = #tpu.pipeline_mode<synchronous>, transform_indices = @transform_1, window_bounds = array<i64: 384, 4>}, {pipeline_mode = #tpu.pipeline_mode<synchronous>, transform_indices = @transform_2, window_bounds = array<i64: 4, 128>}, {pipeline_mode = #tpu.pipeline_mode<synchronous>, transform_indices = @transform_3, window_bounds = array<i64: 4, 1>}, {transform_indices = @transform_4, window_bounds = array<i64: 1, 4, 256>}]} {
    %c0 = arith.constant 0 : index
    %c0_0 = arith.constant 0 : index
    %c0_1 = arith.constant 0 : index
    %0 = vector.load %arg1[%c0, %c0_0, %c0_1] : memref<1x4x256xf32, #tpu.memory_space<vmem>>, vector<1x4x256xf32>
    %1 = vector.shape_cast %0 : vector<1x4x256xf32> to vector<4x256xf32>
    %c0_2 = arith.constant 0 : index
    %c0_3 = arith.constant 0 : index
    %2 = vector.load %arg2[%c0_2, %c0_3] : memref<384x4xf32, #tpu.memory_space<vmem>>, vector<384x4xf32>
    %cst = arith.constant dense<0.000000e+00> : vector<384x256xf32>
    %3 = tpu.matmul %2, %1, %cst {dimension_numbers = #tpu.dot_dimension_numbers<[1], [0], [0], [1], [0, 0, 1, 1], [], []>} : vector<384x4xf32>, vector<4x256xf32>, vector<384x256xf32> -> vector<384x256xf32>
    %4 = vector.extract_strided_slice %3 {offsets = [0, 0], sizes = [32, 256], strides = [1, 1]} : vector<384x256xf32> to vector<32x256xf32>
    %cst_4 = arith.constant 0.176776692 : f32
    %5 = vector.broadcast %cst_4 : f32 to vector<32x256xf32>
    %6 = arith.mulf %4, %5 : vector<32x256xf32>
    %7 = vector.extract_strided_slice %3 {offsets = [128, 0], sizes = [32, 256], strides = [1, 1]} : vector<384x256xf32> to vector<32x256xf32>
    %8 = vector.extract_strided_slice %3 {offsets = [256, 0], sizes = [32, 256], strides = [1, 1]} : vector<384x256xf32> to vector<32x256xf32>
    %9 = arith.truncf %7 : vector<32x256xf32> to vector<32x256xbf16>
    %10 = arith.truncf %6 : vector<32x256xf32> to vector<32x256xbf16>
    %cst_5 = arith.constant dense<0.000000e+00> : vector<256x256xf32>
    %11 = tpu.matmul %9, %10, %cst_5 {dimension_numbers = #tpu.dot_dimension_numbers<[0], [0], [1], [1], [0, 1, 1, 1], [], []>} : vector<32x256xbf16>, vector<32x256xbf16>, vector<256x256xf32> -> vector<256x256xf32>
    %cst_6 = arith.constant dense<0xFF800000> : vector<256xf32>
    %12 = vector.multi_reduction <maximumf>, %11, %cst_6 [0] : vector<256x256xf32> to vector<256xf32>
    %13 = vector.shape_cast %12 : vector<256xf32> to vector<1x256xf32>
    %14 = vector.broadcast %13 : vector<1x256xf32> to vector<256x256xf32>
    %15 = arith.subf %11, %14 : vector<256x256xf32>
    %16 = math.exp %15 : vector<256x256xf32>
    %cst_7 = arith.constant dense<0.000000e+00> : vector<256xf32>
    %17 = vector.multi_reduction <add>, %16, %cst_7 [0] : vector<256x256xf32> to vector<256xf32>
    %18 = vector.shape_cast %17 : vector<256xf32> to vector<1x256xf32>
    %19 = tpu.reciprocal %18 {approx = true} : vector<1x256xf32> -> vector<1x256xf32>
    %20 = arith.truncf %8 : vector<32x256xf32> to vector<32x256xbf16>
    %21 = arith.truncf %16 : vector<256x256xf32> to vector<256x256xbf16>
    %cst_8 = arith.constant dense<0.000000e+00> : vector<32x256xf32>
    %22 = tpu.matmul %20, %21, %cst_8 {dimension_numbers = #tpu.dot_dimension_numbers<[1], [0], [0], [1], [0, 0, 1, 1], [], []>} : vector<32x256xbf16>, vector<256x256xbf16>, vector<32x256xf32> -> vector<32x256xf32>
    %23 = vector.broadcast %19 : vector<1x256xf32> to vector<32x256xf32>
    %24 = arith.mulf %22, %23 : vector<32x256xf32>
    %c0_9 = arith.constant 0 : index
    %c0_10 = arith.constant 0 : index
    %25 = vector.load %arg6[%c0_9, %c0_10] : memref<128x256xf32, #tpu.memory_space<vmem>>, vector<32x256xf32>
    tpu.vector_store %arg6[%c0_9, %c0_10], %24 {strides = array<i32>} : memref<128x256xf32, #tpu.memory_space<vmem>>, vector<32x256xf32>,
    %26 = vector.extract_strided_slice %3 {offsets = [32, 0], sizes = [32, 256], strides = [1, 1]} : vector<384x256xf32> to vector<32x256xf32>
    %cst_11 = arith.constant 0.176776692 : f32
    %27 = vector.broadcast %cst_11 : f32 to vector<32x256xf32>
    %28 = arith.mulf %26, %27 : vector<32x256xf32>
    %29 = vector.extract_strided_slice %3 {offsets = [160, 0], sizes = [32, 256], strides = [1, 1]} : vector<384x256xf32> to vector<32x256xf32>
    %30 = vector.extract_strided_slice %3 {offsets = [288, 0], sizes = [32, 256], strides = [1, 1]} : vector<384x256xf32> to vector<32x256xf32>
    %31 = arith.truncf %29 : vector<32x256xf32> to vector<32x256xbf16>
    %32 = arith.truncf %28 : vector<32x256xf32> to vector<32x256xbf16>
    %cst_12 = arith.constant dense<0.000000e+00> : vector<256x256xf32>
    %33 = tpu.matmul %31, %32, %cst_12 {dimension_numbers = #tpu.dot_dimension_numbers<[0], [0], [1], [1], [0, 1, 1, 1], [], []>} : vector<32x256xbf16>, vector<32x256xbf16>, vector<256x256xf32> -> vector<256x256xf32>
    %cst_13 = arith.constant dense<0xFF800000> : vector<256xf32>
    %34 = vector.multi_reduction <maximumf>, %33, %cst_13 [0] : vector<256x256xf32> to vector<256xf32>
    %35 = vector.shape_cast %34 : vector<256xf32> to vector<1x256xf32>
    %36 = vector.broadcast %35 : vector<1x256xf32> to vector<256x256xf32>
    %37 = arith.subf %33, %36 : vector<256x256xf32>
    %38 = math.exp %37 : vector<256x256xf32>
    %cst_14 = arith.constant dense<0.000000e+00> : vector<256xf32>
    %39 = vector.multi_reduction <add>, %38, %cst_14 [0] : vector<256x256xf32> to vector<256xf32>
    %40 = vector.shape_cast %39 : vector<256xf32> to vector<1x256xf32>
    %41 = tpu.reciprocal %40 {approx = true} : vector<1x256xf32> -> vector<1x256xf32>
    %42 = arith.truncf %30 : vector<32x256xf32> to vector<32x256xbf16>
    %43 = arith.truncf %38 : vector<256x256xf32> to vector<256x256xbf16>
    %cst_15 = arith.constant dense<0.000000e+00> : vector<32x256xf32>
    %44 = tpu.matmul %42, %43, %cst_15 {dimension_numbers = #tpu.dot_dimension_numbers<[1], [0], [0], [1], [0, 0, 1, 1], [], []>} : vector<32x256xbf16>, vector<256x256xbf16>, vector<32x256xf32> -> vector<32x256xf32>
    %45 = vector.broadcast %41 : vector<1x256xf32> to vector<32x256xf32>
    %46 = arith.mulf %44, %45 : vector<32x256xf32>
    %c32 = arith.constant 32 : index
    %c0_16 = arith.constant 0 : index
    %47 = vector.load %arg6[%c32, %c0_16] : memref<128x256xf32, #tpu.memory_space<vmem>>, vector<32x256xf32>
    tpu.vector_store %arg6[%c32, %c0_16], %46 {strides = array<i32>} : memref<128x256xf32, #tpu.memory_space<vmem>>, vector<32x256xf32>,
    %48 = vector.extract_strided_slice %3 {offsets = [64, 0], sizes = [32, 256], strides = [1, 1]} : vector<384x256xf32> to vector<32x256xf32>
    %cst_17 = arith.constant 0.176776692 : f32
    %49 = vector.broadcast %cst_17 : f32 to vector<32x256xf32>
    %50 = arith.mulf %48, %49 : vector<32x256xf32>
    %51 = vector.extract_strided_slice %3 {offsets = [192, 0], sizes = [32, 256], strides = [1, 1]} : vector<384x256xf32> to vector<32x256xf32>
    %52 = vector.extract_strided_slice %3 {offsets = [320, 0], sizes = [32, 256], strides = [1, 1]} : vector<384x256xf32> to vector<32x256xf32>
    %53 = arith.truncf %51 : vector<32x256xf32> to vector<32x256xbf16>
    %54 = arith.truncf %50 : vector<32x256xf32> to vector<32x256xbf16>
    %cst_18 = arith.constant dense<0.000000e+00> : vector<256x256xf32>
    %55 = tpu.matmul %53, %54, %cst_18 {dimension_numbers = #tpu.dot_dimension_numbers<[0], [0], [1], [1], [0, 1, 1, 1], [], []>} : vector<32x256xbf16>, vector<32x256xbf16>, vector<256x256xf32> -> vector<256x256xf32>
    %cst_19 = arith.constant dense<0xFF800000> : vector<256xf32>
    %56 = vector.multi_reduction <maximumf>, %55, %cst_19 [0] : vector<256x256xf32> to vector<256xf32>
    %57 = vector.shape_cast %56 : vector<256xf32> to vector<1x256xf32>
    %58 = vector.broadcast %57 : vector<1x256xf32> to vector<256x256xf32>
    %59 = arith.subf %55, %58 : vector<256x256xf32>
    %60 = math.exp %59 : vector<256x256xf32>
    %cst_20 = arith.constant dense<0.000000e+00> : vector<256xf32>
    %61 = vector.multi_reduction <add>, %60, %cst_20 [0] : vector<256x256xf32> to vector<256xf32>
    %62 = vector.shape_cast %61 : vector<256xf32> to vector<1x256xf32>
    %63 = tpu.reciprocal %62 {approx = true} : vector<1x256xf32> -> vector<1x256xf32>
    %64 = arith.truncf %52 : vector<32x256xf32> to vector<32x256xbf16>
    %65 = arith.truncf %60 : vector<256x256xf32> to vector<256x256xbf16>
    %cst_21 = arith.constant dense<0.000000e+00> : vector<32x256xf32>
    %66 = tpu.matmul %64, %65, %cst_21 {dimension_numbers = #tpu.dot_dimension_numbers<[1], [0], [0], [1], [0, 0, 1, 1], [], []>} : vector<32x256xbf16>, vector<256x256xbf16>, vector<32x256xf32> -> vector<32x256xf32>
    %67 = vector.broadcast %63 : vector<1x256xf32> to vector<32x256xf32>
    %68 = arith.mulf %66, %67 : vector<32x256xf32>
    %c64 = arith.constant 64 : index
    %c0_22 = arith.constant 0 : index
    %69 = vector.load %arg6[%c64, %c0_22] : memref<128x256xf32, #tpu.memory_space<vmem>>, vector<32x256xf32>
    tpu.vector_store %arg6[%c64, %c0_22], %68 {strides = array<i32>} : memref<128x256xf32, #tpu.memory_space<vmem>>, vector<32x256xf32>,
    %70 = vector.extract_strided_slice %3 {offsets = [96, 0], sizes = [32, 256], strides = [1, 1]} : vector<384x256xf32> to vector<32x256xf32>
    %cst_23 = arith.constant 0.176776692 : f32
    %71 = vector.broadcast %cst_23 : f32 to vector<32x256xf32>
    %72 = arith.mulf %70, %71 : vector<32x256xf32>
    %73 = vector.extract_strided_slice %3 {offsets = [224, 0], sizes = [32, 256], strides = [1, 1]} : vector<384x256xf32> to vector<32x256xf32>
    %74 = vector.extract_strided_slice %3 {offsets = [352, 0], sizes = [32, 256], strides = [1, 1]} : vector<384x256xf32> to vector<32x256xf32>
    %75 = arith.truncf %73 : vector<32x256xf32> to vector<32x256xbf16>
    %76 = arith.truncf %72 : vector<32x256xf32> to vector<32x256xbf16>
    %cst_24 = arith.constant dense<0.000000e+00> : vector<256x256xf32>
    %77 = tpu.matmul %75, %76, %cst_24 {dimension_numbers = #tpu.dot_dimension_numbers<[0], [0], [1], [1], [0, 1, 1, 1], [], []>} : vector<32x256xbf16>, vector<32x256xbf16>, vector<256x256xf32> -> vector<256x256xf32>
    %cst_25 = arith.constant dense<0xFF800000> : vector<256xf32>
    %78 = vector.multi_reduction <maximumf>, %77, %cst_25 [0] : vector<256x256xf32> to vector<256xf32>
    %79 = vector.shape_cast %78 : vector<256xf32> to vector<1x256xf32>
    %80 = vector.broadcast %79 : vector<1x256xf32> to vector<256x256xf32>
    %81 = arith.subf %77, %80 : vector<256x256xf32>
    %82 = math.exp %81 : vector<256x256xf32>
    %cst_26 = arith.constant dense<0.000000e+00> : vector<256xf32>
    %83 = vector.multi_reduction <add>, %82, %cst_26 [0] : vector<256x256xf32> to vector<256xf32>
    %84 = vector.shape_cast %83 : vector<256xf32> to vector<1x256xf32>
    %85 = tpu.reciprocal %84 {approx = true} : vector<1x256xf32> -> vector<1x256xf32>
    %86 = arith.truncf %74 : vector<32x256xf32> to vector<32x256xbf16>
    %87 = arith.truncf %82 : vector<256x256xf32> to vector<256x256xbf16>
    %cst_27 = arith.constant dense<0.000000e+00> : vector<32x256xf32>
    %88 = tpu.matmul %86, %87, %cst_27 {dimension_numbers = #tpu.dot_dimension_numbers<[1], [0], [0], [1], [0, 0, 1, 1], [], []>} : vector<32x256xbf16>, vector<256x256xbf16>, vector<32x256xf32> -> vector<32x256xf32>
    %89 = vector.broadcast %85 : vector<1x256xf32> to vector<32x256xf32>
    %90 = arith.mulf %88, %89 : vector<32x256xf32>
    %c96 = arith.constant 96 : index
    %c0_28 = arith.constant 0 : index
    %91 = vector.load %arg6[%c96, %c0_28] : memref<128x256xf32, #tpu.memory_space<vmem>>, vector<32x256xf32>
    tpu.vector_store %arg6[%c96, %c0_28], %90 {strides = array<i32>} : memref<128x256xf32, #tpu.memory_space<vmem>>, vector<32x256xf32>,
    %c0_29 = arith.constant 0 : index
    %c0_30 = arith.constant 0 : index
    %92 = vector.load %arg3[%c0_29, %c0_30] : memref<4x128xf32, #tpu.memory_space<vmem>>, vector<4x128xf32>
    %c0_31 = arith.constant 0 : index
    %c0_32 = arith.constant 0 : index
    %93 = vector.load %arg4[%c0_31, %c0_32] : memref<4x1xf32, #tpu.memory_space<vmem>>, vector<4x1xf32>
    %c0_33 = arith.constant 0 : index
    %c0_34 = arith.constant 0 : index
    %94 = vector.load %arg6[%c0_33, %c0_34] : memref<128x256xf32, #tpu.memory_space<vmem>>, vector<128x256xf32>
    %cst_35 = arith.constant dense<0.000000e+00> : vector<4x256xf32>
    %95 = tpu.matmul %92, %94, %cst_35 {dimension_numbers = #tpu.dot_dimension_numbers<[1], [0], [0], [1], [0, 0, 1, 1], [], []>} : vector<4x128xf32>, vector<128x256xf32>, vector<4x256xf32> -> vector<4x256xf32>
    %96 = vector.broadcast %93 : vector<4x1xf32> to vector<4x256xf32>
    %97 = arith.addf %95, %96 : vector<4x256xf32>
    %c0_36 = arith.constant 0 : index
    %c0_37 = arith.constant 0 : index
    %c0_38 = arith.constant 0 : index
    %98 = vector.load %arg5[%c0_36, %c0_37, %c0_38] : memref<1x4x256xf32, #tpu.memory_space<vmem>>, vector<1x4x256xf32>
    %99 = vector.shape_cast %98 : vector<1x4x256xf32> to vector<4x256xf32>
    %100 = vector.shape_cast %97 : vector<4x256xf32> to vector<1x4x256xf32>
    tpu.vector_store %arg5[%c0_36, %c0_37, %c0_38], %100 {strides = array<i32>} : memref<1x4x256xf32, #tpu.memory_space<vmem>>, vector<1x4x256xf32>,
    return
  }
  func.func @transform_0(%arg0: i32) -> (i32, i32, i32) {
    %c0_i32 = arith.constant 0 : i32
    %c0_i32_0 = arith.constant 0 : i32
    %c0_i32_1 = arith.constant 0 : i32
    return %arg0, %c0_i32, %c0_i32_0 : i32, i32, i32
  }
  func.func @transform_1(%arg0: i32) -> (i32, i32) {
    %c0_i32 = arith.constant 0 : i32
    %c0_i32_0 = arith.constant 0 : i32
    %c0_i32_1 = arith.constant 0 : i32
    return %c0_i32, %c0_i32_0 : i32, i32
  }
  func.func @transform_2(%arg0: i32) -> (i32, i32) {
    %c0_i32 = arith.constant 0 : i32
    %c0_i32_0 = arith.constant 0 : i32
    %c0_i32_1 = arith.constant 0 : i32
    return %c0_i32, %c0_i32_0 : i32, i32
  }
  func.func @transform_3(%arg0: i32) -> (i32, i32) {
    %c0_i32 = arith.constant 0 : i32
    %c0_i32_0 = arith.constant 0 : i32
    %c0_i32_1 = arith.constant 0 : i32
    return %c0_i32, %c0_i32_0 : i32, i32
  }
  func.func @transform_4(%arg0: i32) -> (i32, i32, i32) {
    %c0_i32 = arith.constant 0 : i32
    %c0_i32_0 = arith.constant 0 : i32
    %c0_i32_1 = arith.constant 0 : i32
    return %arg0, %c0_i32, %c0_i32_0 : i32, i32, i32
  }
}

</mosaic_0001>

<llo_original>
// kernel: tpu_custom_call.1
$region0: #{tpu_custom_call.1}
  #allocation0 [shape = 'u32[]', space=smem, size = 0x4, offset = 0x4, fixed_abs, tag = 'smem constant byte address 0x4 - core index']
  #allocation1 [shape = 'u32[144,128]{1,0:T(1,128)}', space=vmem, size = 0x12000, scoped, tag = 'internal scratch']
  #allocation2 [shape = 'f32[128,256]{1,0:T(8,128)}', space=vmem, size = 0x20000, scoped, tag = 'scratch operand']
  %s0 = inlined_call_operand.vmem [shape: f32[2,4,256], index: 0, kind: input, shape index: {}]
  %s1 = inlined_call_operand.vmem [shape: f32[384,4], index: 1, kind: input, shape index: {}]
  %s2 = inlined_call_operand.vmem [shape: f32[4,128], index: 2, kind: input, shape index: {}]
  %s3 = inlined_call_operand.vmem [shape: f32[4,1], index: 3, kind: input, shape index: {}]
  %s4 = inlined_call_operand.hbm [shape: f32[2,4,256], index: 4, kind: output, shape index: {}]
  %s5 = sld [smem:[#allocation0]]
  $region49: #{tpu_custom_call.1} parent=0
    _
  %s7 = ssub.s32 1, %s5
  %s8 = scalar_select 0, %s7, %s5
  $region1: #{tpu_custom_call.1} parent=0
    #allocation3 [shape = 'u8[8192]{0}', space=vmem, size = 0x2000, scoped, tag = 'output window, operand 0']
    #allocation4 [shape = 's32[2]{0}', space=sflag, size = 0x8, scoped, tag = 'scoped memory for tpu_custom_call.1']
    %9 = vsyncpa [#allocation4], 0
    %s10 = scalar_lea.sflag [#allocation4], 1
    %11 = vsyncpa %s10, 0
    loop: start=0, step=1, limit=4
    $region2: #{tpu_custom_call.1} parent=1 // loop_pre_header
      _
    $region3: #{tpu_custom_call.1} parent=1 // loop_header
      %s13 = sphi 0, %s17
      %p14 = scmp.ge.s32.totalorder %s13, 4
      %s23 = sphi 0, %s25
      %s26 = sphi 0, %s23
      %s27 = sphi 0, %s26
      %s43 = sphi 0, %s27
      %s47 = sphi 0, %s47
      %s49 = sphi 0, %s47
      %s50 = sphi 0, %s49
      %s64 = sphi 0, %s50
      %s68 = sphi 0, %s68
      %s70 = sphi 0, %s68
      %s71 = sphi 0, %s70
      %s85 = sphi 0, %s71
      %s89 = sphi 0, %s89
      %s91 = sphi 0, %s89
      %s92 = sphi 0, %s91
      %s106 = sphi 0, %s92
      %s112 = sphi 0, %s114
      %s115 = sphi 0, %s112
      %s116 = sphi 0, %s115
      %s132 = sphi 0, %s116
    $region4: #{tpu_custom_call.1} parent=1 // loop_header_branch
      %16 = sbr.rel (%p14) target = $region8
    $region5: #{tpu_custom_call.1} parent=1 // loop_body
      %s18 = ssub.s32 %s13, 1
      %s19 = ssub.s32 %s13, 2
      %s20 = sadd.s32 %s13, 1
      %s21 = ssub.s32 %s13, %s20
      %p22 = scmp.eq.s32.totalorder %s21, 0
      %s24 = sadd.s32 %s23, 1
      %s25 = scalar_select %p22, %s23, %s24
      %p28 = pneg %p22
      %p29 = scmp.eq.s32.totalorder %s13, 1
      %p30 = por %p28, %p29
      %p31 = scmp.ne.s32.totalorder %s23, %s26
      %p32 = scmp.eq.s32.totalorder %s13, 0
      %p33 = por %p31, %p32
      %p34 = scmp.ne.s32.totalorder %s23, %s26
      %p35 = scmp.eq.s32.totalorder %s18, 1
      %p36 = por %p34, %p35
      %p37 = scmp.ne.s32.totalorder %s26, %s27
      %p38 = scmp.eq.s32.totalorder %s18, 0
      %p39 = por %p37, %p38
      %p40 = scmp.ne.s32.totalorder %s26, %s27
      %p41 = scmp.eq.s32.totalorder %s19, 1
      %p42 = por %p40, %p41
      %p44 = scmp.ne.s32.totalorder %s27, %s43
      %p45 = scmp.eq.s32.totalorder %s19, 0
      %p46 = por %p44, %p45
      %s48 = sadd.s32 %s47, 1
      %p51 = scmp.eq.s32.totalorder %s13, 1
      %p52 = scmp.ne.s32.totalorder %s47, %s49
      %p53 = scmp.eq.s32.totalorder %s13, 0
      %p54 = por %p52, %p53
      %p55 = scmp.ne.s32.totalorder %s47, %s49
      %p56 = scmp.eq.s32.totalorder %s18, 1
      %p57 = por %p55, %p56
      %p58 = scmp.ne.s32.totalorder %s49, %s50
      %p59 = scmp.eq.s32.totalorder %s18, 0
      %p60 = por %p58, %p59
      %p61 = scmp.ne.s32.totalorder %s49, %s50
      %p62 = scmp.eq.s32.totalorder %s19, 1
      %p63 = por %p61, %p62
      %p65 = scmp.ne.s32.totalorder %s50, %s64
      %p66 = scmp.eq.s32.totalorder %s19, 0
      %p67 = por %p65, %p66
      %s69 = sadd.s32 %s68, 1
      %p72 = scmp.eq.s32.totalorder %s13, 1
      %p73 = scmp.ne.s32.totalorder %s68, %s70
      %p74 = scmp.eq.s32.totalorder %s13, 0
      %p75 = por %p73, %p74
      %p76 = scmp.ne.s32.totalorder %s68, %s70
      %p77 = scmp.eq.s32.totalorder %s18, 1
      %p78 = por %p76, %p77
      %p79 = scmp.ne.s32.totalorder %s70, %s71
      %p80 = scmp.eq.s32.totalorder %s18, 0
      %p81 = por %p79, %p80
      %p82 = scmp.ne.s32.totalorder %s70, %s71
      %p83 = scmp.eq.s32.totalorder %s19, 1
      %p84 = por %p82, %p83
      %p86 = scmp.ne.s32.totalorder %s71, %s85
      %p87 = scmp.eq.s32.totalorder %s19, 0
      %p88 = por %p86, %p87
      %s90 = sadd.s32 %s89, 1
      %p93 = scmp.eq.s32.totalorder %s13, 1
      %p94 = scmp.ne.s32.totalorder %s89, %s91
      %p95 = scmp.eq.s32.totalorder %s13, 0
      %p96 = por %p94, %p95
      %p97 = scmp.ne.s32.totalorder %s89, %s91
      %p98 = scmp.eq.s32.totalorder %s18, 1
      %p99 = por %p97, %p98
      %p100 = scmp.ne.s32.totalorder %s91, %s92
      %p101 = scmp.eq.s32.totalorder %s18, 0
      %p102 = por %p100, %p101
      %p103 = scmp.ne.s32.totalorder %s91, %s92
      %p104 = scmp.eq.s32.totalorder %s19, 1
      %p105 = por %p103, %p104
      %p107 = scmp.ne.s32.totalorder %s92, %s106
      %p108 = scmp.eq.s32.totalorder %s19, 0
      %p109 = por %p107, %p108
      %s110 = ssub.s32 %s13, %s20
      %p111 = scmp.eq.s32.totalorder %s110, 0
      %s113 = sadd.s32 %s112, 1
      %s114 = scalar_select %p111, %s112, %s113
      %p117 = pneg %p111
      %p118 = scmp.eq.s32.totalorder %s13, 1
      %p119 = por %p117, %p118
      %p120 = scmp.ne.s32.totalorder %s112, %s115
      %p121 = scmp.eq.s32.totalorder %s13, 0
      %p122 = por %p120, %p121
      %p123 = scmp.ne.s32.totalorder %s112, %s115
      %p124 = scmp.eq.s32.totalorder %s18, 1
      %p125 = por %p123, %p124
      %p126 = scmp.ne.s32.totalorder %s115, %s116
      %p127 = scmp.eq.s32.totalorder %s18, 0
      %p128 = por %p126, %p127
      %p129 = scmp.ne.s32.totalorder %s115, %s116
      %p130 = scmp.eq.s32.totalorder %s19, 1
      %p131 = por %p129, %p130
      %p133 = scmp.ne.s32.totalorder %s116, %s132
      %p134 = scmp.eq.s32.totalorder %s19, 0
      %p135 = por %p133, %p134
      %p136 = scmp.le.s32.totalorder 1, %s13
      %p137 = scmp.lt.s32.totalorder %s13, 3
      %p138 = pnand %p136, %p137
      %p139 = pneg %p138
      // Predicated region
      $region9: #{tpu_custom_call.1} parent=5 // pred_check
        _
      $region10: #{tpu_custom_call.1} parent=5 // pred_check_branch
        %141 = sbr.rel (%p138) target = $region12
      $region11: #{tpu_custom_call.1} parent=5 // pred_region
        %s142 = ssub.s32 %s13, 1
        // Predicated region
        $region13: #{tpu_custom_call.1} parent=11 // pred_check
          %p143 = pneg %p60
        $region14: #{tpu_custom_call.1} parent=11 // pred_check_branch
          %145 = sbr.rel (%p143) target = $region16
        $region15: #{tpu_custom_call.1} parent=11 // pred_region
          _
        $region16: #{tpu_custom_call.1} parent=11 // pred_fallthru
          _
        // Predicated region
        $region17: #{tpu_custom_call.1} parent=11 // pred_check
          %p146 = pneg %p81
        $region18: #{tpu_custom_call.1} parent=11 // pred_check_branch
          %148 = sbr.rel (%p146) target = $region20
        $region19: #{tpu_custom_call.1} parent=11 // pred_region
          _
        $region20: #{tpu_custom_call.1} parent=11 // pred_fallthru
          _
        // Predicated region
        $region21: #{tpu_custom_call.1} parent=11 // pred_check
          %p149 = pneg %p102
        $region22: #{tpu_custom_call.1} parent=11 // pred_check_branch
          %151 = sbr.rel (%p149) target = $region24
        $region23: #{tpu_custom_call.1} parent=11 // pred_region
          _
        $region24: #{tpu_custom_call.1} parent=11 // pred_fallthru
          _
      $region12: #{tpu_custom_call.1} parent=5 // pred_fallthru
        _
      %p152 = scmp.lt.s32.totalorder %s13, 2
      // Predicated region
      $region25: #{tpu_custom_call.1} parent=5 // pred_check
        %p153 = pneg %p152
      $region26: #{tpu_custom_call.1} parent=5 // pred_check_branch
        %155 = sbr.rel (%p153) target = $region28
      $region27: #{tpu_custom_call.1} parent=5 // pred_region
        // Predicated region
        $region29: #{tpu_custom_call.1} parent=27 // pred_check
          %p156 = pneg %p33
        $region30: #{tpu_custom_call.1} parent=27 // pred_check_branch
          %158 = sbr.rel (%p156) target = $region32
        $region31: #{tpu_custom_call.1} parent=27 // pred_region
          %p159 = scmp.lt.s32.totalorder %s13, 1
          %s160 = scalar_select %p159, %s13, 1
          %s161 = smul.addr %s160, 2
          %s162 = smul.addr %s161, 4
          %s163 = scalar_lea.vmem %s0, %s162
        $region32: #{tpu_custom_call.1} parent=27 // pred_fallthru
          _
      $region28: #{tpu_custom_call.1} parent=5 // pred_fallthru
        _
      %p164 = scmp.le.s32.totalorder 1, %s13
      %p165 = scmp.lt.s32.totalorder %s13, 3
      %p166 = pnand %p164, %p165
      %p167 = pneg %p166
      // Predicated region
      $region33: #{tpu_custom_call.1} parent=5 // pred_check
        _
      $region34: #{tpu_custom_call.1} parent=5 // pred_check_branch
        %169 = sbr.rel (%p166) target = $region36
      $region35: #{tpu_custom_call.1} parent=5 // pred_region
        %s170 = ssub.s32 %s13, 1
        %p171 = scmp.lt.s32.totalorder %s18, 1
        %s172 = scalar_select %p171, %s18, 1
        %s173 = smul.addr %s172, 2
        %s174 = smul.addr %s173, 4
        %s175 = scalar_lea.vmem %s0, %s174
        %p176 = pneg %p39
        %p177 = pneg %p36
        %p178 = pneg %p60
        %p179 = pneg %p57
        %p180 = pneg %p81
        %p181 = pneg %p78
        %p182 = pneg %p102
        %p183 = pneg %p99
        %p184 = pneg %p128
        %p185 = pneg %p125
        %s186 = sand.u32 %s115, 1
        %s187 = scalar_lea.sflag [#allocation4], %s186
        %s188 = sand.u32 %s115, 1
        %s189 = smul.addr %s188, 8
        %s190 = scalar_lea.vmem [#allocation3], %s189
        %p191 = scmp.lt.s32.totalorder %s18, 1
        %s192 = scalar_select %p191, %s18, 1
        %s193 = smul.addr %s192, 2
        %s194 = smul.addr %s193, 4
        %s195 = scalar_lea.vmem %s0, %s194
        %v197 = vld [vmem:[%s195] sm:$0xff]
        %v198 = vld [vmem:[%s1] sm:$0xff]
        %v199 = vld [vmem:[%s1 + $0x8] sm:$0xff]
        %v200 = vld [vmem:[%s1 + $0x10] sm:$0xff]
        %v201 = vld [vmem:[%s1 + $0x18] sm:$0xff]
        %v202 = vld [vmem:[%s1 + $0x20] sm:$0xff]
        %v203 = vld [vmem:[%s1 + $0x28] sm:$0xff]
        %v204 = vld [vmem:[%s1 + $0x30] sm:$0xff]
        %v205 = vld [vmem:[%s1 + $0x38] sm:$0xff]
        %v206 = vld [vmem:[%s1 + $0x40] sm:$0xff]
        %v207 = vld [vmem:[%s1 + $0x48] sm:$0xff]
        %v208 = vld [vmem:[%s1 + $0x50] sm:$0xff]
        %v209 = vld [vmem:[%s1 + $0x58] sm:$0xff]
        %v210 = vld [vmem:[%s1 + $0x60] sm:$0xff]
        %v211 = vld [vmem:[%s1 + $0x68] sm:$0xff]
        %v212 = vld [vmem:[%s1 + $0x70] sm:$0xff]
        %v213 = vld [vmem:[%s1 + $0x78] sm:$0xff]
        %v214 = vld [vmem:[%s1 + $0x80] sm:$0xff]
        %v215 = vld [vmem:[%s1 + $0x88] sm:$0xff]
        %v216 = vld [vmem:[%s1 + $0x90] sm:$0xff]
        %v217 = vld [vmem:[%s1 + $0x98] sm:$0xff]
        %v218 = vld [vmem:[%s1 + $0xa0] sm:$0xff]
        %v219 = vld [vmem:[%s1 + $0xa8] sm:$0xff]
        %v220 = vld [vmem:[%s1 + $0xb0] sm:$0xff]
        %v221 = vld [vmem:[%s1 + $0xb8] sm:$0xff]
        %v222 = vld [vmem:[%s1 + $0xc0] sm:$0xff]
        %v223 = vld [vmem:[%s1 + $0xc8] sm:$0xff]
        %v224 = vld [vmem:[%s1 + $0xd0] sm:$0xff]
        %v225 = vld [vmem:[%s1 + $0xd8] sm:$0xff]
        %v226 = vld [vmem:[%s1 + $0xe0] sm:$0xff]
        %v227 = vld [vmem:[%s1 + $0xe8] sm:$0xff]
        %v228 = vld [vmem:[%s1 + $0xf0] sm:$0xff]
        %v229 = vld [vmem:[%s1 + $0xf8] sm:$0xff]
        %v230 = vld [vmem:[%s1 + $0x100] sm:$0xff]
        %v231 = vld [vmem:[%s1 + $0x108] sm:$0xff]
        %v232 = vld [vmem:[%s1 + $0x110] sm:$0xff]
        %v233 = vld [vmem:[%s1 + $0x118] sm:$0xff]
        %v234 = vld [vmem:[%s1 + $0x120] sm:$0xff]
        %v235 = vld [vmem:[%s1 + $0x128] sm:$0xff]
        %v236 = vld [vmem:[%s1 + $0x130] sm:$0xff]
        %v237 = vld [vmem:[%s1 + $0x138] sm:$0xff]
        %v238 = vld [vmem:[%s1 + $0x140] sm:$0xff]
        %v239 = vld [vmem:[%s1 + $0x148] sm:$0xff]
        %v240 = vld [vmem:[%s1 + $0x150] sm:$0xff]
        %v241 = vld [vmem:[%s1 + $0x158] sm:$0xff]
        %v242 = vld [vmem:[%s1 + $0x160] sm:$0xff]
        %v243 = vld [vmem:[%s1 + $0x168] sm:$0xff]
        %v244 = vld [vmem:[%s1 + $0x170] sm:$0xff]
        %v245 = vld [vmem:[%s1 + $0x178] sm:$0xff]
        %v247 = vcombine.high %v197, %v197
        %vm248 = vcmask 31744
        %v250 = vsel %vm248, %v198, 0
        %v253 = vsel %vm248, %v199, 0
        %v256 = vsel %vm248, %v200, 0
        %v259 = vsel %vm248, %v201, 0
        %v262 = vsel %vm248, %v202, 0
        %v265 = vsel %vm248, %v203, 0
        %v268 = vsel %vm248, %v204, 0
        %v271 = vsel %vm248, %v205, 0
        %v274 = vsel %vm248, %v206, 0
        %v277 = vsel %vm248, %v207, 0
        %v280 = vsel %vm248, %v208, 0
        %v283 = vsel %vm248, %v209, 0
        %v286 = vsel %vm248, %v210, 0
        %v289 = vsel %vm248, %v211, 0
        %v292 = vsel %vm248, %v212, 0
        %v295 = vsel %vm248, %v213, 0
        %v298 = vsel %vm248, %v214, 0
        %v301 = vsel %vm248, %v215, 0
        %v304 = vsel %vm248, %v216, 0
        %v307 = vsel %vm248, %v217, 0
        %v310 = vsel %vm248, %v218, 0
        %v313 = vsel %vm248, %v219, 0
        %v316 = vsel %vm248, %v220, 0
        %v319 = vsel %vm248, %v221, 0
        %v322 = vsel %vm248, %v222, 0
        %v325 = vsel %vm248, %v223, 0
        %v328 = vsel %vm248, %v224, 0
        %v331 = vsel %vm248, %v225, 0
        %v334 = vsel %vm248, %v226, 0
        %v337 = vsel %vm248, %v227, 0
        %v340 = vsel %vm248, %v228, 0
        %v343 = vsel %vm248, %v229, 0
        %v346 = vsel %vm248, %v230, 0
        %v349 = vsel %vm248, %v231, 0
        %v352 = vsel %vm248, %v232, 0
        %v355 = vsel %vm248, %v233, 0
        %v358 = vsel %vm248, %v234, 0
        %v361 = vsel %vm248, %v235, 0
        %v364 = vsel %vm248, %v236, 0
        %v367 = vsel %vm248, %v237, 0
        %v370 = vsel %vm248, %v238, 0
        %v373 = vsel %vm248, %v239, 0
        %v376 = vsel %vm248, %v240, 0
        %v379 = vsel %vm248, %v241, 0
        %v382 = vsel %vm248, %v242, 0
        %v385 = vsel %vm248, %v243, 0
        %v388 = vsel %vm248, %v244, 0
        %v391 = vsel %vm248, %v245, 0
        %vm393 = vcmask 1043456
        %v394 = vsel %vm393, %v197, 0
        %v396 = vsel %vm393, %v247, 0
        %398 = vmatprep.subr.mxu0 %v396
        %399 = vmatpush1.msra.mxu0 %v394
        %400 = vmatprep.subr.mxu0 0.0
        %401 = vmatpush1.msra.mxu0 0.0
        %402 = vmatprep.subr.mxu0 0.0
        %403 = vmatpush1.msra.mxu0 0.0
        %404 = vmatprep.subr.mxu0 0.0
        %405 = vmatpush1.msra.mxu0 0.0
        %406 = vmatprep.subr.mxu0 0.0
        %407 = vmatpush1.msra.mxu0 0.0
        %408 = vmatprep.subr.mxu0 0.0
        %409 = vmatpush1.msra.mxu0 0.0
        %410 = vmatprep.subr.mxu0 0.0
        %411 = vmatpush1.msra.mxu0 0.0
        %412 = vmatprep.subr.mxu0 0.0
        %413 = vmatpush1.msra.mxu0 0.0
        %414 = vmatprep.subr.mxu0 0.0
        %415 = vmatpush1.msra.mxu0 0.0
        %416 = vmatprep.subr.mxu0 0.0
        %417 = vmatpush1.msra.mxu0 0.0
        %418 = vmatprep.subr.mxu0 0.0
        %419 = vmatpush1.msra.mxu0 0.0
        %420 = vmatprep.subr.mxu0 0.0
        %421 = vmatpush1.msra.mxu0 0.0
        %422 = vmatprep.subr.mxu0 0.0
        %423 = vmatpush1.msra.mxu0 0.0
        %424 = vmatprep.subr.mxu0 0.0
        %425 = vmatpush1.msra.mxu0 0.0
        %426 = vmatprep.subr.mxu0 0.0
        %427 = vmatpush1.msra.mxu0 0.0
        %428 = vmatprep.subr.mxu0 0.0
        %429 = vmatpush1.msra.mxu0 0.0
        %430 = vmatprep.subr.mxu0 0.0
        %431 = vmatpush1.msra.mxu0 0.0
        %432 = vmatprep.subr.mxu0 0.0
        %433 = vmatpush1.msra.mxu0 0.0
        %434 = vmatprep.subr.mxu0 0.0
        %435 = vmatpush1.msra.mxu0 0.0
        %436 = vmatprep.subr.mxu0 0.0
        %437 = vmatpush1.msra.mxu0 0.0
        %438 = vmatprep.subr.mxu0 0.0
        %439 = vmatpush1.msra.mxu0 0.0
        %440 = vmatprep.subr.mxu0 0.0
        %441 = vmatpush1.msra.mxu0 0.0
        %442 = vmatprep.subr.mxu0 0.0
        %443 = vmatpush1.msra.mxu0 0.0
        %444 = vmatprep.subr.mxu0 0.0
        %445 = vmatpush1.msra.mxu0 0.0
        %446 = vmatprep.subr.mxu0 0.0
        %447 = vmatpush1.msra.mxu0 0.0
        %448 = vmatprep.subr.mxu0 0.0
        %449 = vmatpush1.msra.mxu0 0.0
        %450 = vmatprep.subr.mxu0 0.0
        %451 = vmatpush1.msra.mxu0 0.0
        %452 = vmatprep.subr.mxu0 0.0
        %453 = vmatpush1.msra.mxu0 0.0
        %454 = vmatprep.subr.mxu0 0.0
        %455 = vmatpush1.msra.mxu0 0.0
        %456 = vmatprep.subr.mxu0 0.0
        %457 = vmatpush1.msra.mxu0 0.0
        %458 = vmatprep.subr.mxu0 0.0
        %459 = vmatpush1.msra.mxu0 0.0
        %460 = vmatprep.subr.mxu0 0.0
        %461 = vmatpush1.msra.mxu0 0.0
        %462 = vmatprep.mubr.f32.mxu0 0.0
        %463 = vmatmul.mubr.f32.gmra.mrb[0].mxu0 %v250
        %v464 = vpop.f32.mrb[0].mxu0
        %v465 = vadd.f32 0.0, %v464
        %v466 = vpop.f32.mrb[0].mxu0
        %v467 = vadd.f32 0.0, %v466
        %468 = vmatprep.mubr.f32.mxu0 0.0
        %469 = vmatmul.mubr.f32.gmra.mrb[0].mxu0 %v253
        %v470 = vpop.f32.mrb[0].mxu0
        %v471 = vadd.f32 0.0, %v470
        %v472 = vpop.f32.mrb[0].mxu0
        %v473 = vadd.f32 0.0, %v472
        %474 = vmatprep.mubr.f32.mxu0 0.0
        %475 = vmatmul.mubr.f32.gmra.mrb[0].mxu0 %v256
        %v476 = vpop.f32.mrb[0].mxu0
        %v477 = vadd.f32 0.0, %v476
        %v478 = vpop.f32.mrb[0].mxu0
        %v479 = vadd.f32 0.0, %v478
        %480 = vmatprep.mubr.f32.mxu0 0.0
        %481 = vmatmul.mubr.f32.gmra.mrb[0].mxu0 %v259
        %v482 = vpop.f32.mrb[0].mxu0
        %v483 = vadd.f32 0.0, %v482
        %v484 = vpop.f32.mrb[0].mxu0
        %v485 = vadd.f32 0.0, %v484
        %486 = vmatprep.mubr.f32.mxu0 0.0
        %487 = vmatmul.mubr.f32.gmra.mrb[0].mxu0 %v262
        %v488 = vpop.f32.mrb[0].mxu0
        %v489 = vadd.f32 0.0, %v488
        %v490 = vpop.f32.mrb[0].mxu0
        %v491 = vadd.f32 0.0, %v490
        %492 = vmatprep.mubr.f32.mxu0 0.0
        %493 = vmatmul.mubr.f32.gmra.mrb[0].mxu0 %v265
        %v494 = vpop.f32.mrb[0].mxu0
        %v495 = vadd.f32 0.0, %v494
        %v496 = vpop.f32.mrb[0].mxu0
        %v497 = vadd.f32 0.0, %v496
        %498 = vmatprep.mubr.f32.mxu0 0.0
        %499 = vmatmul.mubr.f32.gmra.mrb[0].mxu0 %v268
        %v500 = vpop.f32.mrb[0].mxu0
        %v501 = vadd.f32 0.0, %v500
        %v502 = vpop.f32.mrb[0].mxu0
        %v503 = vadd.f32 0.0, %v502
        %504 = vmatprep.mubr.f32.mxu0 0.0
        %505 = vmatmul.mubr.f32.gmra.mrb[0].mxu0 %v271
        %v506 = vpop.f32.mrb[0].mxu0
        %v507 = vadd.f32 0.0, %v506
        %v508 = vpop.f32.mrb[0].mxu0
        %v509 = vadd.f32 0.0, %v508
        %510 = vmatprep.mubr.f32.mxu0 0.0
        %511 = vmatmul.mubr.f32.gmra.mrb[0].mxu0 %v274
        %v512 = vpop.f32.mrb[0].mxu0
        %v513 = vadd.f32 0.0, %v512
        %v514 = vpop.f32.mrb[0].mxu0
        %v515 = vadd.f32 0.0, %v514
        %516 = vmatprep.mubr.f32.mxu0 0.0
        %517 = vmatmul.mubr.f32.gmra.mrb[0].mxu0 %v277
        %v518 = vpop.f32.mrb[0].mxu0
        %v519 = vadd.f32 0.0, %v518
        %v520 = vpop.f32.mrb[0].mxu0
        %v521 = vadd.f32 0.0, %v520
        %522 = vmatprep.mubr.f32.mxu0 0.0
        %523 = vmatmul.mubr.f32.gmra.mrb[0].mxu0 %v280
        %v524 = vpop.f32.mrb[0].mxu0
        %v525 = vadd.f32 0.0, %v524
        %v526 = vpop.f32.mrb[0].mxu0
        %v527 = vadd.f32 0.0, %v526
        %528 = vmatprep.mubr.f32.mxu0 0.0
        %529 = vmatmul.mubr.f32.gmra.mrb[0].mxu0 %v283
        %v530 = vpop.f32.mrb[0].mxu0
        %v531 = vadd.f32 0.0, %v530
        %v532 = vpop.f32.mrb[0].mxu0
        %v533 = vadd.f32 0.0, %v532
        %534 = vmatprep.mubr.f32.mxu0 0.0
        %535 = vmatmul.mubr.f32.gmra.mrb[0].mxu0 %v286
        %v536 = vpop.f32.mrb[0].mxu0
        %v537 = vadd.f32 0.0, %v536
        %v538 = vpop.f32.mrb[0].mxu0
        %v539 = vadd.f32 0.0, %v538
        %540 = vmatprep.mubr.f32.mxu0 0.0
        %541 = vmatmul.mubr.f32.gmra.mrb[0].mxu0 %v289
        %v542 = vpop.f32.mrb[0].mxu0
        %v543 = vadd.f32 0.0, %v542
        %v544 = vpop.f32.mrb[0].mxu0
        %v545 = vadd.f32 0.0, %v544
        %546 = vmatprep.mubr.f32.mxu0 0.0
        %547 = vmatmul.mubr.f32.gmra.mrb[0].mxu0 %v292
        %v548 = vpop.f32.mrb[0].mxu0
        %v549 = vadd.f32 0.0, %v548
        %v550 = vpop.f32.mrb[0].mxu0
        %v551 = vadd.f32 0.0, %v550
        %552 = vmatprep.mubr.f32.mxu0 0.0
        %553 = vmatmul.mubr.f32.gmra.mrb[0].mxu0 %v295
        %v554 = vpop.f32.mrb[0].mxu0
        %v555 = vadd.f32 0.0, %v554
        %v556 = vpop.f32.mrb[0].mxu0
        %v557 = vadd.f32 0.0, %v556
        %558 = vmatprep.mubr.f32.mxu0 0.0
        %559 = vmatmul.mubr.f32.gmra.mrb[0].mxu0 %v298
        %v560 = vpop.f32.mrb[0].mxu0
        %v561 = vadd.f32 0.0, %v560
        %v562 = vpop.f32.mrb[0].mxu0
        %v563 = vadd.f32 0.0, %v562
        %564 = vmatprep.mubr.f32.mxu0 0.0
        %565 = vmatmul.mubr.f32.gmra.mrb[0].mxu0 %v301
        %v566 = vpop.f32.mrb[0].mxu0
        %v567 = vadd.f32 0.0, %v566
        %v568 = vpop.f32.mrb[0].mxu0
        %v569 = vadd.f32 0.0, %v568
        %570 = vmatprep.mubr.f32.mxu0 0.0
        %571 = vmatmul.mubr.f32.gmra.mrb[0].mxu0 %v304
        %v572 = vpop.f32.mrb[0].mxu0
        %v573 = vadd.f32 0.0, %v572
        %v574 = vpop.f32.mrb[0].mxu0
        %v575 = vadd.f32 0.0, %v574
        %576 = vmatprep.mubr.f32.mxu0 0.0
        %577 = vmatmul.mubr.f32.gmra.mrb[0].mxu0 %v307
        %v578 = vpop.f32.mrb[0].mxu0
        %v579 = vadd.f32 0.0, %v578
        %v580 = vpop.f32.mrb[0].mxu0
        %v581 = vadd.f32 0.0, %v580
        %582 = vmatprep.mubr.f32.mxu0 0.0
        %583 = vmatmul.mubr.f32.gmra.mrb[0].mxu0 %v310
        %v584 = vpop.f32.mrb[0].mxu0
        %v585 = vadd.f32 0.0, %v584
        %v586 = vpop.f32.mrb[0].mxu0
        %v587 = vadd.f32 0.0, %v586
        %588 = vmatprep.mubr.f32.mxu0 0.0
        %589 = vmatmul.mubr.f32.gmra.mrb[0].mxu0 %v313
        %v590 = vpop.f32.mrb[0].mxu0
        %v591 = vadd.f32 0.0, %v590
        %v592 = vpop.f32.mrb[0].mxu0
        %v593 = vadd.f32 0.0, %v592
        %594 = vmatprep.mubr.f32.mxu0 0.0
        %595 = vmatmul.mubr.f32.gmra.mrb[0].mxu0 %v316
        %v596 = vpop.f32.mrb[0].mxu0
        %v597 = vadd.f32 0.0, %v596
        %v598 = vpop.f32.mrb[0].mxu0
        %v599 = vadd.f32 0.0, %v598
        %600 = vmatprep.mubr.f32.mxu0 0.0
        %601 = vmatmul.mubr.f32.gmra.mrb[0].mxu0 %v319
        %v602 = vpop.f32.mrb[0].mxu0
        %v603 = vadd.f32 0.0, %v602
        %v604 = vpop.f32.mrb[0].mxu0
        %v605 = vadd.f32 0.0, %v604
        %606 = vmatprep.mubr.f32.mxu0 0.0
        %607 = vmatmul.mubr.f32.gmra.mrb[0].mxu0 %v322
        %v608 = vpop.f32.mrb[0].mxu0
        %v609 = vadd.f32 0.0, %v608
        %v610 = vpop.f32.mrb[0].mxu0
        %v611 = vadd.f32 0.0, %v610
        %612 = vmatprep.mubr.f32.mxu0 0.0
        %613 = vmatmul.mubr.f32.gmra.mrb[0].mxu0 %v325
        %v614 = vpop.f32.mrb[0].mxu0
        %v615 = vadd.f32 0.0, %v614
        %v616 = vpop.f32.mrb[0].mxu0
        %v617 = vadd.f32 0.0, %v616
        %618 = vmatprep.mubr.f32.mxu0 0.0
        %619 = vmatmul.mubr.f32.gmra.mrb[0].mxu0 %v328
        %v620 = vpop.f32.mrb[0].mxu0
        %v621 = vadd.f32 0.0, %v620
        %v622 = vpop.f32.mrb[0].mxu0
        %v623 = vadd.f32 0.0, %v622
        %624 = vmatprep.mubr.f32.mxu0 0.0
        %625 = vmatmul.mubr.f32.gmra.mrb[0].mxu0 %v331
        %v626 = vpop.f32.mrb[0].mxu0
        %v627 = vadd.f32 0.0, %v626
        %v628 = vpop.f32.mrb[0].mxu0
        %v629 = vadd.f32 0.0, %v628
        %630 = vmatprep.mubr.f32.mxu0 0.0
        %631 = vmatmul.mubr.f32.gmra.mrb[0].mxu0 %v334
        %v632 = vpop.f32.mrb[0].mxu0
        %v633 = vadd.f32 0.0, %v632
        %v634 = vpop.f32.mrb[0].mxu0
        %v635 = vadd.f32 0.0, %v634
        %636 = vmatprep.mubr.f32.mxu0 0.0
        %637 = vmatmul.mubr.f32.gmra.mrb[0].mxu0 %v337
        %v638 = vpop.f32.mrb[0].mxu0
        %v639 = vadd.f32 0.0, %v638
        %v640 = vpop.f32.mrb[0].mxu0
        %v641 = vadd.f32 0.0, %v640
        %642 = vmatprep.mubr.f32.mxu0 0.0
        %643 = vmatmul.mubr.f32.gmra.mrb[0].mxu0 %v340
        %v644 = vpop.f32.mrb[0].mxu0
        %v645 = vadd.f32 0.0, %v644
        %v646 = vpop.f32.mrb[0].mxu0
        %v647 = vadd.f32 0.0, %v646
        %648 = vmatprep.mubr.f32.mxu0 0.0
        %649 = vmatmul.mubr.f32.gmra.mrb[0].mxu0 %v343
        %v650 = vpop.f32.mrb[0].mxu0
        %v651 = vadd.f32 0.0, %v650
        %v652 = vpop.f32.mrb[0].mxu0
        %v653 = vadd.f32 0.0, %v652
        %654 = vmatprep.mubr.f32.mxu0 0.0
        %655 = vmatmul.mubr.f32.gmra.mrb[0].mxu0 %v346
        %v656 = vpop.f32.mrb[0].mxu0
        %v657 = vadd.f32 0.0, %v656
        %v658 = vpop.f32.mrb[0].mxu0
        %v659 = vadd.f32 0.0, %v658
        %660 = vmatprep.mubr.f32.mxu0 0.0
        %661 = vmatmul.mubr.f32.gmra.mrb[0].mxu0 %v349
        %v662 = vpop.f32.mrb[0].mxu0
        %v663 = vadd.f32 0.0, %v662
        %v664 = vpop.f32.mrb[0].mxu0
        %v665 = vadd.f32 0.0, %v664
        %666 = vmatprep.mubr.f32.mxu0 0.0
        %667 = vmatmul.mubr.f32.gmra.mrb[0].mxu0 %v352
        %v668 = vpop.f32.mrb[0].mxu0
        %v669 = vadd.f32 0.0, %v668
        %v670 = vpop.f32.mrb[0].mxu0
        %v671 = vadd.f32 0.0, %v670
        %672 = vmatprep.mubr.f32.mxu0 0.0
        %673 = vmatmul.mubr.f32.gmra.mrb[0].mxu0 %v355
        %v674 = vpop.f32.mrb[0].mxu0
        %v675 = vadd.f32 0.0, %v674
        %v676 = vpop.f32.mrb[0].mxu0
        %v677 = vadd.f32 0.0, %v676
        %678 = vmatprep.mubr.f32.mxu0 0.0
        %679 = vmatmul.mubr.f32.gmra.mrb[0].mxu0 %v358
        %v680 = vpop.f32.mrb[0].mxu0
        %v681 = vadd.f32 0.0, %v680
        %v682 = vpop.f32.mrb[0].mxu0
        %v683 = vadd.f32 0.0, %v682
        %684 = vmatprep.mubr.f32.mxu0 0.0
        %685 = vmatmul.mubr.f32.gmra.mrb[0].mxu0 %v361
        %v686 = vpop.f32.mrb[0].mxu0
        %v687 = vadd.f32 0.0, %v686
        %v688 = vpop.f32.mrb[0].mxu0
        %v689 = vadd.f32 0.0, %v688
        %690 = vmatprep.mubr.f32.mxu0 0.0
        %691 = vmatmul.mubr.f32.gmra.mrb[0].mxu0 %v364
        %v692 = vpop.f32.mrb[0].mxu0
        %v693 = vadd.f32 0.0, %v692
        %v694 = vpop.f32.mrb[0].mxu0
        %v695 = vadd.f32 0.0, %v694
        %696 = vmatprep.mubr.f32.mxu0 0.0
        %697 = vmatmul.mubr.f32.gmra.mrb[0].mxu0 %v367
        %v698 = vpop.f32.mrb[0].mxu0
        %v699 = vadd.f32 0.0, %v698
        %v700 = vpop.f32.mrb[0].mxu0
        %v701 = vadd.f32 0.0, %v700
        %702 = vmatprep.mubr.f32.mxu0 0.0
        %703 = vmatmul.mubr.f32.gmra.mrb[0].mxu0 %v370
        %v704 = vpop.f32.mrb[0].mxu0
        %v705 = vadd.f32 0.0, %v704
        %v706 = vpop.f32.mrb[0].mxu0
        %v707 = vadd.f32 0.0, %v706
        %708 = vmatprep.mubr.f32.mxu0 0.0
        %709 = vmatmul.mubr.f32.gmra.mrb[0].mxu0 %v373
        %v710 = vpop.f32.mrb[0].mxu0
        %v711 = vadd.f32 0.0, %v710
        %v712 = vpop.f32.mrb[0].mxu0
        %v713 = vadd.f32 0.0, %v712
        %714 = vmatprep.mubr.f32.mxu0 0.0
        %715 = vmatmul.mubr.f32.gmra.mrb[0].mxu0 %v376
        %v716 = vpop.f32.mrb[0].mxu0
        %v717 = vadd.f32 0.0, %v716
        %v718 = vpop.f32.mrb[0].mxu0
        %v719 = vadd.f32 0.0, %v718
        %720 = vmatprep.mubr.f32.mxu0 0.0
        %721 = vmatmul.mubr.f32.gmra.mrb[0].mxu0 %v379
        %v722 = vpop.f32.mrb[0].mxu0
        %v723 = vadd.f32 0.0, %v722
        %v724 = vpop.f32.mrb[0].mxu0
        %v725 = vadd.f32 0.0, %v724
        %726 = vmatprep.mubr.f32.mxu0 0.0
        %727 = vmatmul.mubr.f32.gmra.mrb[0].mxu0 %v382
        %v728 = vpop.f32.mrb[0].mxu0
        %v729 = vadd.f32 0.0, %v728
        %v730 = vpop.f32.mrb[0].mxu0
        %v731 = vadd.f32 0.0, %v730
        %732 = vmatprep.mubr.f32.mxu0 0.0
        %733 = vmatmul.mubr.f32.gmra.mrb[0].mxu0 %v385
        %v734 = vpop.f32.mrb[0].mxu0
        %v735 = vadd.f32 0.0, %v734
        %v736 = vpop.f32.mrb[0].mxu0
        %v737 = vadd.f32 0.0, %v736
        %738 = vmatprep.mubr.f32.mxu0 0.0
        %739 = vmatmul.mubr.f32.gmra.mrb[0].mxu0 %v388
        %v740 = vpop.f32.mrb[0].mxu0
        %v741 = vadd.f32 0.0, %v740
        %v742 = vpop.f32.mrb[0].mxu0
        %v743 = vadd.f32 0.0, %v742
        %744 = vmatprep.mubr.f32.mxu0 0.0
        %745 = vmatmul.mubr.f32.gmra.mrb[0].mxu0 %v391
        %v746 = vpop.f32.mrb[0].mxu0
        %v747 = vadd.f32 0.0, %v746
        %v748 = vpop.f32.mrb[0].mxu0
        %v749 = vadd.f32 0.0, %v748
        %750 = vdwg.mxu0
        %v751 = vmul.f32 %v465, 0.17677669
        %v752 = vmul.f32 %v467, 0.17677669
        %v753 = vmul.f32 %v471, 0.17677669
        %v754 = vmul.f32 %v473, 0.17677669
        %v755 = vmul.f32 %v477, 0.17677669
        %v756 = vmul.f32 %v479, 0.17677669
        %v757 = vmul.f32 %v483, 0.17677669
        %v758 = vmul.f32 %v485, 0.17677669
        %v759 = vpack.c.bf16 %v567, %v561
        %v760 = vpack.c.bf16 %v569, %v563
        %v761 = vpack.c.bf16 %v579, %v573
        %v762 = vpack.c.bf16 %v581, %v575
        %v763 = vpack.c.bf16 %v753, %v751
        %v764 = vpack.c.bf16 %v754, %v752
        %v765 = vpack.c.bf16 %v757, %v755
        %v766 = vpack.c.bf16 %v758, %v756
        %767 = vxpose.xlu0.c.b16.start [1/8] %v759, 128
        %768 = vxpose.xlu0.c.b16.cont [2/8] %v761, 128
        %769 = vxpose.xlu0.c.b16.cont [3/8] 0, 128
        %770 = vxpose.xlu0.c.b16.cont [4/8] 0, 128
        %771 = vxpose.xlu0.c.b16.cont [5/8] 0, 128
        %772 = vxpose.xlu0.c.b16.cont [6/8] 0, 128
        %773 = vxpose.xlu0.c.b16.cont [7/8] 0, 128
        %774 = vxpose.xlu0.c.b16.end [8/8] 0, 128
        %v775 = vpop.trf.xlu0
        %v776 = vpop.trf.xlu0
        %v777 = vpop.trf.xlu0
        %v778 = vpop.trf.xlu0
        %v779 = vpop.trf.xlu0
        %v780 = vpop.trf.xlu0
        %v781 = vpop.trf.xlu0
        %v782 = vpop.trf.xlu0
        %783 = vxpose.xlu0.c.b16.start [1/8] %v760, 128
        %784 = vxpose.xlu0.c.b16.cont [2/8] %v762, 128
        %785 = vxpose.xlu0.c.b16.cont [3/8] 0, 128
        %786 = vxpose.xlu0.c.b16.cont [4/8] 0, 128
        %787 = vxpose.xlu0.c.b16.cont [5/8] 0, 128
        %788 = vxpose.xlu0.c.b16.cont [6/8] 0, 128
        %789 = vxpose.xlu0.c.b16.cont [7/8] 0, 128
        %790 = vxpose.xlu0.c.b16.end [8/8] 0, 128
        %v791 = vpop.trf.xlu0
        %v792 = vpop.trf.xlu0
        %v793 = vpop.trf.xlu0
        %v794 = vpop.trf.xlu0
        %v795 = vpop.trf.xlu0
        %v796 = vpop.trf.xlu0
        %v797 = vpop.trf.xlu0
        %v798 = vpop.trf.xlu0
        %vm799 = vcmask 261120
        %v801 = vsel %vm799, %v775, 0
        %v804 = vsel %vm799, %v776, 0
        %v807 = vsel %vm799, %v777, 0
        %v810 = vsel %vm799, %v778, 0
        %v813 = vsel %vm799, %v779, 0
        %v816 = vsel %vm799, %v780, 0
        %v819 = vsel %vm799, %v781, 0
        %v822 = vsel %vm799, %v782, 0
        %v825 = vsel %vm799, %v791, 0
        %v828 = vsel %vm799, %v792, 0
        %v831 = vsel %vm799, %v793, 0
        %v834 = vsel %vm799, %v794, 0
        %v837 = vsel %vm799, %v795, 0
        %v840 = vsel %vm799, %v796, 0
        %v843 = vsel %vm799, %v797, 0
        %v846 = vsel %vm799, %v798, 0
        %848 = vmatprep.subr.bf16.mxu0 %v764
        %849 = vmatpush1.bf16.msra.mxu0 %v763
        %850 = vmatprep.subr.bf16.mxu0 %v766
        %851 = vmatpush1.bf16.msra.mxu0 %v765
        %852 = vmatprep.subr.bf16.mxu0 0
        %853 = vmatpush1.bf16.msra.mxu0 0
        %854 = vmatprep.subr.bf16.mxu0 0
        %855 = vmatpush1.bf16.msra.mxu0 0
        %856 = vmatprep.subr.bf16.mxu0 0
        %857 = vmatpush1.bf16.msra.mxu0 0
        %858 = vmatprep.subr.bf16.mxu0 0
        %859 = vmatpush1.bf16.msra.mxu0 0
        %860 = vmatprep.subr.bf16.mxu0 0
        %861 = vmatpush1.bf16.msra.mxu0 0
        %862 = vmatprep.subr.bf16.mxu0 0
        %863 = vmatpush1.bf16.msra.mxu0 0
        %864 = vmatprep.subr.bf16.mxu0 0
        %865 = vmatpush1.bf16.msra.mxu0 0
        %866 = vmatprep.subr.bf16.mxu0 0
        %867 = vmatpush1.bf16.msra.mxu0 0
        %868 = vmatprep.subr.bf16.mxu0 0
        %869 = vmatpush1.bf16.msra.mxu0 0
        %870 = vmatprep.subr.bf16.mxu0 0
        %871 = vmatpush1.bf16.msra.mxu0 0
        %872 = vmatprep.subr.bf16.mxu0 0
        %873 = vmatpush1.bf16.msra.mxu0 0
        %874 = vmatprep.subr.bf16.mxu0 0
        %875 = vmatpush1.bf16.msra.mxu0 0
        %876 = vmatprep.subr.bf16.mxu0 0
        %877 = vmatpush1.bf16.msra.mxu0 0
        %878 = vmatprep.subr.bf16.mxu0 0
        %879 = vmatpush1.bf16.msra.mxu0 0
        %880 = vmatprep.mubr.bf16.mxu0 0
        %881 = vmatmul.mubr.bf16.gmra.mrb[0].mxu0 %v801
        %v882 = vpop.f32.mrb[0].mxu0
        %v883 = vadd.f32 0.0, %v882
        %v884 = vpop.f32.mrb[0].mxu0
        %v885 = vadd.f32 0.0, %v884
        %v886 = vpop.f32.mrb[0].mxu0
        %v887 = vadd.f32 0.0, %v886
        %v888 = vpop.f32.mrb[0].mxu0
        %v889 = vadd.f32 0.0, %v888
        %890 = vmatprep.mubr.bf16.mxu0 0
        %891 = vmatmul.mubr.bf16.gmra.mrb[0].mxu0 %v804
        %v892 = vpop.f32.mrb[0].mxu0
        %v893 = vadd.f32 0.0, %v892
        %v894 = vpop.f32.mrb[0].mxu0
        %v895 = vadd.f32 0.0, %v894
        %v896 = vpop.f32.mrb[0].mxu0
        %v897 = vadd.f32 0.0, %v896
        %v898 = vpop.f32.mrb[0].mxu0
        %v899 = vadd.f32 0.0, %v898
        %900 = vmatprep.mubr.bf16.mxu0 0
        %901 = vmatmul.mubr.bf16.gmra.mrb[0].mxu0 %v807
        %v902 = vpop.f32.mrb[0].mxu0
        %v903 = vadd.f32 0.0, %v902
        %v904 = vpop.f32.mrb[0].mxu0
        %v905 = vadd.f32 0.0, %v904
        %v906 = vpop.f32.mrb[0].mxu0
        %v907 = vadd.f32 0.0, %v906
        %v908 = vpop.f32.mrb[0].mxu0
        %v909 = vadd.f32 0.0, %v908
        %910 = vmatprep.mubr.bf16.mxu0 0
        %911 = vmatmul.mubr.bf16.gmra.mrb[0].mxu0 %v810
        %v912 = vpop.f32.mrb[0].mxu0
        %v913 = vadd.f32 0.0, %v912
        %v914 = vpop.f32.mrb[0].mxu0
        %v915 = vadd.f32 0.0, %v914
        %v916 = vpop.f32.mrb[0].mxu0
        %v917 = vadd.f32 0.0, %v916
        %v918 = vpop.f32.mrb[0].mxu0
        %v919 = vadd.f32 0.0, %v918
        %920 = vmatprep.mubr.bf16.mxu0 0
        %921 = vmatmul.mubr.bf16.gmra.mrb[0].mxu0 %v813
        %v922 = vpop.f32.mrb[0].mxu0
        %v923 = vadd.f32 0.0, %v922
        %v924 = vpop.f32.mrb[0].mxu0
        %v925 = vadd.f32 0.0, %v924
        %v926 = vpop.f32.mrb[0].mxu0
        %v927 = vadd.f32 0.0, %v926
        %v928 = vpop.f32.mrb[0].mxu0
        %v929 = vadd.f32 0.0, %v928
        %930 = vmatprep.mubr.bf16.mxu0 0
        %931 = vmatmul.mubr.bf16.gmra.mrb[0].mxu0 %v816
        %v932 = vpop.f32.mrb[0].mxu0
        %v933 = vadd.f32 0.0, %v932
        %v934 = vpop.f32.mrb[0].mxu0
        %v935 = vadd.f32 0.0, %v934
        %v936 = vpop.f32.mrb[0].mxu0
        %v937 = vadd.f32 0.0, %v936
        %v938 = vpop.f32.mrb[0].mxu0
        %v939 = vadd.f32 0.0, %v938
        %940 = vmatprep.mubr.bf16.mxu0 0
        %941 = vmatmul.mubr.bf16.gmra.mrb[0].mxu0 %v819
        %v942 = vpop.f32.mrb[0].mxu0
        %v943 = vadd.f32 0.0, %v942
        %v944 = vpop.f32.mrb[0].mxu0
        %v945 = vadd.f32 0.0, %v944
        %v946 = vpop.f32.mrb[0].mxu0
        %v947 = vadd.f32 0.0, %v946
        %v948 = vpop.f32.mrb[0].mxu0
        %v949 = vadd.f32 0.0, %v948
        %950 = vmatprep.mubr.bf16.mxu0 0
        %951 = vmatmul.mubr.bf16.gmra.mrb[0].mxu0 %v822
        %v952 = vpop.f32.mrb[0].mxu0
        %v953 = vadd.f32 0.0, %v952
        %v954 = vpop.f32.mrb[0].mxu0
        %v955 = vadd.f32 0.0, %v954
        %v956 = vpop.f32.mrb[0].mxu0
        %v957 = vadd.f32 0.0, %v956
        %v958 = vpop.f32.mrb[0].mxu0
        %v959 = vadd.f32 0.0, %v958
        %960 = vmatprep.mubr.bf16.mxu0 0
        %961 = vmatmul.mubr.bf16.gmra.mrb[0].mxu0 %v825
        %v962 = vpop.f32.mrb[0].mxu0
        %v963 = vadd.f32 0.0, %v962
        %v964 = vpop.f32.mrb[0].mxu0
        %v965 = vadd.f32 0.0, %v964
        %v966 = vpop.f32.mrb[0].mxu0
        %v967 = vadd.f32 0.0, %v966
        %v968 = vpop.f32.mrb[0].mxu0
        %v969 = vadd.f32 0.0, %v968
        %970 = vmatprep.mubr.bf16.mxu0 0
        %971 = vmatmul.mubr.bf16.gmra.mrb[0].mxu0 %v828
        %v972 = vpop.f32.mrb[0].mxu0
        %v973 = vadd.f32 0.0, %v972
        %v974 = vpop.f32.mrb[0].mxu0
        %v975 = vadd.f32 0.0, %v974
        %v976 = vpop.f32.mrb[0].mxu0
        %v977 = vadd.f32 0.0, %v976
        %v978 = vpop.f32.mrb[0].mxu0
        %v979 = vadd.f32 0.0, %v978
        %980 = vmatprep.mubr.bf16.mxu0 0
        %981 = vmatmul.mubr.bf16.gmra.mrb[0].mxu0 %v831
        %v982 = vpop.f32.mrb[0].mxu0
        %v983 = vadd.f32 0.0, %v982
        %v984 = vpop.f32.mrb[0].mxu0
        %v985 = vadd.f32 0.0, %v984
        %v986 = vpop.f32.mrb[0].mxu0
        %v987 = vadd.f32 0.0, %v986
        %v988 = vpop.f32.mrb[0].mxu0
        %v989 = vadd.f32 0.0, %v988
        %990 = vmatprep.mubr.bf16.mxu0 0
        %991 = vmatmul.mubr.bf16.gmra.mrb[0].mxu0 %v834
        %v992 = vpop.f32.mrb[0].mxu0
        %v993 = vadd.f32 0.0, %v992
        %v994 = vpop.f32.mrb[0].mxu0
        %v995 = vadd.f32 0.0, %v994
        %v996 = vpop.f32.mrb[0].mxu0
        %v997 = vadd.f32 0.0, %v996
        %v998 = vpop.f32.mrb[0].mxu0
        %v999 = vadd.f32 0.0, %v998
        %1000 = vmatprep.mubr.bf16.mxu0 0
        %1001 = vmatmul.mubr.bf16.gmra.mrb[0].mxu0 %v837
        %v1002 = vpop.f32.mrb[0].mxu0
        %v1003 = vadd.f32 0.0, %v1002
        %v1004 = vpop.f32.mrb[0].mxu0
        %v1005 = vadd.f32 0.0, %v1004
        %v1006 = vpop.f32.mrb[0].mxu0
        %v1007 = vadd.f32 0.0, %v1006
        %v1008 = vpop.f32.mrb[0].mxu0
        %v1009 = vadd.f32 0.0, %v1008
        %1010 = vmatprep.mubr.bf16.mxu0 0
        %1011 = vmatmul.mubr.bf16.gmra.mrb[0].mxu0 %v840
        %v1012 = vpop.f32.mrb[0].mxu0
        %v1013 = vadd.f32 0.0, %v1012
        %v1014 = vpop.f32.mrb[0].mxu0
        %v1015 = vadd.f32 0.0, %v1014
        %v1016 = vpop.f32.mrb[0].mxu0
        %v1017 = vadd.f32 0.0, %v1016
        %v1018 = vpop.f32.mrb[0].mxu0
        %v1019 = vadd.f32 0.0, %v1018
        %1020 = vmatprep.mubr.bf16.mxu0 0
        %1021 = vmatmul.mubr.bf16.gmra.mrb[0].mxu0 %v843
        %v1022 = vpop.f32.mrb[0].mxu0
        %v1023 = vadd.f32 0.0, %v1022
        %v1024 = vpop.f32.mrb[0].mxu0
        %v1025 = vadd.f32 0.0, %v1024
        %v1026 = vpop.f32.mrb[0].mxu0
        %v1027 = vadd.f32 0.0, %v1026
        %v1028 = vpop.f32.mrb[0].mxu0
        %v1029 = vadd.f32 0.0, %v1028
        %1030 = vmatprep.mubr.bf16.mxu0 0
        %1031 = vmatmul.mubr.bf16.gmra.mrb[0].mxu0 %v846
        %v1032 = vpop.f32.mrb[0].mxu0
        %v1033 = vadd.f32 0.0, %v1032
        %v1034 = vpop.f32.mrb[0].mxu0
        %v1035 = vadd.f32 0.0, %v1034
        %v1036 = vpop.f32.mrb[0].mxu0
        %v1037 = vadd.f32 0.0, %v1036
        %v1038 = vpop.f32.mrb[0].mxu0
        %v1039 = vadd.f32 0.0, %v1038
        %1040 = vdwg.mxu0
        %v1041 = vmax.f32 %v883, %v893
        %v1042 = vmax.f32 %v887, %v897
        %v1043 = vmax.f32 %v1041, %v903
        %v1044 = vmax.f32 %v1042, %v907
        %v1045 = vmax.f32 %v1043, %v913
        %v1046 = vmax.f32 %v1044, %v917
        %v1047 = vmax.f32 %v1045, %v923
        %v1048 = vmax.f32 %v1046, %v927
        %v1049 = vmax.f32 %v1047, %v933
        %v1050 = vmax.f32 %v1048, %v937
        %v1051 = vmax.f32 %v1049, %v943
        %v1052 = vmax.f32 %v1050, %v947
        %v1053 = vmax.f32 %v1051, %v953
        %v1054 = vmax.f32 %v1052, %v957
        %v1055 = vmax.f32 %v1053, %v963
        %v1056 = vmax.f32 %v1054, %v967
        %v1057 = vmax.f32 %v1055, %v973
        %v1058 = vmax.f32 %v1056, %v977
        %v1059 = vmax.f32 %v1057, %v983
        %v1060 = vmax.f32 %v1058, %v987
        %v1061 = vmax.f32 %v1059, %v993
        %v1062 = vmax.f32 %v1060, %v997
        %v1063 = vmax.f32 %v1061, %v1003
        %v1064 = vmax.f32 %v1062, %v1007
        %v1065 = vmax.f32 %v1063, %v1013
        %v1066 = vmax.f32 %v1064, %v1017
        %v1067 = vmax.f32 %v1065, %v1023
        %v1068 = vmax.f32 %v1066, %v1027
        %v1069 = vmax.f32 %v1067, %v1033
        %v1070 = vmax.f32 %v1068, %v1037
        %v1071 = vmax.f32 %v1069, %v1070
        %v1072 = vrot.slane %v1071, 4
        %v1073 = vmax.f32 %v1071, %v1072
        %v1074 = vrot.slane %v1073, 2
        %v1075 = vmax.f32 %v1073, %v1074
        %v1076 = vrot.slane %v1075, 1
        %v1077 = vmax.f32 %v1075, %v1076
        %v1078 = vmax.f32 %v885, %v895
        %v1079 = vmax.f32 %v889, %v899
        %v1080 = vmax.f32 %v1078, %v905
        %v1081 = vmax.f32 %v1079, %v909
        %v1082 = vmax.f32 %v1080, %v915
        %v1083 = vmax.f32 %v1081, %v919
        %v1084 = vmax.f32 %v1082, %v925
        %v1085 = vmax.f32 %v1083, %v929
        %v1086 = vmax.f32 %v1084, %v935
        %v1087 = vmax.f32 %v1085, %v939
        %v1088 = vmax.f32 %v1086, %v945
        %v1089 = vmax.f32 %v1087, %v949
        %v1090 = vmax.f32 %v1088, %v955
        %v1091 = vmax.f32 %v1089, %v959
        %v1092 = vmax.f32 %v1090, %v965
        %v1093 = vmax.f32 %v1091, %v969
        %v1094 = vmax.f32 %v1092, %v975
        %v1095 = vmax.f32 %v1093, %v979
        %v1096 = vmax.f32 %v1094, %v985
        %v1097 = vmax.f32 %v1095, %v989
        %v1098 = vmax.f32 %v1096, %v995
        %v1099 = vmax.f32 %v1097, %v999
        %v1100 = vmax.f32 %v1098, %v1005
        %v1101 = vmax.f32 %v1099, %v1009
        %v1102 = vmax.f32 %v1100, %v1015
        %v1103 = vmax.f32 %v1101, %v1019
        %v1104 = vmax.f32 %v1102, %v1025
        %v1105 = vmax.f32 %v1103, %v1029
        %v1106 = vmax.f32 %v1104, %v1035
        %v1107 = vmax.f32 %v1105, %v1039
        %v1108 = vmax.f32 %v1106, %v1107
        %v1109 = vrot.slane %v1108, 4
        %v1110 = vmax.f32 %v1108, %v1109
        %v1111 = vrot.slane %v1110, 2
        %v1112 = vmax.f32 %v1110, %v1111
        %v1113 = vrot.slane %v1112, 1
        %v1114 = vmax.f32 %v1112, %v1113
        %v1115 = vsub.f32 %v883, %v1077
        %v1116 = vsub.f32 %v885, %v1114
        %v1117 = vsub.f32 %v887, %v1077
        %v1118 = vsub.f32 %v889, %v1114
        %v1119 = vsub.f32 %v893, %v1077
        %v1120 = vsub.f32 %v895, %v1114
        %v1121 = vsub.f32 %v897, %v1077
        %v1122 = vsub.f32 %v899, %v1114
        %v1123 = vsub.f32 %v903, %v1077
        %v1124 = vsub.f32 %v905, %v1114
        %v1125 = vsub.f32 %v907, %v1077
        %v1126 = vsub.f32 %v909, %v1114
        %v1127 = vsub.f32 %v913, %v1077
        %v1128 = vsub.f32 %v915, %v1114
        %v1129 = vsub.f32 %v917, %v1077
        %v1130 = vsub.f32 %v919, %v1114
        %v1131 = vsub.f32 %v923, %v1077
        %v1132 = vsub.f32 %v925, %v1114
        %v1133 = vsub.f32 %v927, %v1077
        %v1134 = vsub.f32 %v929, %v1114
        %v1135 = vsub.f32 %v933, %v1077
        %v1136 = vsub.f32 %v935, %v1114
        %v1137 = vsub.f32 %v937, %v1077
        %v1138 = vsub.f32 %v939, %v1114
        %v1139 = vsub.f32 %v943, %v1077
        %v1140 = vsub.f32 %v945, %v1114
        %v1141 = vsub.f32 %v947, %v1077
        %v1142 = vsub.f32 %v949, %v1114
        %v1143 = vsub.f32 %v953, %v1077
        %v1144 = vsub.f32 %v955, %v1114
        %v1145 = vsub.f32 %v957, %v1077
        %v1146 = vsub.f32 %v959, %v1114
        %v1147 = vsub.f32 %v963, %v1077
        %v1148 = vsub.f32 %v965, %v1114
        %v1149 = vsub.f32 %v967, %v1077
        %v1150 = vsub.f32 %v969, %v1114
        %v1151 = vsub.f32 %v973, %v1077
        %v1152 = vsub.f32 %v975, %v1114
        %v1153 = vsub.f32 %v977, %v1077
        %v1154 = vsub.f32 %v979, %v1114
        %v1155 = vsub.f32 %v983, %v1077
        %v1156 = vsub.f32 %v985, %v1114
        %v1157 = vsub.f32 %v987, %v1077
        %v1158 = vsub.f32 %v989, %v1114
        %v1159 = vsub.f32 %v993, %v1077
        %v1160 = vsub.f32 %v995, %v1114
        %v1161 = vsub.f32 %v997, %v1077
        %v1162 = vsub.f32 %v999, %v1114
        %v1163 = vsub.f32 %v1003, %v1077
        %v1164 = vsub.f32 %v1005, %v1114
        %v1165 = vsub.f32 %v1007, %v1077
        %v1166 = vsub.f32 %v1009, %v1114
        %v1167 = vsub.f32 %v1013, %v1077
        %v1168 = vsub.f32 %v1015, %v1114
        %v1169 = vsub.f32 %v1017, %v1077
        %v1170 = vsub.f32 %v1019, %v1114
        %v1171 = vsub.f32 %v1023, %v1077
        %v1172 = vsub.f32 %v1025, %v1114
        %v1173 = vsub.f32 %v1027, %v1077
        %v1174 = vsub.f32 %v1029, %v1114
        %v1175 = vsub.f32 %v1033, %v1077
        %v1176 = vsub.f32 %v1035, %v1114
        %v1177 = vsub.f32 %v1037, %v1077
        %v1178 = vsub.f32 %v1039, %v1114
        %v1179 = vmul.f32 %v1115, 1.442695
        %v1180 = vpow.pop %v1179
        %v1181 = vmul.f32 %v1116, 1.442695
        %v1182 = vpow.pop %v1181
        %v1183 = vmul.f32 %v1117, 1.442695
        %v1184 = vpow.pop %v1183
        %v1185 = vmul.f32 %v1118, 1.442695
        %v1186 = vpow.pop %v1185
        %v1187 = vmul.f32 %v1119, 1.442695
        %v1188 = vpow.pop %v1187
        %v1189 = vmul.f32 %v1120, 1.442695
        %v1190 = vpow.pop %v1189
        %v1191 = vmul.f32 %v1121, 1.442695
        %v1192 = vpow.pop %v1191
        %v1193 = vmul.f32 %v1122, 1.442695
        %v1194 = vpow.pop %v1193
        %v1195 = vmul.f32 %v1123, 1.442695
        %v1196 = vpow.pop %v1195
        %v1197 = vmul.f32 %v1124, 1.442695
        %v1198 = vpow.pop %v1197
        %v1199 = vmul.f32 %v1125, 1.442695
        %v1200 = vpow.pop %v1199
        %v1201 = vmul.f32 %v1126, 1.442695
        %v1202 = vpow.pop %v1201
        %v1203 = vmul.f32 %v1127, 1.442695
        %v1204 = vpow.pop %v1203
        %v1205 = vmul.f32 %v1128, 1.442695
        %v1206 = vpow.pop %v1205
        %v1207 = vmul.f32 %v1129, 1.442695
        %v1208 = vpow.pop %v1207
        %v1209 = vmul.f32 %v1130, 1.442695
        %v1210 = vpow.pop %v1209
        %v1211 = vmul.f32 %v1131, 1.442695
        %v1212 = vpow.pop %v1211
        %v1213 = vmul.f32 %v1132, 1.442695
        %v1214 = vpow.pop %v1213
        %v1215 = vmul.f32 %v1133, 1.442695
        %v1216 = vpow.pop %v1215
        %v1217 = vmul.f32 %v1134, 1.442695
        %v1218 = vpow.pop %v1217
        %v1219 = vmul.f32 %v1135, 1.442695
        %v1220 = vpow.pop %v1219
        %v1221 = vmul.f32 %v1136, 1.442695
        %v1222 = vpow.pop %v1221
        %v1223 = vmul.f32 %v1137, 1.442695
        %v1224 = vpow.pop %v1223
        %v1225 = vmul.f32 %v1138, 1.442695
        %v1226 = vpow.pop %v1225
        %v1227 = vmul.f32 %v1139, 1.442695
        %v1228 = vpow.pop %v1227
        %v1229 = vmul.f32 %v1140, 1.442695
        %v1230 = vpow.pop %v1229
        %v1231 = vmul.f32 %v1141, 1.442695
        %v1232 = vpow.pop %v1231
        %v1233 = vmul.f32 %v1142, 1.442695
        %v1234 = vpow.pop %v1233
        %v1235 = vmul.f32 %v1143, 1.442695
        %v1236 = vpow.pop %v1235
        %v1237 = vmul.f32 %v1144, 1.442695
        %v1238 = vpow.pop %v1237
        %v1239 = vmul.f32 %v1145, 1.442695
        %v1240 = vpow.pop %v1239
        %v1241 = vmul.f32 %v1146, 1.442695
        %v1242 = vpow.pop %v1241
        %v1243 = vmul.f32 %v1147, 1.442695
        %v1244 = vpow.pop %v1243
        %v1245 = vmul.f32 %v1148, 1.442695
        %v1246 = vpow.pop %v1245
        %v1247 = vmul.f32 %v1149, 1.442695
        %v1248 = vpow.pop %v1247
        %v1249 = vmul.f32 %v1150, 1.442695
        %v1250 = vpow.pop %v1249
        %v1251 = vmul.f32 %v1151, 1.442695
        %v1252 = vpow.pop %v1251
        %v1253 = vmul.f32 %v1152, 1.442695
        %v1254 = vpow.pop %v1253
        %v1255 = vmul.f32 %v1153, 1.442695
        %v1256 = vpow.pop %v1255
        %v1257 = vmul.f32 %v1154, 1.442695
        %v1258 = vpow.pop %v1257
        %v1259 = vmul.f32 %v1155, 1.442695
        %v1260 = vpow.pop %v1259
        %v1261 = vmul.f32 %v1156, 1.442695
        %v1262 = vpow.pop %v1261
        %v1263 = vmul.f32 %v1157, 1.442695
        %v1264 = vpow.pop %v1263
        %v1265 = vmul.f32 %v1158, 1.442695
        %v1266 = vpow.pop %v1265
        %v1267 = vmul.f32 %v1159, 1.442695
        %v1268 = vpow.pop %v1267
        %v1269 = vmul.f32 %v1160, 1.442695
        %v1270 = vpow.pop %v1269
        %v1271 = vmul.f32 %v1161, 1.442695
        %v1272 = vpow.pop %v1271
        %v1273 = vmul.f32 %v1162, 1.442695
        %v1274 = vpow.pop %v1273
        %v1275 = vmul.f32 %v1163, 1.442695
        %v1276 = vpow.pop %v1275
        %v1277 = vmul.f32 %v1164, 1.442695
        %v1278 = vpow.pop %v1277
        %v1279 = vmul.f32 %v1165, 1.442695
        %v1280 = vpow.pop %v1279
        %v1281 = vmul.f32 %v1166, 1.442695
        %v1282 = vpow.pop %v1281
        %v1283 = vmul.f32 %v1167, 1.442695
        %v1284 = vpow.pop %v1283
        %v1285 = vmul.f32 %v1168, 1.442695
        %v1286 = vpow.pop %v1285
        %v1287 = vmul.f32 %v1169, 1.442695
        %v1288 = vpow.pop %v1287
        %v1289 = vmul.f32 %v1170, 1.442695
        %v1290 = vpow.pop %v1289
        %v1291 = vmul.f32 %v1171, 1.442695
        %v1292 = vpow.pop %v1291
        %v1293 = vmul.f32 %v1172, 1.442695
        %v1294 = vpow.pop %v1293
        %v1295 = vmul.f32 %v1173, 1.442695
        %v1296 = vpow.pop %v1295
        %v1297 = vmul.f32 %v1174, 1.442695
        %v1298 = vpow.pop %v1297
        %v1299 = vmul.f32 %v1175, 1.442695
        %v1300 = vpow.pop %v1299
        %v1301 = vmul.f32 %v1176, 1.442695
        %v1302 = vpow.pop %v1301
        %v1303 = vmul.f32 %v1177, 1.442695
        %v1304 = vpow.pop %v1303
        %v1305 = vmul.f32 %v1178, 1.442695
        %v1306 = vpow.pop %v1305
        %v1307 = vadd.f32 %v1180, %v1184
        %v1308 = vadd.f32 %v1307, %v1188
        %v1309 = vadd.f32 %v1308, %v1192
        %v1310 = vadd.f32 %v1309, %v1196
        %v1311 = vadd.f32 %v1310, %v1200
        %v1312 = vadd.f32 %v1311, %v1204
        %v1313 = vadd.f32 %v1312, %v1208
        %v1314 = vadd.f32 %v1313, %v1212
        %v1315 = vadd.f32 %v1314, %v1216
        %v1316 = vadd.f32 %v1315, %v1220
        %v1317 = vadd.f32 %v1316, %v1224
        %v1318 = vadd.f32 %v1317, %v1228
        %v1319 = vadd.f32 %v1318, %v1232
        %v1320 = vadd.f32 %v1319, %v1236
        %v1321 = vadd.f32 %v1320, %v1240
        %v1322 = vadd.f32 %v1321, %v1244
        %v1323 = vadd.f32 %v1322, %v1248
        %v1324 = vadd.f32 %v1323, %v1252
        %v1325 = vadd.f32 %v1324, %v1256
        %v1326 = vadd.f32 %v1325, %v1260
        %v1327 = vadd.f32 %v1326, %v1264
        %v1328 = vadd.f32 %v1327, %v1268
        %v1329 = vadd.f32 %v1328, %v1272
        %v1330 = vadd.f32 %v1329, %v1276
        %v1331 = vadd.f32 %v1330, %v1280
        %v1332 = vadd.f32 %v1331, %v1284
        %v1333 = vadd.f32 %v1332, %v1288
        %v1334 = vadd.f32 %v1333, %v1292
        %v1335 = vadd.f32 %v1334, %v1296
        %v1336 = vadd.f32 %v1335, %v1300
        %v1337 = vadd.f32 %v1336, %v1304
        %v1338 = vrot.slane %v1337, 4
        %v1339 = vadd.f32 %v1337, %v1338
        %v1340 = vrot.slane %v1339, 2
        %v1341 = vadd.f32 %v1339, %v1340
        %v1342 = vrot.slane %v1341, 1
        %v1343 = vadd.f32 %v1341, %v1342
        %v1344 = vadd.f32 %v1182, %v1186
        %v1345 = vadd.f32 %v1344, %v1190
        %v1346 = vadd.f32 %v1345, %v1194
        %v1347 = vadd.f32 %v1346, %v1198
        %v1348 = vadd.f32 %v1347, %v1202
        %v1349 = vadd.f32 %v1348, %v1206
        %v1350 = vadd.f32 %v1349, %v1210
        %v1351 = vadd.f32 %v1350, %v1214
        %v1352 = vadd.f32 %v1351, %v1218
        %v1353 = vadd.f32 %v1352, %v1222
        %v1354 = vadd.f32 %v1353, %v1226
        %v1355 = vadd.f32 %v1354, %v1230
        %v1356 = vadd.f32 %v1355, %v1234
        %v1357 = vadd.f32 %v1356, %v1238
        %v1358 = vadd.f32 %v1357, %v1242
        %v1359 = vadd.f32 %v1358, %v1246
        %v1360 = vadd.f32 %v1359, %v1250
        %v1361 = vadd.f32 %v1360, %v1254
        %v1362 = vadd.f32 %v1361, %v1258
        %v1363 = vadd.f32 %v1362, %v1262
        %v1364 = vadd.f32 %v1363, %v1266
        %v1365 = vadd.f32 %v1364, %v1270
        %v1366 = vadd.f32 %v1365, %v1274
        %v1367 = vadd.f32 %v1366, %v1278
        %v1368 = vadd.f32 %v1367, %v1282
        %v1369 = vadd.f32 %v1368, %v1286
        %v1370 = vadd.f32 %v1369, %v1290
        %v1371 = vadd.f32 %v1370, %v1294
        %v1372 = vadd.f32 %v1371, %v1298
        %v1373 = vadd.f32 %v1372, %v1302
        %v1374 = vadd.f32 %v1373, %v1306
        %v1375 = vrot.slane %v1374, 4
        %v1376 = vadd.f32 %v1374, %v1375
        %v1377 = vrot.slane %v1376, 2
        %v1378 = vadd.f32 %v1376, %v1377
        %v1379 = vrot.slane %v1378, 1
        %v1380 = vadd.f32 %v1378, %v1379
        %v1381 = vrcp.pop %v1343
        %v1382 = vrcp.pop %v1380
        %v1383 = vpack.c.bf16 %v663, %v657
        %v1384 = vpack.c.bf16 %v665, %v659
        %v1385 = vpack.c.bf16 %v675, %v669
        %v1386 = vpack.c.bf16 %v677, %v671
        %v1387 = vpack.c.bf16 %v1184, %v1180
        %v1388 = vpack.c.bf16 %v1186, %v1182
        %v1389 = vpack.c.bf16 %v1192, %v1188
        %v1390 = vpack.c.bf16 %v1194, %v1190
        %v1391 = vpack.c.bf16 %v1200, %v1196
        %v1392 = vpack.c.bf16 %v1202, %v1198
        %v1393 = vpack.c.bf16 %v1208, %v1204
        %v1394 = vpack.c.bf16 %v1210, %v1206
        %v1395 = vpack.c.bf16 %v1216, %v1212
        %v1396 = vpack.c.bf16 %v1218, %v1214
        %v1397 = vpack.c.bf16 %v1224, %v1220
        %v1398 = vpack.c.bf16 %v1226, %v1222
        %v1399 = vpack.c.bf16 %v1232, %v1228
        %v1400 = vpack.c.bf16 %v1234, %v1230
        %v1401 = vpack.c.bf16 %v1240, %v1236
        %v1402 = vpack.c.bf16 %v1242, %v1238
        %v1403 = vpack.c.bf16 %v1248, %v1244
        %v1404 = vpack.c.bf16 %v1250, %v1246
        %v1405 = vpack.c.bf16 %v1256, %v1252
        %v1406 = vpack.c.bf16 %v1258, %v1254
        %v1407 = vpack.c.bf16 %v1264, %v1260
        %v1408 = vpack.c.bf16 %v1266, %v1262
        %v1409 = vpack.c.bf16 %v1272, %v1268
        %v1410 = vpack.c.bf16 %v1274, %v1270
        %v1411 = vpack.c.bf16 %v1280, %v1276
        %v1412 = vpack.c.bf16 %v1282, %v1278
        %v1413 = vpack.c.bf16 %v1288, %v1284
        %v1414 = vpack.c.bf16 %v1290, %v1286
        %v1415 = vpack.c.bf16 %v1296, %v1292
        %v1416 = vpack.c.bf16 %v1298, %v1294
        %v1417 = vpack.c.bf16 %v1304, %v1300
        %v1418 = vpack.c.bf16 %v1306, %v1302
        %1419 = vmatprep.subr.bf16.mxu0 %v1388
        %1420 = vmatpush1.bf16.msra.mxu0 %v1387
        %1421 = vmatprep.subr.bf16.mxu0 %v1390
        %1422 = vmatpush1.bf16.msra.mxu0 %v1389
        %1423 = vmatprep.subr.bf16.mxu0 %v1392
        %1424 = vmatpush1.bf16.msra.mxu0 %v1391
        %1425 = vmatprep.subr.bf16.mxu0 %v1394
        %1426 = vmatpush1.bf16.msra.mxu0 %v1393
        %1427 = vmatprep.subr.bf16.mxu0 %v1396
        %1428 = vmatpush1.bf16.msra.mxu0 %v1395
        %1429 = vmatprep.subr.bf16.mxu0 %v1398
        %1430 = vmatpush1.bf16.msra.mxu0 %v1397
        %1431 = vmatprep.subr.bf16.mxu0 %v1400
        %1432 = vmatpush1.bf16.msra.mxu0 %v1399
        %1433 = vmatprep.subr.bf16.mxu0 %v1402
        %1434 = vmatpush1.bf16.msra.mxu0 %v1401
        %1435 = vmatprep.subr.bf16.mxu0 %v1404
        %1436 = vmatpush1.bf16.msra.mxu0 %v1403
        %1437 = vmatprep.subr.bf16.mxu0 %v1406
        %1438 = vmatpush1.bf16.msra.mxu0 %v1405
        %1439 = vmatprep.subr.bf16.mxu0 %v1408
        %1440 = vmatpush1.bf16.msra.mxu0 %v1407
        %1441 = vmatprep.subr.bf16.mxu0 %v1410
        %1442 = vmatpush1.bf16.msra.mxu0 %v1409
        %1443 = vmatprep.subr.bf16.mxu0 %v1412
        %1444 = vmatpush1.bf16.msra.mxu0 %v1411
        %1445 = vmatprep.subr.bf16.mxu0 %v1414
        %1446 = vmatpush1.bf16.msra.mxu0 %v1413
        %1447 = vmatprep.subr.bf16.mxu0 %v1416
        %1448 = vmatpush1.bf16.msra.mxu0 %v1415
        %1449 = vmatprep.subr.bf16.mxu0 %v1418
        %1450 = vmatpush1.bf16.msra.mxu0 %v1417
        %1451 = vmatprep.mubr.bf16.mxu0 %v1384
        %1452 = vmatmul.mubr.bf16.gmra.mrb[0].mxu0 %v1383
        %v1453 = vpop.f32.mrb[0].mxu0
        %v1454 = vadd.f32 0.0, %v1453
        %v1455 = vpop.f32.mrb[0].mxu0
        %v1456 = vadd.f32 0.0, %v1455
        %v1457 = vpop.f32.mrb[0].mxu0
        %v1458 = vadd.f32 0.0, %v1457
        %v1459 = vpop.f32.mrb[0].mxu0
        %v1460 = vadd.f32 0.0, %v1459
        %1461 = vmatprep.mubr.bf16.mxu0 %v1386
        %1462 = vmatmul.mubr.bf16.gmra.mrb[0].mxu0 %v1385
        %v1463 = vpop.f32.mrb[0].mxu0
        %v1464 = vadd.f32 0.0, %v1463
        %v1465 = vpop.f32.mrb[0].mxu0
        %v1466 = vadd.f32 0.0, %v1465
        %v1467 = vpop.f32.mrb[0].mxu0
        %v1468 = vadd.f32 0.0, %v1467
        %v1469 = vpop.f32.mrb[0].mxu0
        %v1470 = vadd.f32 0.0, %v1469
        %1471 = vdwg.mxu0
        %v1472 = vmul.f32 %v1454, %v1381
        %v1473 = vmul.f32 %v1456, %v1382
        %v1474 = vmul.f32 %v1458, %v1381
        %v1475 = vmul.f32 %v1460, %v1382
        %v1476 = vmul.f32 %v1464, %v1381
        %v1477 = vmul.f32 %v1466, %v1382
        %v1478 = vmul.f32 %v1468, %v1381
        %v1479 = vmul.f32 %v1470, %v1382
        %1480 = vst [vmem:[#allocation2] sm:$0xff] %v1472
        %1481 = vst [vmem:[#allocation2 + $0x8] sm:$0xff] %v1473
        %1482 = vst [vmem:[#allocation2 + $0x10] sm:$0xff] %v1474
        %1483 = vst [vmem:[#allocation2 + $0x18] sm:$0xff] %v1475
        %1484 = vst [vmem:[#allocation2 + $0x20] sm:$0xff] %v1476
        %1485 = vst [vmem:[#allocation2 + $0x28] sm:$0xff] %v1477
        %1486 = vst [vmem:[#allocation2 + $0x30] sm:$0xff] %v1478
        %1487 = vst [vmem:[#allocation2 + $0x38] sm:$0xff] %v1479
        %v1488 = vmul.f32 %v489, 0.17677669
        %v1489 = vmul.f32 %v491, 0.17677669
        %v1490 = vmul.f32 %v495, 0.17677669
        %v1491 = vmul.f32 %v497, 0.17677669
        %v1492 = vmul.f32 %v501, 0.17677669
        %v1493 = vmul.f32 %v503, 0.17677669
        %v1494 = vmul.f32 %v507, 0.17677669
        %v1495 = vmul.f32 %v509, 0.17677669
        %v1496 = vpack.c.bf16 %v591, %v585
        %v1497 = vpack.c.bf16 %v593, %v587
        %v1498 = vpack.c.bf16 %v603, %v597
        %v1499 = vpack.c.bf16 %v605, %v599
        %v1500 = vpack.c.bf16 %v1490, %v1488
        %v1501 = vpack.c.bf16 %v1491, %v1489
        %v1502 = vpack.c.bf16 %v1494, %v1492
        %v1503 = vpack.c.bf16 %v1495, %v1493
        %1504 = vxpose.xlu0.c.b16.start [1/8] %v1496, 128
        %1505 = vxpose.xlu0.c.b16.cont [2/8] %v1498, 128
        %1506 = vxpose.xlu0.c.b16.cont [3/8] 0, 128
        %1507 = vxpose.xlu0.c.b16.cont [4/8] 0, 128
        %1508 = vxpose.xlu0.c.b16.cont [5/8] 0, 128
        %1509 = vxpose.xlu0.c.b16.cont [6/8] 0, 128
        %1510 = vxpose.xlu0.c.b16.cont [7/8] 0, 128
        %1511 = vxpose.xlu0.c.b16.end [8/8] 0, 128
        %v1512 = vpop.trf.xlu0
        %v1513 = vpop.trf.xlu0
        %v1514 = vpop.trf.xlu0
        %v1515 = vpop.trf.xlu0
        %v1516 = vpop.trf.xlu0
        %v1517 = vpop.trf.xlu0
        %v1518 = vpop.trf.xlu0
        %v1519 = vpop.trf.xlu0
        %1520 = vxpose.xlu0.c.b16.start [1/8] %v1497, 128
        %1521 = vxpose.xlu0.c.b16.cont [2/8] %v1499, 128
        %1522 = vxpose.xlu0.c.b16.cont [3/8] 0, 128
        %1523 = vxpose.xlu0.c.b16.cont [4/8] 0, 128
        %1524 = vxpose.xlu0.c.b16.cont [5/8] 0, 128
        %1525 = vxpose.xlu0.c.b16.cont [6/8] 0, 128
        %1526 = vxpose.xlu0.c.b16.cont [7/8] 0, 128
        %1527 = vxpose.xlu0.c.b16.end [8/8] 0, 128
        %v1528 = vpop.trf.xlu0
        %v1529 = vpop.trf.xlu0
        %v1530 = vpop.trf.xlu0
        %v1531 = vpop.trf.xlu0
        %v1532 = vpop.trf.xlu0
        %v1533 = vpop.trf.xlu0
        %v1534 = vpop.trf.xlu0
        %v1535 = vpop.trf.xlu0
        %v1537 = vsel %vm799, %v1512, 0
        %v1540 = vsel %vm799, %v1513, 0
        %v1543 = vsel %vm799, %v1514, 0
        %v1546 = vsel %vm799, %v1515, 0
        %v1549 = vsel %vm799, %v1516, 0
        %v1552 = vsel %vm799, %v1517, 0
        %v1555 = vsel %vm799, %v1518, 0
        %v1558 = vsel %vm799, %v1519, 0
        %v1561 = vsel %vm799, %v1528, 0
        %v1564 = vsel %vm799, %v1529, 0
        %v1567 = vsel %vm799, %v1530, 0
        %v1570 = vsel %vm799, %v1531, 0
        %v1573 = vsel %vm799, %v1532, 0
        %v1576 = vsel %vm799, %v1533, 0
        %v1579 = vsel %vm799, %v1534, 0
        %v1582 = vsel %vm799, %v1535, 0
        %1584 = vmatprep.subr.bf16.mxu0 %v1501
        %1585 = vmatpush1.bf16.msra.mxu0 %v1500
        %1586 = vmatprep.subr.bf16.mxu0 %v1503
        %1587 = vmatpush1.bf16.msra.mxu0 %v1502
        %1588 = vmatprep.subr.bf16.mxu0 0
        %1589 = vmatpush1.bf16.msra.mxu0 0
        %1590 = vmatprep.subr.bf16.mxu0 0
        %1591 = vmatpush1.bf16.msra.mxu0 0
        %1592 = vmatprep.subr.bf16.mxu0 0
        %1593 = vmatpush1.bf16.msra.mxu0 0
        %1594 = vmatprep.subr.bf16.mxu0 0
        %1595 = vmatpush1.bf16.msra.mxu0 0
        %1596 = vmatprep.subr.bf16.mxu0 0
        %1597 = vmatpush1.bf16.msra.mxu0 0
        %1598 = vmatprep.subr.bf16.mxu0 0
        %1599 = vmatpush1.bf16.msra.mxu0 0
        %1600 = vmatprep.subr.bf16.mxu0 0
        %1601 = vmatpush1.bf16.msra.mxu0 0
        %1602 = vmatprep.subr.bf16.mxu0 0
        %1603 = vmatpush1.bf16.msra.mxu0 0
        %1604 = vmatprep.subr.bf16.mxu0 0
        %1605 = vmatpush1.bf16.msra.mxu0 0
        %1606 = vmatprep.subr.bf16.mxu0 0
        %1607 = vmatpush1.bf16.msra.mxu0 0
        %1608 = vmatprep.subr.bf16.mxu0 0
        %1609 = vmatpush1.bf16.msra.mxu0 0
        %1610 = vmatprep.subr.bf16.mxu0 0
        %1611 = vmatpush1.bf16.msra.mxu0 0
        %1612 = vmatprep.subr.bf16.mxu0 0
        %1613 = vmatpush1.bf16.msra.mxu0 0
        %1614 = vmatprep.subr.bf16.mxu0 0
        %1615 = vmatpush1.bf16.msra.mxu0 0
        %1616 = vmatprep.mubr.bf16.mxu0 0
        %1617 = vmatmul.mubr.bf16.gmra.mrb[0].mxu0 %v1537
        %v1618 = vpop.f32.mrb[0].mxu0
        %v1619 = vadd.f32 0.0, %v1618
        %v1620 = vpop.f32.mrb[0].mxu0
        %v1621 = vadd.f32 0.0, %v1620
        %v1622 = vpop.f32.mrb[0].mxu0
        %v1623 = vadd.f32 0.0, %v1622
        %v1624 = vpop.f32.mrb[0].mxu0
        %v1625 = vadd.f32 0.0, %v1624
        %1626 = vmatprep.mubr.bf16.mxu0 0
        %1627 = vmatmul.mubr.bf16.gmra.mrb[0].mxu0 %v1540
        %v1628 = vpop.f32.mrb[0].mxu0
        %v1629 = vadd.f32 0.0, %v1628
        %v1630 = vpop.f32.mrb[0].mxu0
        %v1631 = vadd.f32 0.0, %v1630
        %v1632 = vpop.f32.mrb[0].mxu0
        %v1633 = vadd.f32 0.0, %v1632
        %v1634 = vpop.f32.mrb[0].mxu0
        %v1635 = vadd.f32 0.0, %v1634
        %1636 = vmatprep.mubr.bf16.mxu0 0
        %1637 = vmatmul.mubr.bf16.gmra.mrb[0].mxu0 %v1543
        %v1638 = vpop.f32.mrb[0].mxu0
        %v1639 = vadd.f32 0.0, %v1638
        %v1640 = vpop.f32.mrb[0].mxu0
        %v1641 = vadd.f32 0.0, %v1640
        %v1642 = vpop.f32.mrb[0].mxu0
        %v1643 = vadd.f32 0.0, %v1642
        %v1644 = vpop.f32.mrb[0].mxu0
        %v1645 = vadd.f32 0.0, %v1644
        %1646 = vmatprep.mubr.bf16.mxu0 0
        %1647 = vmatmul.mubr.bf16.gmra.mrb[0].mxu0 %v1546
        %v1648 = vpop.f32.mrb[0].mxu0
        %v1649 = vadd.f32 0.0, %v1648
        %v1650 = vpop.f32.mrb[0].mxu0
        %v1651 = vadd.f32 0.0, %v1650
        %v1652 = vpop.f32.mrb[0].mxu0
        %v1653 = vadd.f32 0.0, %v1652
        %v1654 = vpop.f32.mrb[0].mxu0
        %v1655 = vadd.f32 0.0, %v1654
        %1656 = vmatprep.mubr.bf16.mxu0 0
        %1657 = vmatmul.mubr.bf16.gmra.mrb[0].mxu0 %v1549
        %v1658 = vpop.f32.mrb[0].mxu0
        %v1659 = vadd.f32 0.0, %v1658
        %v1660 = vpop.f32.mrb[0].mxu0
        %v1661 = vadd.f32 0.0, %v1660
        %v1662 = vpop.f32.mrb[0].mxu0
        %v1663 = vadd.f32 0.0, %v1662
        %v1664 = vpop.f32.mrb[0].mxu0
        %v1665 = vadd.f32 0.0, %v1664
        %1666 = vmatprep.mubr.bf16.mxu0 0
        %1667 = vmatmul.mubr.bf16.gmra.mrb[0].mxu0 %v1552
        %v1668 = vpop.f32.mrb[0].mxu0
        %v1669 = vadd.f32 0.0, %v1668
        %v1670 = vpop.f32.mrb[0].mxu0
        %v1671 = vadd.f32 0.0, %v1670
        %v1672 = vpop.f32.mrb[0].mxu0
        %v1673 = vadd.f32 0.0, %v1672
        %v1674 = vpop.f32.mrb[0].mxu0
        %v1675 = vadd.f32 0.0, %v1674
        %1676 = vmatprep.mubr.bf16.mxu0 0
        %1677 = vmatmul.mubr.bf16.gmra.mrb[0].mxu0 %v1555
        %v1678 = vpop.f32.mrb[0].mxu0
        %v1679 = vadd.f32 0.0, %v1678
        %v1680 = vpop.f32.mrb[0].mxu0
        %v1681 = vadd.f32 0.0, %v1680
        %v1682 = vpop.f32.mrb[0].mxu0
        %v1683 = vadd.f32 0.0, %v1682
        %v1684 = vpop.f32.mrb[0].mxu0
        %v1685 = vadd.f32 0.0, %v1684
        %1686 = vmatprep.mubr.bf16.mxu0 0
        %1687 = vmatmul.mubr.bf16.gmra.mrb[0].mxu0 %v1558
        %v1688 = vpop.f32.mrb[0].mxu0
        %v1689 = vadd.f32 0.0, %v1688
        %v1690 = vpop.f32.mrb[0].mxu0
        %v1691 = vadd.f32 0.0, %v1690
        %v1692 = vpop.f32.mrb[0].mxu0
        %v1693 = vadd.f32 0.0, %v1692
        %v1694 = vpop.f32.mrb[0].mxu0
        %v1695 = vadd.f32 0.0, %v1694
        %1696 = vmatprep.mubr.bf16.mxu0 0
        %1697 = vmatmul.mubr.bf16.gmra.mrb[0].mxu0 %v1561
        %v1698 = vpop.f32.mrb[0].mxu0
        %v1699 = vadd.f32 0.0, %v1698
        %v1700 = vpop.f32.mrb[0].mxu0
        %v1701 = vadd.f32 0.0, %v1700
        %v1702 = vpop.f32.mrb[0].mxu0
        %v1703 = vadd.f32 0.0, %v1702
        %v1704 = vpop.f32.mrb[0].mxu0
        %v1705 = vadd.f32 0.0, %v1704
        %1706 = vmatprep.mubr.bf16.mxu0 0
        %1707 = vmatmul.mubr.bf16.gmra.mrb[0].mxu0 %v1564
        %v1708 = vpop.f32.mrb[0].mxu0
        %v1709 = vadd.f32 0.0, %v1708
        %v1710 = vpop.f32.mrb[0].mxu0
        %v1711 = vadd.f32 0.0, %v1710
        %v1712 = vpop.f32.mrb[0].mxu0
        %v1713 = vadd.f32 0.0, %v1712
        %v1714 = vpop.f32.mrb[0].mxu0
        %v1715 = vadd.f32 0.0, %v1714
        %1716 = vmatprep.mubr.bf16.mxu0 0
        %1717 = vmatmul.mubr.bf16.gmra.mrb[0].mxu0 %v1567
        %v1718 = vpop.f32.mrb[0].mxu0
        %v1719 = vadd.f32 0.0, %v1718
        %v1720 = vpop.f32.mrb[0].mxu0
        %v1721 = vadd.f32 0.0, %v1720
        %v1722 = vpop.f32.mrb[0].mxu0
        %v1723 = vadd.f32 0.0, %v1722
        %v1724 = vpop.f32.mrb[0].mxu0
        %v1725 = vadd.f32 0.0, %v1724
        %1726 = vmatprep.mubr.bf16.mxu0 0
        %1727 = vmatmul.mubr.bf16.gmra.mrb[0].mxu0 %v1570
        %v1728 = vpop.f32.mrb[0].mxu0
        %v1729 = vadd.f32 0.0, %v1728
        %v1730 = vpop.f32.mrb[0].mxu0
        %v1731 = vadd.f32 0.0, %v1730
        %v1732 = vpop.f32.mrb[0].mxu0
        %v1733 = vadd.f32 0.0, %v1732
        %v1734 = vpop.f32.mrb[0].mxu0
        %v1735 = vadd.f32 0.0, %v1734
        %1736 = vmatprep.mubr.bf16.mxu0 0
        %1737 = vmatmul.mubr.bf16.gmra.mrb[0].mxu0 %v1573
        %v1738 = vpop.f32.mrb[0].mxu0
        %v1739 = vadd.f32 0.0, %v1738
        %v1740 = vpop.f32.mrb[0].mxu0
        %v1741 = vadd.f32 0.0, %v1740
        %v1742 = vpop.f32.mrb[0].mxu0
        %v1743 = vadd.f32 0.0, %v1742
        %v1744 = vpop.f32.mrb[0].mxu0
        %v1745 = vadd.f32 0.0, %v1744
        %1746 = vmatprep.mubr.bf16.mxu0 0
        %1747 = vmatmul.mubr.bf16.gmra.mrb[0].mxu0 %v1576
        %v1748 = vpop.f32.mrb[0].mxu0
        %v1749 = vadd.f32 0.0, %v1748
        %v1750 = vpop.f32.mrb[0].mxu0
        %v1751 = vadd.f32 0.0, %v1750
        %v1752 = vpop.f32.mrb[0].mxu0
        %v1753 = vadd.f32 0.0, %v1752
        %v1754 = vpop.f32.mrb[0].mxu0
        %v1755 = vadd.f32 0.0, %v1754
        %1756 = vmatprep.mubr.bf16.mxu0 0
        %1757 = vmatmul.mubr.bf16.gmra.mrb[0].mxu0 %v1579
        %v1758 = vpop.f32.mrb[0].mxu0
        %v1759 = vadd.f32 0.0, %v1758
        %v1760 = vpop.f32.mrb[0].mxu0
        %v1761 = vadd.f32 0.0, %v1760
        %v1762 = vpop.f32.mrb[0].mxu0
        %v1763 = vadd.f32 0.0, %v1762
        %v1764 = vpop.f32.mrb[0].mxu0
        %v1765 = vadd.f32 0.0, %v1764
        %1766 = vmatprep.mubr.bf16.mxu0 0
        %1767 = vmatmul.mubr.bf16.gmra.mrb[0].mxu0 %v1582
        %v1768 = vpop.f32.mrb[0].mxu0
        %v1769 = vadd.f32 0.0, %v1768
        %v1770 = vpop.f32.mrb[0].mxu0
        %v1771 = vadd.f32 0.0, %v1770
        %v1772 = vpop.f32.mrb[0].mxu0
        %v1773 = vadd.f32 0.0, %v1772
        %v1774 = vpop.f32.mrb[0].mxu0
        %v1775 = vadd.f32 0.0, %v1774
        %1776 = vdwg.mxu0
        %v1777 = vmax.f32 %v1619, %v1629
        %v1778 = vmax.f32 %v1623, %v1633
        %v1779 = vmax.f32 %v1777, %v1639
        %v1780 = vmax.f32 %v1778, %v1643
        %v1781 = vmax.f32 %v1779, %v1649
        %v1782 = vmax.f32 %v1780, %v1653
        %v1783 = vmax.f32 %v1781, %v1659
        %v1784 = vmax.f32 %v1782, %v1663
        %v1785 = vmax.f32 %v1783, %v1669
        %v1786 = vmax.f32 %v1784, %v1673
        %v1787 = vmax.f32 %v1785, %v1679
        %v1788 = vmax.f32 %v1786, %v1683
        %v1789 = vmax.f32 %v1787, %v1689
        %v1790 = vmax.f32 %v1788, %v1693
        %v1791 = vmax.f32 %v1789, %v1699
        %v1792 = vmax.f32 %v1790, %v1703
        %v1793 = vmax.f32 %v1791, %v1709
        %v1794 = vmax.f32 %v1792, %v1713
        %v1795 = vmax.f32 %v1793, %v1719
        %v1796 = vmax.f32 %v1794, %v1723
        %v1797 = vmax.f32 %v1795, %v1729
        %v1798 = vmax.f32 %v1796, %v1733
        %v1799 = vmax.f32 %v1797, %v1739
        %v1800 = vmax.f32 %v1798, %v1743
        %v1801 = vmax.f32 %v1799, %v1749
        %v1802 = vmax.f32 %v1800, %v1753
        %v1803 = vmax.f32 %v1801, %v1759
        %v1804 = vmax.f32 %v1802, %v1763
        %v1805 = vmax.f32 %v1803, %v1769
        %v1806 = vmax.f32 %v1804, %v1773
        %v1807 = vmax.f32 %v1805, %v1806
        %v1808 = vrot.slane %v1807, 4
        %v1809 = vmax.f32 %v1807, %v1808
        %v1810 = vrot.slane %v1809, 2
        %v1811 = vmax.f32 %v1809, %v1810
        %v1812 = vrot.slane %v1811, 1
        %v1813 = vmax.f32 %v1811, %v1812
        %v1814 = vmax.f32 %v1621, %v1631
        %v1815 = vmax.f32 %v1625, %v1635
        %v1816 = vmax.f32 %v1814, %v1641
        %v1817 = vmax.f32 %v1815, %v1645
        %v1818 = vmax.f32 %v1816, %v1651
        %v1819 = vmax.f32 %v1817, %v1655
        %v1820 = vmax.f32 %v1818, %v1661
        %v1821 = vmax.f32 %v1819, %v1665
        %v1822 = vmax.f32 %v1820, %v1671
        %v1823 = vmax.f32 %v1821, %v1675
        %v1824 = vmax.f32 %v1822, %v1681
        %v1825 = vmax.f32 %v1823, %v1685
        %v1826 = vmax.f32 %v1824, %v1691
        %v1827 = vmax.f32 %v1825, %v1695
        %v1828 = vmax.f32 %v1826, %v1701
        %v1829 = vmax.f32 %v1827, %v1705
        %v1830 = vmax.f32 %v1828, %v1711
        %v1831 = vmax.f32 %v1829, %v1715
        %v1832 = vmax.f32 %v1830, %v1721
        %v1833 = vmax.f32 %v1831, %v1725
        %v1834 = vmax.f32 %v1832, %v1731
        %v1835 = vmax.f32 %v1833, %v1735
        %v1836 = vmax.f32 %v1834, %v1741
        %v1837 = vmax.f32 %v1835, %v1745
        %v1838 = vmax.f32 %v1836, %v1751
        %v1839 = vmax.f32 %v1837, %v1755
        %v1840 = vmax.f32 %v1838, %v1761
        %v1841 = vmax.f32 %v1839, %v1765
        %v1842 = vmax.f32 %v1840, %v1771
        %v1843 = vmax.f32 %v1841, %v1775
        %v1844 = vmax.f32 %v1842, %v1843
        %v1845 = vrot.slane %v1844, 4
        %v1846 = vmax.f32 %v1844, %v1845
        %v1847 = vrot.slane %v1846, 2
        %v1848 = vmax.f32 %v1846, %v1847
        %v1849 = vrot.slane %v1848, 1
        %v1850 = vmax.f32 %v1848, %v1849
        %v1851 = vsub.f32 %v1619, %v1813
        %v1852 = vsub.f32 %v1621, %v1850
        %v1853 = vsub.f32 %v1623, %v1813
        %v1854 = vsub.f32 %v1625, %v1850
        %v1855 = vsub.f32 %v1629, %v1813
        %v1856 = vsub.f32 %v1631, %v1850
        %v1857 = vsub.f32 %v1633, %v1813
        %v1858 = vsub.f32 %v1635, %v1850
        %v1859 = vsub.f32 %v1639, %v1813
        %v1860 = vsub.f32 %v1641, %v1850
        %v1861 = vsub.f32 %v1643, %v1813
        %v1862 = vsub.f32 %v1645, %v1850
        %v1863 = vsub.f32 %v1649, %v1813
        %v1864 = vsub.f32 %v1651, %v1850
        %v1865 = vsub.f32 %v1653, %v1813
        %v1866 = vsub.f32 %v1655, %v1850
        %v1867 = vsub.f32 %v1659, %v1813
        %v1868 = vsub.f32 %v1661, %v1850
        %v1869 = vsub.f32 %v1663, %v1813
        %v1870 = vsub.f32 %v1665, %v1850
        %v1871 = vsub.f32 %v1669, %v1813
        %v1872 = vsub.f32 %v1671, %v1850
        %v1873 = vsub.f32 %v1673, %v1813
        %v1874 = vsub.f32 %v1675, %v1850
        %v1875 = vsub.f32 %v1679, %v1813
        %v1876 = vsub.f32 %v1681, %v1850
        %v1877 = vsub.f32 %v1683, %v1813
        %v1878 = vsub.f32 %v1685, %v1850
        %v1879 = vsub.f32 %v1689, %v1813
        %v1880 = vsub.f32 %v1691, %v1850
        %v1881 = vsub.f32 %v1693, %v1813
        %v1882 = vsub.f32 %v1695, %v1850
        %v1883 = vsub.f32 %v1699, %v1813
        %v1884 = vsub.f32 %v1701, %v1850
        %v1885 = vsub.f32 %v1703, %v1813
        %v1886 = vsub.f32 %v1705, %v1850
        %v1887 = vsub.f32 %v1709, %v1813
        %v1888 = vsub.f32 %v1711, %v1850
        %v1889 = vsub.f32 %v1713, %v1813
        %v1890 = vsub.f32 %v1715, %v1850
        %v1891 = vsub.f32 %v1719, %v1813
        %v1892 = vsub.f32 %v1721, %v1850
        %v1893 = vsub.f32 %v1723, %v1813
        %v1894 = vsub.f32 %v1725, %v1850
        %v1895 = vsub.f32 %v1729, %v1813
        %v1896 = vsub.f32 %v1731, %v1850
        %v1897 = vsub.f32 %v1733, %v1813
        %v1898 = vsub.f32 %v1735, %v1850
        %v1899 = vsub.f32 %v1739, %v1813
        %v1900 = vsub.f32 %v1741, %v1850
        %v1901 = vsub.f32 %v1743, %v1813
        %v1902 = vsub.f32 %v1745, %v1850
        %v1903 = vsub.f32 %v1749, %v1813
        %v1904 = vsub.f32 %v1751, %v1850
        %v1905 = vsub.f32 %v1753, %v1813
        %v1906 = vsub.f32 %v1755, %v1850
        %v1907 = vsub.f32 %v1759, %v1813
        %v1908 = vsub.f32 %v1761, %v1850
        %v1909 = vsub.f32 %v1763, %v1813
        %v1910 = vsub.f32 %v1765, %v1850
        %v1911 = vsub.f32 %v1769, %v1813
        %v1912 = vsub.f32 %v1771, %v1850
        %v1913 = vsub.f32 %v1773, %v1813
        %v1914 = vsub.f32 %v1775, %v1850
        %v1915 = vmul.f32 %v1851, 1.442695
        %v1916 = vpow.pop %v1915
        %v1917 = vmul.f32 %v1852, 1.442695
        %v1918 = vpow.pop %v1917
        %v1919 = vmul.f32 %v1853, 1.442695
        %v1920 = vpow.pop %v1919
        %v1921 = vmul.f32 %v1854, 1.442695
        %v1922 = vpow.pop %v1921
        %v1923 = vmul.f32 %v1855, 1.442695
        %v1924 = vpow.pop %v1923
        %v1925 = vmul.f32 %v1856, 1.442695
        %v1926 = vpow.pop %v1925
        %v1927 = vmul.f32 %v1857, 1.442695
        %v1928 = vpow.pop %v1927
        %v1929 = vmul.f32 %v1858, 1.442695
        %v1930 = vpow.pop %v1929
        %v1931 = vmul.f32 %v1859, 1.442695
        %v1932 = vpow.pop %v1931
        %v1933 = vmul.f32 %v1860, 1.442695
        %v1934 = vpow.pop %v1933
        %v1935 = vmul.f32 %v1861, 1.442695
        %v1936 = vpow.pop %v1935
        %v1937 = vmul.f32 %v1862, 1.442695
        %v1938 = vpow.pop %v1937
        %v1939 = vmul.f32 %v1863, 1.442695
        %v1940 = vpow.pop %v1939
        %v1941 = vmul.f32 %v1864, 1.442695
        %v1942 = vpow.pop %v1941
        %v1943 = vmul.f32 %v1865, 1.442695
        %v1944 = vpow.pop %v1943
        %v1945 = vmul.f32 %v1866, 1.442695
        %v1946 = vpow.pop %v1945
        %v1947 = vmul.f32 %v1867, 1.442695
        %v1948 = vpow.pop %v1947
        %v1949 = vmul.f32 %v1868, 1.442695
        %v1950 = vpow.pop %v1949
        %v1951 = vmul.f32 %v1869, 1.442695
        %v1952 = vpow.pop %v1951
        %v1953 = vmul.f32 %v1870, 1.442695
        %v1954 = vpow.pop %v1953
        %v1955 = vmul.f32 %v1871, 1.442695
        %v1956 = vpow.pop %v1955
        %v1957 = vmul.f32 %v1872, 1.442695
        %v1958 = vpow.pop %v1957
        %v1959 = vmul.f32 %v1873, 1.442695
        %v1960 = vpow.pop %v1959
        %v1961 = vmul.f32 %v1874, 1.442695
        %v1962 = vpow.pop %v1961
        %v1963 = vmul.f32 %v1875, 1.442695
        %v1964 = vpow.pop %v1963
        %v1965 = vmul.f32 %v1876, 1.442695
        %v1966 = vpow.pop %v1965
        %v1967 = vmul.f32 %v1877, 1.442695
        %v1968 = vpow.pop %v1967
        %v1969 = vmul.f32 %v1878, 1.442695
        %v1970 = vpow.pop %v1969
        %v1971 = vmul.f32 %v1879, 1.442695
        %v1972 = vpow.pop %v1971
        %v1973 = vmul.f32 %v1880, 1.442695
        %v1974 = vpow.pop %v1973
        %v1975 = vmul.f32 %v1881, 1.442695
        %v1976 = vpow.pop %v1975
        %v1977 = vmul.f32 %v1882, 1.442695
        %v1978 = vpow.pop %v1977
        %v1979 = vmul.f32 %v1883, 1.442695
        %v1980 = vpow.pop %v1979
        %v1981 = vmul.f32 %v1884, 1.442695
        %v1982 = vpow.pop %v1981
        %v1983 = vmul.f32 %v1885, 1.442695
        %v1984 = vpow.pop %v1983
        %v1985 = vmul.f32 %v1886, 1.442695
        %v1986 = vpow.pop %v1985
        %v1987 = vmul.f32 %v1887, 1.442695
        %v1988 = vpow.pop %v1987
        %v1989 = vmul.f32 %v1888, 1.442695
        %v1990 = vpow.pop %v1989
        %v1991 = vmul.f32 %v1889, 1.442695
        %v1992 = vpow.pop %v1991
        %v1993 = vmul.f32 %v1890, 1.442695
        %v1994 = vpow.pop %v1993
        %v1995 = vmul.f32 %v1891, 1.442695
        %v1996 = vpow.pop %v1995
        %v1997 = vmul.f32 %v1892, 1.442695
        %v1998 = vpow.pop %v1997
        %v1999 = vmul.f32 %v1893, 1.442695
        %v2000 = vpow.pop %v1999
        %v2001 = vmul.f32 %v1894, 1.442695
        %v2002 = vpow.pop %v2001
        %v2003 = vmul.f32 %v1895, 1.442695
        %v2004 = vpow.pop %v2003
        %v2005 = vmul.f32 %v1896, 1.442695
        %v2006 = vpow.pop %v2005
        %v2007 = vmul.f32 %v1897, 1.442695
        %v2008 = vpow.pop %v2007
        %v2009 = vmul.f32 %v1898, 1.442695
        %v2010 = vpow.pop %v2009
        %v2011 = vmul.f32 %v1899, 1.442695
        %v2012 = vpow.pop %v2011
        %v2013 = vmul.f32 %v1900, 1.442695
        %v2014 = vpow.pop %v2013
        %v2015 = vmul.f32 %v1901, 1.442695
        %v2016 = vpow.pop %v2015
        %v2017 = vmul.f32 %v1902, 1.442695
        %v2018 = vpow.pop %v2017
        %v2019 = vmul.f32 %v1903, 1.442695
        %v2020 = vpow.pop %v2019
        %v2021 = vmul.f32 %v1904, 1.442695
        %v2022 = vpow.pop %v2021
        %v2023 = vmul.f32 %v1905, 1.442695
        %v2024 = vpow.pop %v2023
        %v2025 = vmul.f32 %v1906, 1.442695
        %v2026 = vpow.pop %v2025
        %v2027 = vmul.f32 %v1907, 1.442695
        %v2028 = vpow.pop %v2027
        %v2029 = vmul.f32 %v1908, 1.442695
        %v2030 = vpow.pop %v2029
        %v2031 = vmul.f32 %v1909, 1.442695
        %v2032 = vpow.pop %v2031
        %v2033 = vmul.f32 %v1910, 1.442695
        %v2034 = vpow.pop %v2033
        %v2035 = vmul.f32 %v1911, 1.442695
        %v2036 = vpow.pop %v2035
        %v2037 = vmul.f32 %v1912, 1.442695
        %v2038 = vpow.pop %v2037
        %v2039 = vmul.f32 %v1913, 1.442695
        %v2040 = vpow.pop %v2039
        %v2041 = vmul.f32 %v1914, 1.442695
        %v2042 = vpow.pop %v2041
        %v2043 = vadd.f32 %v1916, %v1920
        %v2044 = vadd.f32 %v2043, %v1924
        %v2045 = vadd.f32 %v2044, %v1928
        %v2046 = vadd.f32 %v2045, %v1932
        %v2047 = vadd.f32 %v2046, %v1936
        %v2048 = vadd.f32 %v2047, %v1940
        %v2049 = vadd.f32 %v2048, %v1944
        %v2050 = vadd.f32 %v2049, %v1948
        %v2051 = vadd.f32 %v2050, %v1952
        %v2052 = vadd.f32 %v2051, %v1956
        %v2053 = vadd.f32 %v2052, %v1960
        %v2054 = vadd.f32 %v2053, %v1964
        %v2055 = vadd.f32 %v2054, %v1968
        %v2056 = vadd.f32 %v2055, %v1972
        %v2057 = vadd.f32 %v2056, %v1976
        %v2058 = vadd.f32 %v2057, %v1980
        %v2059 = vadd.f32 %v2058, %v1984
        %v2060 = vadd.f32 %v2059, %v1988
        %v2061 = vadd.f32 %v2060, %v1992
        %v2062 = vadd.f32 %v2061, %v1996
        %v2063 = vadd.f32 %v2062, %v2000
        %v2064 = vadd.f32 %v2063, %v2004
        %v2065 = vadd.f32 %v2064, %v2008
        %v2066 = vadd.f32 %v2065, %v2012
        %v2067 = vadd.f32 %v2066, %v2016
        %v2068 = vadd.f32 %v2067, %v2020
        %v2069 = vadd.f32 %v2068, %v2024
        %v2070 = vadd.f32 %v2069, %v2028
        %v2071 = vadd.f32 %v2070, %v2032
        %v2072 = vadd.f32 %v2071, %v2036
        %v2073 = vadd.f32 %v2072, %v2040
        %v2074 = vrot.slane %v2073, 4
        %v2075 = vadd.f32 %v2073, %v2074
        %v2076 = vrot.slane %v2075, 2
        %v2077 = vadd.f32 %v2075, %v2076
        %v2078 = vrot.slane %v2077, 1
        %v2079 = vadd.f32 %v2077, %v2078
        %v2080 = vadd.f32 %v1918, %v1922
        %v2081 = vadd.f32 %v2080, %v1926
        %v2082 = vadd.f32 %v2081, %v1930
        %v2083 = vadd.f32 %v2082, %v1934
        %v2084 = vadd.f32 %v2083, %v1938
        %v2085 = vadd.f32 %v2084, %v1942
        %v2086 = vadd.f32 %v2085, %v1946
        %v2087 = vadd.f32 %v2086, %v1950
        %v2088 = vadd.f32 %v2087, %v1954
        %v2089 = vadd.f32 %v2088, %v1958
        %v2090 = vadd.f32 %v2089, %v1962
        %v2091 = vadd.f32 %v2090, %v1966
        %v2092 = vadd.f32 %v2091, %v1970
        %v2093 = vadd.f32 %v2092, %v1974
        %v2094 = vadd.f32 %v2093, %v1978
        %v2095 = vadd.f32 %v2094, %v1982
        %v2096 = vadd.f32 %v2095, %v1986
        %v2097 = vadd.f32 %v2096, %v1990
        %v2098 = vadd.f32 %v2097, %v1994
        %v2099 = vadd.f32 %v2098, %v1998
        %v2100 = vadd.f32 %v2099, %v2002
        %v2101 = vadd.f32 %v2100, %v2006
        %v2102 = vadd.f32 %v2101, %v2010
        %v2103 = vadd.f32 %v2102, %v2014
        %v2104 = vadd.f32 %v2103, %v2018
        %v2105 = vadd.f32 %v2104, %v2022
        %v2106 = vadd.f32 %v2105, %v2026
        %v2107 = vadd.f32 %v2106, %v2030
        %v2108 = vadd.f32 %v2107, %v2034
        %v2109 = vadd.f32 %v2108, %v2038
        %v2110 = vadd.f32 %v2109, %v2042
        %v2111 = vrot.slane %v2110, 4
        %v2112 = vadd.f32 %v2110, %v2111
        %v2113 = vrot.slane %v2112, 2
        %v2114 = vadd.f32 %v2112, %v2113
        %v2115 = vrot.slane %v2114, 1
        %v2116 = vadd.f32 %v2114, %v2115
        %v2117 = vrcp.pop %v2079
        %v2118 = vrcp.pop %v2116
        %v2119 = vpack.c.bf16 %v687, %v681
        %v2120 = vpack.c.bf16 %v689, %v683
        %v2121 = vpack.c.bf16 %v699, %v693
        %v2122 = vpack.c.bf16 %v701, %v695
        %v2123 = vpack.c.bf16 %v1920, %v1916
        %v2124 = vpack.c.bf16 %v1922, %v1918
        %v2125 = vpack.c.bf16 %v1928, %v1924
        %v2126 = vpack.c.bf16 %v1930, %v1926
        %v2127 = vpack.c.bf16 %v1936, %v1932
        %v2128 = vpack.c.bf16 %v1938, %v1934
        %v2129 = vpack.c.bf16 %v1944, %v1940
        %v2130 = vpack.c.bf16 %v1946, %v1942
        %v2131 = vpack.c.bf16 %v1952, %v1948
        %v2132 = vpack.c.bf16 %v1954, %v1950
        %v2133 = vpack.c.bf16 %v1960, %v1956
        %v2134 = vpack.c.bf16 %v1962, %v1958
        %v2135 = vpack.c.bf16 %v1968, %v1964
        %v2136 = vpack.c.bf16 %v1970, %v1966
        %v2137 = vpack.c.bf16 %v1976, %v1972
        %v2138 = vpack.c.bf16 %v1978, %v1974
        %v2139 = vpack.c.bf16 %v1984, %v1980
        %v2140 = vpack.c.bf16 %v1986, %v1982
        %v2141 = vpack.c.bf16 %v1992, %v1988
        %v2142 = vpack.c.bf16 %v1994, %v1990
        %v2143 = vpack.c.bf16 %v2000, %v1996
        %v2144 = vpack.c.bf16 %v2002, %v1998
        %v2145 = vpack.c.bf16 %v2008, %v2004
        %v2146 = vpack.c.bf16 %v2010, %v2006
        %v2147 = vpack.c.bf16 %v2016, %v2012
        %v2148 = vpack.c.bf16 %v2018, %v2014
        %v2149 = vpack.c.bf16 %v2024, %v2020
        %v2150 = vpack.c.bf16 %v2026, %v2022
        %v2151 = vpack.c.bf16 %v2032, %v2028
        %v2152 = vpack.c.bf16 %v2034, %v2030
        %v2153 = vpack.c.bf16 %v2040, %v2036
        %v2154 = vpack.c.bf16 %v2042, %v2038
        %2155 = vmatprep.subr.bf16.mxu0 %v2124
        %2156 = vmatpush1.bf16.msra.mxu0 %v2123
        %2157 = vmatprep.subr.bf16.mxu0 %v2126
        %2158 = vmatpush1.bf16.msra.mxu0 %v2125
        %2159 = vmatprep.subr.bf16.mxu0 %v2128
        %2160 = vmatpush1.bf16.msra.mxu0 %v2127
        %2161 = vmatprep.subr.bf16.mxu0 %v2130
        %2162 = vmatpush1.bf16.msra.mxu0 %v2129
        %2163 = vmatprep.subr.bf16.mxu0 %v2132
        %2164 = vmatpush1.bf16.msra.mxu0 %v2131
        %2165 = vmatprep.subr.bf16.mxu0 %v2134
        %2166 = vmatpush1.bf16.msra.mxu0 %v2133
        %2167 = vmatprep.subr.bf16.mxu0 %v2136
        %2168 = vmatpush1.bf16.msra.mxu0 %v2135
        %2169 = vmatprep.subr.bf16.mxu0 %v2138
        %2170 = vmatpush1.bf16.msra.mxu0 %v2137
        %2171 = vmatprep.subr.bf16.mxu0 %v2140
        %2172 = vmatpush1.bf16.msra.mxu0 %v2139
        %2173 = vmatprep.subr.bf16.mxu0 %v2142
        %2174 = vmatpush1.bf16.msra.mxu0 %v2141
        %2175 = vmatprep.subr.bf16.mxu0 %v2144
        %2176 = vmatpush1.bf16.msra.mxu0 %v2143
        %2177 = vmatprep.subr.bf16.mxu0 %v2146
        %2178 = vmatpush1.bf16.msra.mxu0 %v2145
        %2179 = vmatprep.subr.bf16.mxu0 %v2148
        %2180 = vmatpush1.bf16.msra.mxu0 %v2147
        %2181 = vmatprep.subr.bf16.mxu0 %v2150
        %2182 = vmatpush1.bf16.msra.mxu0 %v2149
        %2183 = vmatprep.subr.bf16.mxu0 %v2152
        %2184 = vmatpush1.bf16.msra.mxu0 %v2151
        %2185 = vmatprep.subr.bf16.mxu0 %v2154
        %2186 = vmatpush1.bf16.msra.mxu0 %v2153
        %2187 = vmatprep.mubr.bf16.mxu0 %v2120
        %2188 = vmatmul.mubr.bf16.gmra.mrb[0].mxu0 %v2119
        %v2189 = vpop.f32.mrb[0].mxu0
        %v2190 = vadd.f32 0.0, %v2189
        %v2191 = vpop.f32.mrb[0].mxu0
        %v2192 = vadd.f32 0.0, %v2191
        %v2193 = vpop.f32.mrb[0].mxu0
        %v2194 = vadd.f32 0.0, %v2193
        %v2195 = vpop.f32.mrb[0].mxu0
        %v2196 = vadd.f32 0.0, %v2195
        %2197 = vmatprep.mubr.bf16.mxu0 %v2122
        %2198 = vmatmul.mubr.bf16.gmra.mrb[0].mxu0 %v2121
        %v2199 = vpop.f32.mrb[0].mxu0
        %v2200 = vadd.f32 0.0, %v2199
        %v2201 = vpop.f32.mrb[0].mxu0
        %v2202 = vadd.f32 0.0, %v2201
        %v2203 = vpop.f32.mrb[0].mxu0
        %v2204 = vadd.f32 0.0, %v2203
        %v2205 = vpop.f32.mrb[0].mxu0
        %v2206 = vadd.f32 0.0, %v2205
        %2207 = vdwg.mxu0
        %v2208 = vmul.f32 %v2190, %v2117
        %v2209 = vmul.f32 %v2192, %v2118
        %v2210 = vmul.f32 %v2194, %v2117
        %v2211 = vmul.f32 %v2196, %v2118
        %v2212 = vmul.f32 %v2200, %v2117
        %v2213 = vmul.f32 %v2202, %v2118
        %v2214 = vmul.f32 %v2204, %v2117
        %v2215 = vmul.f32 %v2206, %v2118
        %2216 = vst [vmem:[#allocation2 + $0x40] sm:$0xff] %v2208
        %2217 = vst [vmem:[#allocation2 + $0x48] sm:$0xff] %v2209
        %2218 = vst [vmem:[#allocation2 + $0x50] sm:$0xff] %v2210
        %2219 = vst [vmem:[#allocation2 + $0x58] sm:$0xff] %v2211
        %2220 = vst [vmem:[#allocation2 + $0x60] sm:$0xff] %v2212
        %2221 = vst [vmem:[#allocation2 + $0x68] sm:$0xff] %v2213
        %2222 = vst [vmem:[#allocation2 + $0x70] sm:$0xff] %v2214
        %2223 = vst [vmem:[#allocation2 + $0x78] sm:$0xff] %v2215
        %v2224 = vmul.f32 %v513, 0.17677669
        %v2225 = vmul.f32 %v515, 0.17677669
        %v2226 = vmul.f32 %v519, 0.17677669
        %v2227 = vmul.f32 %v521, 0.17677669
        %v2228 = vmul.f32 %v525, 0.17677669
        %v2229 = vmul.f32 %v527, 0.17677669
        %v2230 = vmul.f32 %v531, 0.17677669
        %v2231 = vmul.f32 %v533, 0.17677669
        %v2232 = vpack.c.bf16 %v615, %v609
        %v2233 = vpack.c.bf16 %v617, %v611
        %v2234 = vpack.c.bf16 %v627, %v621
        %v2235 = vpack.c.bf16 %v629, %v623
        %v2236 = vpack.c.bf16 %v2226, %v2224
        %v2237 = vpack.c.bf16 %v2227, %v2225
        %v2238 = vpack.c.bf16 %v2230, %v2228
        %v2239 = vpack.c.bf16 %v2231, %v2229
        %2240 = vxpose.xlu0.c.b16.start [1/8] %v2232, 128
        %2241 = vxpose.xlu0.c.b16.cont [2/8] %v2234, 128
        %2242 = vxpose.xlu0.c.b16.cont [3/8] 0, 128
        %2243 = vxpose.xlu0.c.b16.cont [4/8] 0, 128
        %2244 = vxpose.xlu0.c.b16.cont [5/8] 0, 128
        %2245 = vxpose.xlu0.c.b16.cont [6/8] 0, 128
        %2246 = vxpose.xlu0.c.b16.cont [7/8] 0, 128
        %2247 = vxpose.xlu0.c.b16.end [8/8] 0, 128
        %v2248 = vpop.trf.xlu0
        %v2249 = vpop.trf.xlu0
        %v2250 = vpop.trf.xlu0
        %v2251 = vpop.trf.xlu0
        %v2252 = vpop.trf.xlu0
        %v2253 = vpop.trf.xlu0
        %v2254 = vpop.trf.xlu0
        %v2255 = vpop.trf.xlu0
        %2256 = vxpose.xlu0.c.b16.start [1/8] %v2233, 128
        %2257 = vxpose.xlu0.c.b16.cont [2/8] %v2235, 128
        %2258 = vxpose.xlu0.c.b16.cont [3/8] 0, 128
        %2259 = vxpose.xlu0.c.b16.cont [4/8] 0, 128
        %2260 = vxpose.xlu0.c.b16.cont [5/8] 0, 128
        %2261 = vxpose.xlu0.c.b16.cont [6/8] 0, 128
        %2262 = vxpose.xlu0.c.b16.cont [7/8] 0, 128
        %2263 = vxpose.xlu0.c.b16.end [8/8] 0, 128
        %v2264 = vpop.trf.xlu0
        %v2265 = vpop.trf.xlu0
        %v2266 = vpop.trf.xlu0
        %v2267 = vpop.trf.xlu0
        %v2268 = vpop.trf.xlu0
        %v2269 = vpop.trf.xlu0
        %v2270 = vpop.trf.xlu0
        %v2271 = vpop.trf.xlu0
        %v2273 = vsel %vm799, %v2248, 0
        %v2276 = vsel %vm799, %v2249, 0
        %v2279 = vsel %vm799, %v2250, 0
        %v2282 = vsel %vm799, %v2251, 0
        %v2285 = vsel %vm799, %v2252, 0
        %v2288 = vsel %vm799, %v2253, 0
        %v2291 = vsel %vm799, %v2254, 0
        %v2294 = vsel %vm799, %v2255, 0
        %v2297 = vsel %vm799, %v2264, 0
        %v2300 = vsel %vm799, %v2265, 0
        %v2303 = vsel %vm799, %v2266, 0
        %v2306 = vsel %vm799, %v2267, 0
        %v2309 = vsel %vm799, %v2268, 0
        %v2312 = vsel %vm799, %v2269, 0
        %v2315 = vsel %vm799, %v2270, 0
        %v2318 = vsel %vm799, %v2271, 0
        %2320 = vmatprep.subr.bf16.mxu0 %v2237
        %2321 = vmatpush1.bf16.msra.mxu0 %v2236
        %2322 = vmatprep.subr.bf16.mxu0 %v2239
        %2323 = vmatpush1.bf16.msra.mxu0 %v2238
        %2324 = vmatprep.subr.bf16.mxu0 0
        %2325 = vmatpush1.bf16.msra.mxu0 0
        %2326 = vmatprep.subr.bf16.mxu0 0
        %2327 = vmatpush1.bf16.msra.mxu0 0
        %2328 = vmatprep.subr.bf16.mxu0 0
        %2329 = vmatpush1.bf16.msra.mxu0 0
        %2330 = vmatprep.subr.bf16.mxu0 0
        %2331 = vmatpush1.bf16.msra.mxu0 0
        %2332 = vmatprep.subr.bf16.mxu0 0
        %2333 = vmatpush1.bf16.msra.mxu0 0
        %2334 = vmatprep.subr.bf16.mxu0 0
        %2335 = vmatpush1.bf16.msra.mxu0 0
        %2336 = vmatprep.subr.bf16.mxu0 0
        %2337 = vmatpush1.bf16.msra.mxu0 0
        %2338 = vmatprep.subr.bf16.mxu0 0
        %2339 = vmatpush1.bf16.msra.mxu0 0
        %2340 = vmatprep.subr.bf16.mxu0 0
        %2341 = vmatpush1.bf16.msra.mxu0 0
        %2342 = vmatprep.subr.bf16.mxu0 0
        %2343 = vmatpush1.bf16.msra.mxu0 0
        %2344 = vmatprep.subr.bf16.mxu0 0
        %2345 = vmatpush1.bf16.msra.mxu0 0
        %2346 = vmatprep.subr.bf16.mxu0 0
        %2347 = vmatpush1.bf16.msra.mxu0 0
        %2348 = vmatprep.subr.bf16.mxu0 0
        %2349 = vmatpush1.bf16.msra.mxu0 0
        %2350 = vmatprep.subr.bf16.mxu0 0
        %2351 = vmatpush1.bf16.msra.mxu0 0
        %2352 = vmatprep.mubr.bf16.mxu0 0
        %2353 = vmatmul.mubr.bf16.gmra.mrb[0].mxu0 %v2273
        %v2354 = vpop.f32.mrb[0].mxu0
        %v2355 = vadd.f32 0.0, %v2354
        %v2356 = vpop.f32.mrb[0].mxu0
        %v2357 = vadd.f32 0.0, %v2356
        %v2358 = vpop.f32.mrb[0].mxu0
        %v2359 = vadd.f32 0.0, %v2358
        %v2360 = vpop.f32.mrb[0].mxu0
        %v2361 = vadd.f32 0.0, %v2360
        %2362 = vmatprep.mubr.bf16.mxu0 0
        %2363 = vmatmul.mubr.bf16.gmra.mrb[0].mxu0 %v2276
        %v2364 = vpop.f32.mrb[0].mxu0
        %v2365 = vadd.f32 0.0, %v2364
        %v2366 = vpop.f32.mrb[0].mxu0
        %v2367 = vadd.f32 0.0, %v2366
        %v2368 = vpop.f32.mrb[0].mxu0
        %v2369 = vadd.f32 0.0, %v2368
        %v2370 = vpop.f32.mrb[0].mxu0
        %v2371 = vadd.f32 0.0, %v2370
        %2372 = vmatprep.mubr.bf16.mxu0 0
        %2373 = vmatmul.mubr.bf16.gmra.mrb[0].mxu0 %v2279
        %v2374 = vpop.f32.mrb[0].mxu0
        %v2375 = vadd.f32 0.0, %v2374
        %v2376 = vpop.f32.mrb[0].mxu0
        %v2377 = vadd.f32 0.0, %v2376
        %v2378 = vpop.f32.mrb[0].mxu0
        %v2379 = vadd.f32 0.0, %v2378
        %v2380 = vpop.f32.mrb[0].mxu0
        %v2381 = vadd.f32 0.0, %v2380
        %2382 = vmatprep.mubr.bf16.mxu0 0
        %2383 = vmatmul.mubr.bf16.gmra.mrb[0].mxu0 %v2282
        %v2384 = vpop.f32.mrb[0].mxu0
        %v2385 = vadd.f32 0.0, %v2384
        %v2386 = vpop.f32.mrb[0].mxu0
        %v2387 = vadd.f32 0.0, %v2386
        %v2388 = vpop.f32.mrb[0].mxu0
        %v2389 = vadd.f32 0.0, %v2388
        %v2390 = vpop.f32.mrb[0].mxu0
        %v2391 = vadd.f32 0.0, %v2390
        %2392 = vmatprep.mubr.bf16.mxu0 0
        %2393 = vmatmul.mubr.bf16.gmra.mrb[0].mxu0 %v2285
        %v2394 = vpop.f32.mrb[0].mxu0
        %v2395 = vadd.f32 0.0, %v2394
        %v2396 = vpop.f32.mrb[0].mxu0
        %v2397 = vadd.f32 0.0, %v2396
        %v2398 = vpop.f32.mrb[0].mxu0
        %v2399 = vadd.f32 0.0, %v2398
        %v2400 = vpop.f32.mrb[0].mxu0
        %v2401 = vadd.f32 0.0, %v2400
        %2402 = vmatprep.mubr.bf16.mxu0 0
        %2403 = vmatmul.mubr.bf16.gmra.mrb[0].mxu0 %v2288
        %v2404 = vpop.f32.mrb[0].mxu0
        %v2405 = vadd.f32 0.0, %v2404
        %v2406 = vpop.f32.mrb[0].mxu0
        %v2407 = vadd.f32 0.0, %v2406
        %v2408 = vpop.f32.mrb[0].mxu0
        %v2409 = vadd.f32 0.0, %v2408
        %v2410 = vpop.f32.mrb[0].mxu0
        %v2411 = vadd.f32 0.0, %v2410
        %2412 = vmatprep.mubr.bf16.mxu0 0
        %2413 = vmatmul.mubr.bf16.gmra.mrb[0].mxu0 %v2291
        %v2414 = vpop.f32.mrb[0].mxu0
        %v2415 = vadd.f32 0.0, %v2414
        %v2416 = vpop.f32.mrb[0].mxu0
        %v2417 = vadd.f32 0.0, %v2416
        %v2418 = vpop.f32.mrb[0].mxu0
        %v2419 = vadd.f32 0.0, %v2418
        %v2420 = vpop.f32.mrb[0].mxu0
        %v2421 = vadd.f32 0.0, %v2420
        %2422 = vmatprep.mubr.bf16.mxu0 0
        %2423 = vmatmul.mubr.bf16.gmra.mrb[0].mxu0 %v2294
        %v2424 = vpop.f32.mrb[0].mxu0
        %v2425 = vadd.f32 0.0, %v2424
        %v2426 = vpop.f32.mrb[0].mxu0
        %v2427 = vadd.f32 0.0, %v2426
        %v2428 = vpop.f32.mrb[0].mxu0
        %v2429 = vadd.f32 0.0, %v2428
        %v2430 = vpop.f32.mrb[0].mxu0
        %v2431 = vadd.f32 0.0, %v2430
        %2432 = vmatprep.mubr.bf16.mxu0 0
        %2433 = vmatmul.mubr.bf16.gmra.mrb[0].mxu0 %v2297
        %v2434 = vpop.f32.mrb[0].mxu0
        %v2435 = vadd.f32 0.0, %v2434
        %v2436 = vpop.f32.mrb[0].mxu0
        %v2437 = vadd.f32 0.0, %v2436
        %v2438 = vpop.f32.mrb[0].mxu0
        %v2439 = vadd.f32 0.0, %v2438
        %v2440 = vpop.f32.mrb[0].mxu0
        %v2441 = vadd.f32 0.0, %v2440
        %2442 = vmatprep.mubr.bf16.mxu0 0
        %2443 = vmatmul.mubr.bf16.gmra.mrb[0].mxu0 %v2300
        %v2444 = vpop.f32.mrb[0].mxu0
        %v2445 = vadd.f32 0.0, %v2444
        %v2446 = vpop.f32.mrb[0].mxu0
        %v2447 = vadd.f32 0.0, %v2446
        %v2448 = vpop.f32.mrb[0].mxu0
        %v2449 = vadd.f32 0.0, %v2448
        %v2450 = vpop.f32.mrb[0].mxu0
        %v2451 = vadd.f32 0.0, %v2450
        %2452 = vmatprep.mubr.bf16.mxu0 0
        %2453 = vmatmul.mubr.bf16.gmra.mrb[0].mxu0 %v2303
        %v2454 = vpop.f32.mrb[0].mxu0
        %v2455 = vadd.f32 0.0, %v2454
        %v2456 = vpop.f32.mrb[0].mxu0
        %v2457 = vadd.f32 0.0, %v2456
        %v2458 = vpop.f32.mrb[0].mxu0
        %v2459 = vadd.f32 0.0, %v2458
        %v2460 = vpop.f32.mrb[0].mxu0
        %v2461 = vadd.f32 0.0, %v2460
        %2462 = vmatprep.mubr.bf16.mxu0 0
        %2463 = vmatmul.mubr.bf16.gmra.mrb[0].mxu0 %v2306
        %v2464 = vpop.f32.mrb[0].mxu0
        %v2465 = vadd.f32 0.0, %v2464
        %v2466 = vpop.f32.mrb[0].mxu0
        %v2467 = vadd.f32 0.0, %v2466
        %v2468 = vpop.f32.mrb[0].mxu0
        %v2469 = vadd.f32 0.0, %v2468
        %v2470 = vpop.f32.mrb[0].mxu0
        %v2471 = vadd.f32 0.0, %v2470
        %2472 = vmatprep.mubr.bf16.mxu0 0
        %2473 = vmatmul.mubr.bf16.gmra.mrb[0].mxu0 %v2309
        %v2474 = vpop.f32.mrb[0].mxu0
        %v2475 = vadd.f32 0.0, %v2474
        %v2476 = vpop.f32.mrb[0].mxu0
        %v2477 = vadd.f32 0.0, %v2476
        %v2478 = vpop.f32.mrb[0].mxu0
        %v2479 = vadd.f32 0.0, %v2478
        %v2480 = vpop.f32.mrb[0].mxu0
        %v2481 = vadd.f32 0.0, %v2480
        %2482 = vmatprep.mubr.bf16.mxu0 0
        %2483 = vmatmul.mubr.bf16.gmra.mrb[0].mxu0 %v2312
        %v2484 = vpop.f32.mrb[0].mxu0
        %v2485 = vadd.f32 0.0, %v2484
        %v2486 = vpop.f32.mrb[0].mxu0
        %v2487 = vadd.f32 0.0, %v2486
        %v2488 = vpop.f32.mrb[0].mxu0
        %v2489 = vadd.f32 0.0, %v2488
        %v2490 = vpop.f32.mrb[0].mxu0
        %v2491 = vadd.f32 0.0, %v2490
        %2492 = vmatprep.mubr.bf16.mxu0 0
        %2493 = vmatmul.mubr.bf16.gmra.mrb[0].mxu0 %v2315
        %v2494 = vpop.f32.mrb[0].mxu0
        %v2495 = vadd.f32 0.0, %v2494
        %v2496 = vpop.f32.mrb[0].mxu0
        %v2497 = vadd.f32 0.0, %v2496
        %v2498 = vpop.f32.mrb[0].mxu0
        %v2499 = vadd.f32 0.0, %v2498
        %v2500 = vpop.f32.mrb[0].mxu0
        %v2501 = vadd.f32 0.0, %v2500
        %2502 = vmatprep.mubr.bf16.mxu0 0
        %2503 = vmatmul.mubr.bf16.gmra.mrb[0].mxu0 %v2318
        %v2504 = vpop.f32.mrb[0].mxu0
        %v2505 = vadd.f32 0.0, %v2504
        %v2506 = vpop.f32.mrb[0].mxu0
        %v2507 = vadd.f32 0.0, %v2506
        %v2508 = vpop.f32.mrb[0].mxu0
        %v2509 = vadd.f32 0.0, %v2508
        %v2510 = vpop.f32.mrb[0].mxu0
        %v2511 = vadd.f32 0.0, %v2510
        %2512 = vdwg.mxu0
        %v2513 = vmax.f32 %v2355, %v2365
        %v2514 = vmax.f32 %v2359, %v2369
        %v2515 = vmax.f32 %v2513, %v2375
        %v2516 = vmax.f32 %v2514, %v2379
        %v2517 = vmax.f32 %v2515, %v2385
        %v2518 = vmax.f32 %v2516, %v2389
        %v2519 = vmax.f32 %v2517, %v2395
        %v2520 = vmax.f32 %v2518, %v2399
        %v2521 = vmax.f32 %v2519, %v2405
        %v2522 = vmax.f32 %v2520, %v2409
        %v2523 = vmax.f32 %v2521, %v2415
        %v2524 = vmax.f32 %v2522, %v2419
        %v2525 = vmax.f32 %v2523, %v2425
        %v2526 = vmax.f32 %v2524, %v2429
        %v2527 = vmax.f32 %v2525, %v2435
        %v2528 = vmax.f32 %v2526, %v2439
        %v2529 = vmax.f32 %v2527, %v2445
        %v2530 = vmax.f32 %v2528, %v2449
        %v2531 = vmax.f32 %v2529, %v2455
        %v2532 = vmax.f32 %v2530, %v2459
        %v2533 = vmax.f32 %v2531, %v2465
        %v2534 = vmax.f32 %v2532, %v2469
        %v2535 = vmax.f32 %v2533, %v2475
        %v2536 = vmax.f32 %v2534, %v2479
        %v2537 = vmax.f32 %v2535, %v2485
        %v2538 = vmax.f32 %v2536, %v2489
        %v2539 = vmax.f32 %v2537, %v2495
        %v2540 = vmax.f32 %v2538, %v2499
        %v2541 = vmax.f32 %v2539, %v2505
        %v2542 = vmax.f32 %v2540, %v2509
        %v2543 = vmax.f32 %v2541, %v2542
        %v2544 = vrot.slane %v2543, 4
        %v2545 = vmax.f32 %v2543, %v2544
        %v2546 = vrot.slane %v2545, 2
        %v2547 = vmax.f32 %v2545, %v2546
        %v2548 = vrot.slane %v2547, 1
        %v2549 = vmax.f32 %v2547, %v2548
        %v2550 = vmax.f32 %v2357, %v2367
        %v2551 = vmax.f32 %v2361, %v2371
        %v2552 = vmax.f32 %v2550, %v2377
        %v2553 = vmax.f32 %v2551, %v2381
        %v2554 = vmax.f32 %v2552, %v2387
        %v2555 = vmax.f32 %v2553, %v2391
        %v2556 = vmax.f32 %v2554, %v2397
        %v2557 = vmax.f32 %v2555, %v2401
        %v2558 = vmax.f32 %v2556, %v2407
        %v2559 = vmax.f32 %v2557, %v2411
        %v2560 = vmax.f32 %v2558, %v2417
        %v2561 = vmax.f32 %v2559, %v2421
        %v2562 = vmax.f32 %v2560, %v2427
        %v2563 = vmax.f32 %v2561, %v2431
        %v2564 = vmax.f32 %v2562, %v2437
        %v2565 = vmax.f32 %v2563, %v2441
        %v2566 = vmax.f32 %v2564, %v2447
        %v2567 = vmax.f32 %v2565, %v2451
        %v2568 = vmax.f32 %v2566, %v2457
        %v2569 = vmax.f32 %v2567, %v2461
        %v2570 = vmax.f32 %v2568, %v2467
        %v2571 = vmax.f32 %v2569, %v2471
        %v2572 = vmax.f32 %v2570, %v2477
        %v2573 = vmax.f32 %v2571, %v2481
        %v2574 = vmax.f32 %v2572, %v2487
        %v2575 = vmax.f32 %v2573, %v2491
        %v2576 = vmax.f32 %v2574, %v2497
        %v2577 = vmax.f32 %v2575, %v2501
        %v2578 = vmax.f32 %v2576, %v2507
        %v2579 = vmax.f32 %v2577, %v2511
        %v2580 = vmax.f32 %v2578, %v2579
        %v2581 = vrot.slane %v2580, 4
        %v2582 = vmax.f32 %v2580, %v2581
        %v2583 = vrot.slane %v2582, 2
        %v2584 = vmax.f32 %v2582, %v2583
        %v2585 = vrot.slane %v2584, 1
        %v2586 = vmax.f32 %v2584, %v2585
        %v2587 = vsub.f32 %v2355, %v2549
        %v2588 = vsub.f32 %v2357, %v2586
        %v2589 = vsub.f32 %v2359, %v2549
        %v2590 = vsub.f32 %v2361, %v2586
        %v2591 = vsub.f32 %v2365, %v2549
        %v2592 = vsub.f32 %v2367, %v2586
        %v2593 = vsub.f32 %v2369, %v2549
        %v2594 = vsub.f32 %v2371, %v2586
        %v2595 = vsub.f32 %v2375, %v2549
        %v2596 = vsub.f32 %v2377, %v2586
        %v2597 = vsub.f32 %v2379, %v2549
        %v2598 = vsub.f32 %v2381, %v2586
        %v2599 = vsub.f32 %v2385, %v2549
        %v2600 = vsub.f32 %v2387, %v2586
        %v2601 = vsub.f32 %v2389, %v2549
        %v2602 = vsub.f32 %v2391, %v2586
        %v2603 = vsub.f32 %v2395, %v2549
        %v2604 = vsub.f32 %v2397, %v2586
        %v2605 = vsub.f32 %v2399, %v2549
        %v2606 = vsub.f32 %v2401, %v2586
        %v2607 = vsub.f32 %v2405, %v2549
        %v2608 = vsub.f32 %v2407, %v2586
        %v2609 = vsub.f32 %v2409, %v2549
        %v2610 = vsub.f32 %v2411, %v2586
        %v2611 = vsub.f32 %v2415, %v2549
        %v2612 = vsub.f32 %v2417, %v2586
        %v2613 = vsub.f32 %v2419, %v2549
        %v2614 = vsub.f32 %v2421, %v2586
        %v2615 = vsub.f32 %v2425, %v2549
        %v2616 = vsub.f32 %v2427, %v2586
        %v2617 = vsub.f32 %v2429, %v2549
        %v2618 = vsub.f32 %v2431, %v2586
        %v2619 = vsub.f32 %v2435, %v2549
        %v2620 = vsub.f32 %v2437, %v2586
        %v2621 = vsub.f32 %v2439, %v2549
        %v2622 = vsub.f32 %v2441, %v2586
        %v2623 = vsub.f32 %v2445, %v2549
        %v2624 = vsub.f32 %v2447, %v2586
        %v2625 = vsub.f32 %v2449, %v2549
        %v2626 = vsub.f32 %v2451, %v2586
        %v2627 = vsub.f32 %v2455, %v2549
        %v2628 = vsub.f32 %v2457, %v2586
        %v2629 = vsub.f32 %v2459, %v2549
        %v2630 = vsub.f32 %v2461, %v2586
        %v2631 = vsub.f32 %v2465, %v2549
        %v2632 = vsub.f32 %v2467, %v2586
        %v2633 = vsub.f32 %v2469, %v2549
        %v2634 = vsub.f32 %v2471, %v2586
        %v2635 = vsub.f32 %v2475, %v2549
        %v2636 = vsub.f32 %v2477, %v2586
        %v2637 = vsub.f32 %v2479, %v2549
        %v2638 = vsub.f32 %v2481, %v2586
        %v2639 = vsub.f32 %v2485, %v2549
        %v2640 = vsub.f32 %v2487, %v2586
        %v2641 = vsub.f32 %v2489, %v2549
        %v2642 = vsub.f32 %v2491, %v2586
        %v2643 = vsub.f32 %v2495, %v2549
        %v2644 = vsub.f32 %v2497, %v2586
        %v2645 = vsub.f32 %v2499, %v2549
        %v2646 = vsub.f32 %v2501, %v2586
        %v2647 = vsub.f32 %v2505, %v2549
        %v2648 = vsub.f32 %v2507, %v2586
        %v2649 = vsub.f32 %v2509, %v2549
        %v2650 = vsub.f32 %v2511, %v2586
        %v2651 = vmul.f32 %v2587, 1.442695
        %v2652 = vpow.pop %v2651
        %v2653 = vmul.f32 %v2588, 1.442695
        %v2654 = vpow.pop %v2653
        %v2655 = vmul.f32 %v2589, 1.442695
        %v2656 = vpow.pop %v2655
        %v2657 = vmul.f32 %v2590, 1.442695
        %v2658 = vpow.pop %v2657
        %v2659 = vmul.f32 %v2591, 1.442695
        %v2660 = vpow.pop %v2659
        %v2661 = vmul.f32 %v2592, 1.442695
        %v2662 = vpow.pop %v2661
        %v2663 = vmul.f32 %v2593, 1.442695
        %v2664 = vpow.pop %v2663
        %v2665 = vmul.f32 %v2594, 1.442695
        %v2666 = vpow.pop %v2665
        %v2667 = vmul.f32 %v2595, 1.442695
        %v2668 = vpow.pop %v2667
        %v2669 = vmul.f32 %v2596, 1.442695
        %v2670 = vpow.pop %v2669
        %v2671 = vmul.f32 %v2597, 1.442695
        %v2672 = vpow.pop %v2671
        %v2673 = vmul.f32 %v2598, 1.442695
        %v2674 = vpow.pop %v2673
        %v2675 = vmul.f32 %v2599, 1.442695
        %v2676 = vpow.pop %v2675
        %v2677 = vmul.f32 %v2600, 1.442695
        %v2678 = vpow.pop %v2677
        %v2679 = vmul.f32 %v2601, 1.442695
        %v2680 = vpow.pop %v2679
        %v2681 = vmul.f32 %v2602, 1.442695
        %v2682 = vpow.pop %v2681
        %v2683 = vmul.f32 %v2603, 1.442695
        %v2684 = vpow.pop %v2683
        %v2685 = vmul.f32 %v2604, 1.442695
        %v2686 = vpow.pop %v2685
        %v2687 = vmul.f32 %v2605, 1.442695
        %v2688 = vpow.pop %v2687
        %v2689 = vmul.f32 %v2606, 1.442695
        %v2690 = vpow.pop %v2689
        %v2691 = vmul.f32 %v2607, 1.442695
        %v2692 = vpow.pop %v2691
        %v2693 = vmul.f32 %v2608, 1.442695
        %v2694 = vpow.pop %v2693
        %v2695 = vmul.f32 %v2609, 1.442695
        %v2696 = vpow.pop %v2695
        %v2697 = vmul.f32 %v2610, 1.442695
        %v2698 = vpow.pop %v2697
        %v2699 = vmul.f32 %v2611, 1.442695
        %v2700 = vpow.pop %v2699
        %v2701 = vmul.f32 %v2612, 1.442695
        %v2702 = vpow.pop %v2701
        %v2703 = vmul.f32 %v2613, 1.442695
        %v2704 = vpow.pop %v2703
        %v2705 = vmul.f32 %v2614, 1.442695
        %v2706 = vpow.pop %v2705
        %v2707 = vmul.f32 %v2615, 1.442695
        %v2708 = vpow.pop %v2707
        %v2709 = vmul.f32 %v2616, 1.442695
        %v2710 = vpow.pop %v2709
        %v2711 = vmul.f32 %v2617, 1.442695
        %v2712 = vpow.pop %v2711
        %v2713 = vmul.f32 %v2618, 1.442695
        %v2714 = vpow.pop %v2713
        %v2715 = vmul.f32 %v2619, 1.442695
        %v2716 = vpow.pop %v2715
        %v2717 = vmul.f32 %v2620, 1.442695
        %v2718 = vpow.pop %v2717
        %v2719 = vmul.f32 %v2621, 1.442695
        %v2720 = vpow.pop %v2719
        %v2721 = vmul.f32 %v2622, 1.442695
        %v2722 = vpow.pop %v2721
        %v2723 = vmul.f32 %v2623, 1.442695
        %v2724 = vpow.pop %v2723
        %v2725 = vmul.f32 %v2624, 1.442695
        %v2726 = vpow.pop %v2725
        %v2727 = vmul.f32 %v2625, 1.442695
        %v2728 = vpow.pop %v2727
        %v2729 = vmul.f32 %v2626, 1.442695
        %v2730 = vpow.pop %v2729
        %v2731 = vmul.f32 %v2627, 1.442695
        %v2732 = vpow.pop %v2731
        %v2733 = vmul.f32 %v2628, 1.442695
        %v2734 = vpow.pop %v2733
        %v2735 = vmul.f32 %v2629, 1.442695
        %v2736 = vpow.pop %v2735
        %v2737 = vmul.f32 %v2630, 1.442695
        %v2738 = vpow.pop %v2737
        %v2739 = vmul.f32 %v2631, 1.442695
        %v2740 = vpow.pop %v2739
        %v2741 = vmul.f32 %v2632, 1.442695
        %v2742 = vpow.pop %v2741
        %v2743 = vmul.f32 %v2633, 1.442695
        %v2744 = vpow.pop %v2743
        %v2745 = vmul.f32 %v2634, 1.442695
        %v2746 = vpow.pop %v2745
        %v2747 = vmul.f32 %v2635, 1.442695
        %v2748 = vpow.pop %v2747
        %v2749 = vmul.f32 %v2636, 1.442695
        %v2750 = vpow.pop %v2749
        %v2751 = vmul.f32 %v2637, 1.442695
        %v2752 = vpow.pop %v2751
        %v2753 = vmul.f32 %v2638, 1.442695
        %v2754 = vpow.pop %v2753
        %v2755 = vmul.f32 %v2639, 1.442695
        %v2756 = vpow.pop %v2755
        %v2757 = vmul.f32 %v2640, 1.442695
        %v2758 = vpow.pop %v2757
        %v2759 = vmul.f32 %v2641, 1.442695
        %v2760 = vpow.pop %v2759
        %v2761 = vmul.f32 %v2642, 1.442695
        %v2762 = vpow.pop %v2761
        %v2763 = vmul.f32 %v2643, 1.442695
        %v2764 = vpow.pop %v2763
        %v2765 = vmul.f32 %v2644, 1.442695
        %v2766 = vpow.pop %v2765
        %v2767 = vmul.f32 %v2645, 1.442695
        %v2768 = vpow.pop %v2767
        %v2769 = vmul.f32 %v2646, 1.442695
        %v2770 = vpow.pop %v2769
        %v2771 = vmul.f32 %v2647, 1.442695
        %v2772 = vpow.pop %v2771
        %v2773 = vmul.f32 %v2648, 1.442695
        %v2774 = vpow.pop %v2773
        %v2775 = vmul.f32 %v2649, 1.442695
        %v2776 = vpow.pop %v2775
        %v2777 = vmul.f32 %v2650, 1.442695
        %v2778 = vpow.pop %v2777
        %v2779 = vadd.f32 %v2652, %v2656
        %v2780 = vadd.f32 %v2779, %v2660
        %v2781 = vadd.f32 %v2780, %v2664
        %v2782 = vadd.f32 %v2781, %v2668
        %v2783 = vadd.f32 %v2782, %v2672
        %v2784 = vadd.f32 %v2783, %v2676
        %v2785 = vadd.f32 %v2784, %v2680
        %v2786 = vadd.f32 %v2785, %v2684
        %v2787 = vadd.f32 %v2786, %v2688
        %v2788 = vadd.f32 %v2787, %v2692
        %v2789 = vadd.f32 %v2788, %v2696
        %v2790 = vadd.f32 %v2789, %v2700
        %v2791 = vadd.f32 %v2790, %v2704
        %v2792 = vadd.f32 %v2791, %v2708
        %v2793 = vadd.f32 %v2792, %v2712
        %v2794 = vadd.f32 %v2793, %v2716
        %v2795 = vadd.f32 %v2794, %v2720
        %v2796 = vadd.f32 %v2795, %v2724
        %v2797 = vadd.f32 %v2796, %v2728
        %v2798 = vadd.f32 %v2797, %v2732
        %v2799 = vadd.f32 %v2798, %v2736
        %v2800 = vadd.f32 %v2799, %v2740
        %v2801 = vadd.f32 %v2800, %v2744
        %v2802 = vadd.f32 %v2801, %v2748
        %v2803 = vadd.f32 %v2802, %v2752
        %v2804 = vadd.f32 %v2803, %v2756
        %v2805 = vadd.f32 %v2804, %v2760
        %v2806 = vadd.f32 %v2805, %v2764
        %v2807 = vadd.f32 %v2806, %v2768
        %v2808 = vadd.f32 %v2807, %v2772
        %v2809 = vadd.f32 %v2808, %v2776
        %v2810 = vrot.slane %v2809, 4
        %v2811 = vadd.f32 %v2809, %v2810
        %v2812 = vrot.slane %v2811, 2
        %v2813 = vadd.f32 %v2811, %v2812
        %v2814 = vrot.slane %v2813, 1
        %v2815 = vadd.f32 %v2813, %v2814
        %v2816 = vadd.f32 %v2654, %v2658
        %v2817 = vadd.f32 %v2816, %v2662
        %v2818 = vadd.f32 %v2817, %v2666
        %v2819 = vadd.f32 %v2818, %v2670
        %v2820 = vadd.f32 %v2819, %v2674
        %v2821 = vadd.f32 %v2820, %v2678
        %v2822 = vadd.f32 %v2821, %v2682
        %v2823 = vadd.f32 %v2822, %v2686
        %v2824 = vadd.f32 %v2823, %v2690
        %v2825 = vadd.f32 %v2824, %v2694
        %v2826 = vadd.f32 %v2825, %v2698
        %v2827 = vadd.f32 %v2826, %v2702
        %v2828 = vadd.f32 %v2827, %v2706
        %v2829 = vadd.f32 %v2828, %v2710
        %v2830 = vadd.f32 %v2829, %v2714
        %v2831 = vadd.f32 %v2830, %v2718
        %v2832 = vadd.f32 %v2831, %v2722
        %v2833 = vadd.f32 %v2832, %v2726
        %v2834 = vadd.f32 %v2833, %v2730
        %v2835 = vadd.f32 %v2834, %v2734
        %v2836 = vadd.f32 %v2835, %v2738
        %v2837 = vadd.f32 %v2836, %v2742
        %v2838 = vadd.f32 %v2837, %v2746
        %v2839 = vadd.f32 %v2838, %v2750
        %v2840 = vadd.f32 %v2839, %v2754
        %v2841 = vadd.f32 %v2840, %v2758
        %v2842 = vadd.f32 %v2841, %v2762
        %v2843 = vadd.f32 %v2842, %v2766
        %v2844 = vadd.f32 %v2843, %v2770
        %v2845 = vadd.f32 %v2844, %v2774
        %v2846 = vadd.f32 %v2845, %v2778
        %v2847 = vrot.slane %v2846, 4
        %v2848 = vadd.f32 %v2846, %v2847
        %v2849 = vrot.slane %v2848, 2
        %v2850 = vadd.f32 %v2848, %v2849
        %v2851 = vrot.slane %v2850, 1
        %v2852 = vadd.f32 %v2850, %v2851
        %v2853 = vrcp.pop %v2815
        %v2854 = vrcp.pop %v2852
        %v2855 = vpack.c.bf16 %v711, %v705
        %v2856 = vpack.c.bf16 %v713, %v707
        %v2857 = vpack.c.bf16 %v723, %v717
        %v2858 = vpack.c.bf16 %v725, %v719
        %v2859 = vpack.c.bf16 %v2656, %v2652
        %v2860 = vpack.c.bf16 %v2658, %v2654
        %v2861 = vpack.c.bf16 %v2664, %v2660
        %v2862 = vpack.c.bf16 %v2666, %v2662
        %v2863 = vpack.c.bf16 %v2672, %v2668
        %v2864 = vpack.c.bf16 %v2674, %v2670
        %v2865 = vpack.c.bf16 %v2680, %v2676
        %v2866 = vpack.c.bf16 %v2682, %v2678
        %v2867 = vpack.c.bf16 %v2688, %v2684
        %v2868 = vpack.c.bf16 %v2690, %v2686
        %v2869 = vpack.c.bf16 %v2696, %v2692
        %v2870 = vpack.c.bf16 %v2698, %v2694
        %v2871 = vpack.c.bf16 %v2704, %v2700
        %v2872 = vpack.c.bf16 %v2706, %v2702
        %v2873 = vpack.c.bf16 %v2712, %v2708
        %v2874 = vpack.c.bf16 %v2714, %v2710
        %v2875 = vpack.c.bf16 %v2720, %v2716
        %v2876 = vpack.c.bf16 %v2722, %v2718
        %v2877 = vpack.c.bf16 %v2728, %v2724
        %v2878 = vpack.c.bf16 %v2730, %v2726
        %v2879 = vpack.c.bf16 %v2736, %v2732
        %v2880 = vpack.c.bf16 %v2738, %v2734
        %v2881 = vpack.c.bf16 %v2744, %v2740
        %v2882 = vpack.c.bf16 %v2746, %v2742
        %v2883 = vpack.c.bf16 %v2752, %v2748
        %v2884 = vpack.c.bf16 %v2754, %v2750
        %v2885 = vpack.c.bf16 %v2760, %v2756
        %v2886 = vpack.c.bf16 %v2762, %v2758
        %v2887 = vpack.c.bf16 %v2768, %v2764
        %v2888 = vpack.c.bf16 %v2770, %v2766
        %v2889 = vpack.c.bf16 %v2776, %v2772
        %v2890 = vpack.c.bf16 %v2778, %v2774
        %2891 = vmatprep.subr.bf16.mxu0 %v2860
        %2892 = vmatpush1.bf16.msra.mxu0 %v2859
        %2893 = vmatprep.subr.bf16.mxu0 %v2862
        %2894 = vmatpush1.bf16.msra.mxu0 %v2861
        %2895 = vmatprep.subr.bf16.mxu0 %v2864
        %2896 = vmatpush1.bf16.msra.mxu0 %v2863
        %2897 = vmatprep.subr.bf16.mxu0 %v2866
        %2898 = vmatpush1.bf16.msra.mxu0 %v2865
        %2899 = vmatprep.subr.bf16.mxu0 %v2868
        %2900 = vmatpush1.bf16.msra.mxu0 %v2867
        %2901 = vmatprep.subr.bf16.mxu0 %v2870
        %2902 = vmatpush1.bf16.msra.mxu0 %v2869
        %2903 = vmatprep.subr.bf16.mxu0 %v2872
        %2904 = vmatpush1.bf16.msra.mxu0 %v2871
        %2905 = vmatprep.subr.bf16.mxu0 %v2874
        %2906 = vmatpush1.bf16.msra.mxu0 %v2873
        %2907 = vmatprep.subr.bf16.mxu0 %v2876
        %2908 = vmatpush1.bf16.msra.mxu0 %v2875
        %2909 = vmatprep.subr.bf16.mxu0 %v2878
        %2910 = vmatpush1.bf16.msra.mxu0 %v2877
        %2911 = vmatprep.subr.bf16.mxu0 %v2880
        %2912 = vmatpush1.bf16.msra.mxu0 %v2879
        %2913 = vmatprep.subr.bf16.mxu0 %v2882
        %2914 = vmatpush1.bf16.msra.mxu0 %v2881
        %2915 = vmatprep.subr.bf16.mxu0 %v2884
        %2916 = vmatpush1.bf16.msra.mxu0 %v2883
        %2917 = vmatprep.subr.bf16.mxu0 %v2886
        %2918 = vmatpush1.bf16.msra.mxu0 %v2885
        %2919 = vmatprep.subr.bf16.mxu0 %v2888
        %2920 = vmatpush1.bf16.msra.mxu0 %v2887
        %2921 = vmatprep.subr.bf16.mxu0 %v2890
        %2922 = vmatpush1.bf16.msra.mxu0 %v2889
        %2923 = vmatprep.mubr.bf16.mxu0 %v2856
        %2924 = vmatmul.mubr.bf16.gmra.mrb[0].mxu0 %v2855
        %v2925 = vpop.f32.mrb[0].mxu0
        %v2926 = vadd.f32 0.0, %v2925
        %v2927 = vpop.f32.mrb[0].mxu0
        %v2928 = vadd.f32 0.0, %v2927
        %v2929 = vpop.f32.mrb[0].mxu0
        %v2930 = vadd.f32 0.0, %v2929
        %v2931 = vpop.f32.mrb[0].mxu0
        %v2932 = vadd.f32 0.0, %v2931
        %2933 = vmatprep.mubr.bf16.mxu0 %v2858
        %2934 = vmatmul.mubr.bf16.gmra.mrb[0].mxu0 %v2857
        %v2935 = vpop.f32.mrb[0].mxu0
        %v2936 = vadd.f32 0.0, %v2935
        %v2937 = vpop.f32.mrb[0].mxu0
        %v2938 = vadd.f32 0.0, %v2937
        %v2939 = vpop.f32.mrb[0].mxu0
        %v2940 = vadd.f32 0.0, %v2939
        %v2941 = vpop.f32.mrb[0].mxu0
        %v2942 = vadd.f32 0.0, %v2941
        %2943 = vdwg.mxu0
        %v2944 = vmul.f32 %v2926, %v2853
        %v2945 = vmul.f32 %v2928, %v2854
        %v2946 = vmul.f32 %v2930, %v2853
        %v2947 = vmul.f32 %v2932, %v2854
        %v2948 = vmul.f32 %v2936, %v2853
        %v2949 = vmul.f32 %v2938, %v2854
        %v2950 = vmul.f32 %v2940, %v2853
        %v2951 = vmul.f32 %v2942, %v2854
        %2952 = vst [vmem:[#allocation2 + $0x80] sm:$0xff] %v2944
        %2953 = vst [vmem:[#allocation2 + $0x88] sm:$0xff] %v2945
        %2954 = vst [vmem:[#allocation2 + $0x90] sm:$0xff] %v2946
        %2955 = vst [vmem:[#allocation2 + $0x98] sm:$0xff] %v2947
        %2956 = vst [vmem:[#allocation2 + $0xa0] sm:$0xff] %v2948
        %2957 = vst [vmem:[#allocation2 + $0xa8] sm:$0xff] %v2949
        %2958 = vst [vmem:[#allocation2 + $0xb0] sm:$0xff] %v2950
        %2959 = vst [vmem:[#allocation2 + $0xb8] sm:$0xff] %v2951
        %v2960 = vmul.f32 %v537, 0.17677669
        %v2961 = vmul.f32 %v539, 0.17677669
        %v2962 = vmul.f32 %v543, 0.17677669
        %v2963 = vmul.f32 %v545, 0.17677669
        %v2964 = vmul.f32 %v549, 0.17677669
        %v2965 = vmul.f32 %v551, 0.17677669
        %v2966 = vmul.f32 %v555, 0.17677669
        %v2967 = vmul.f32 %v557, 0.17677669
        %v2968 = vpack.c.bf16 %v639, %v633
        %v2969 = vpack.c.bf16 %v641, %v635
        %v2970 = vpack.c.bf16 %v651, %v645
        %v2971 = vpack.c.bf16 %v653, %v647
        %v2972 = vpack.c.bf16 %v2962, %v2960
        %v2973 = vpack.c.bf16 %v2963, %v2961
        %v2974 = vpack.c.bf16 %v2966, %v2964
        %v2975 = vpack.c.bf16 %v2967, %v2965
        %2976 = vxpose.xlu0.c.b16.start [1/8] %v2968, 128
        %2977 = vxpose.xlu0.c.b16.cont [2/8] %v2970, 128
        %2978 = vxpose.xlu0.c.b16.cont [3/8] 0, 128
        %2979 = vxpose.xlu0.c.b16.cont [4/8] 0, 128
        %2980 = vxpose.xlu0.c.b16.cont [5/8] 0, 128
        %2981 = vxpose.xlu0.c.b16.cont [6/8] 0, 128
        %2982 = vxpose.xlu0.c.b16.cont [7/8] 0, 128
        %2983 = vxpose.xlu0.c.b16.end [8/8] 0, 128
        %v2984 = vpop.trf.xlu0
        %v2985 = vpop.trf.xlu0
        %v2986 = vpop.trf.xlu0
        %v2987 = vpop.trf.xlu0
        %v2988 = vpop.trf.xlu0
        %v2989 = vpop.trf.xlu0
        %v2990 = vpop.trf.xlu0
        %v2991 = vpop.trf.xlu0
        %2992 = vxpose.xlu0.c.b16.start [1/8] %v2969, 128
        %2993 = vxpose.xlu0.c.b16.cont [2/8] %v2971, 128
        %2994 = vxpose.xlu0.c.b16.cont [3/8] 0, 128
        %2995 = vxpose.xlu0.c.b16.cont [4/8] 0, 128
        %2996 = vxpose.xlu0.c.b16.cont [5/8] 0, 128
        %2997 = vxpose.xlu0.c.b16.cont [6/8] 0, 128
        %2998 = vxpose.xlu0.c.b16.cont [7/8] 0, 128
        %2999 = vxpose.xlu0.c.b16.end [8/8] 0, 128
        %v3000 = vpop.trf.xlu0
        %v3001 = vpop.trf.xlu0
        %v3002 = vpop.trf.xlu0
        %v3003 = vpop.trf.xlu0
        %v3004 = vpop.trf.xlu0
        %v3005 = vpop.trf.xlu0
        %v3006 = vpop.trf.xlu0
        %v3007 = vpop.trf.xlu0
        %v3009 = vsel %vm799, %v2984, 0
        %v3012 = vsel %vm799, %v2985, 0
        %v3015 = vsel %vm799, %v2986, 0
        %v3018 = vsel %vm799, %v2987, 0
        %v3021 = vsel %vm799, %v2988, 0
        %v3024 = vsel %vm799, %v2989, 0
        %v3027 = vsel %vm799, %v2990, 0
        %v3030 = vsel %vm799, %v2991, 0
        %v3033 = vsel %vm799, %v3000, 0
        %v3036 = vsel %vm799, %v3001, 0
        %v3039 = vsel %vm799, %v3002, 0
        %v3042 = vsel %vm799, %v3003, 0
        %v3045 = vsel %vm799, %v3004, 0
        %v3048 = vsel %vm799, %v3005, 0
        %v3051 = vsel %vm799, %v3006, 0
        %v3054 = vsel %vm799, %v3007, 0
        %3056 = vmatprep.subr.bf16.mxu0 %v2973
        %3057 = vmatpush1.bf16.msra.mxu0 %v2972
        %3058 = vmatprep.subr.bf16.mxu0 %v2975
        %3059 = vmatpush1.bf16.msra.mxu0 %v2974
        %3060 = vmatprep.subr.bf16.mxu0 0
        %3061 = vmatpush1.bf16.msra.mxu0 0
        %3062 = vmatprep.subr.bf16.mxu0 0
        %3063 = vmatpush1.bf16.msra.mxu0 0
        %3064 = vmatprep.subr.bf16.mxu0 0
        %3065 = vmatpush1.bf16.msra.mxu0 0
        %3066 = vmatprep.subr.bf16.mxu0 0
        %3067 = vmatpush1.bf16.msra.mxu0 0
        %3068 = vmatprep.subr.bf16.mxu0 0
        %3069 = vmatpush1.bf16.msra.mxu0 0
        %3070 = vmatprep.subr.bf16.mxu0 0
        %3071 = vmatpush1.bf16.msra.mxu0 0
        %3072 = vmatprep.subr.bf16.mxu0 0
        %3073 = vmatpush1.bf16.msra.mxu0 0
        %3074 = vmatprep.subr.bf16.mxu0 0
        %3075 = vmatpush1.bf16.msra.mxu0 0
        %3076 = vmatprep.subr.bf16.mxu0 0
        %3077 = vmatpush1.bf16.msra.mxu0 0
        %3078 = vmatprep.subr.bf16.mxu0 0
        %3079 = vmatpush1.bf16.msra.mxu0 0
        %3080 = vmatprep.subr.bf16.mxu0 0
        %3081 = vmatpush1.bf16.msra.mxu0 0
        %3082 = vmatprep.subr.bf16.mxu0 0
        %3083 = vmatpush1.bf16.msra.mxu0 0
        %3084 = vmatprep.subr.bf16.mxu0 0
        %3085 = vmatpush1.bf16.msra.mxu0 0
        %3086 = vmatprep.subr.bf16.mxu0 0
        %3087 = vmatpush1.bf16.msra.mxu0 0
        %3088 = vmatprep.mubr.bf16.mxu0 0
        %3089 = vmatmul.mubr.bf16.gmra.mrb[0].mxu0 %v3009
        %v3090 = vpop.f32.mrb[0].mxu0
        %v3091 = vadd.f32 0.0, %v3090
        %v3092 = vpop.f32.mrb[0].mxu0
        %v3093 = vadd.f32 0.0, %v3092
        %v3094 = vpop.f32.mrb[0].mxu0
        %v3095 = vadd.f32 0.0, %v3094
        %v3096 = vpop.f32.mrb[0].mxu0
        %v3097 = vadd.f32 0.0, %v3096
        %3098 = vmatprep.mubr.bf16.mxu0 0
        %3099 = vmatmul.mubr.bf16.gmra.mrb[0].mxu0 %v3012
        %v3100 = vpop.f32.mrb[0].mxu0
        %v3101 = vadd.f32 0.0, %v3100
        %v3102 = vpop.f32.mrb[0].mxu0
        %v3103 = vadd.f32 0.0, %v3102
        %v3104 = vpop.f32.mrb[0].mxu0
        %v3105 = vadd.f32 0.0, %v3104
        %v3106 = vpop.f32.mrb[0].mxu0
        %v3107 = vadd.f32 0.0, %v3106
        %3108 = vmatprep.mubr.bf16.mxu0 0
        %3109 = vmatmul.mubr.bf16.gmra.mrb[0].mxu0 %v3015
        %v3110 = vpop.f32.mrb[0].mxu0
        %v3111 = vadd.f32 0.0, %v3110
        %v3112 = vpop.f32.mrb[0].mxu0
        %v3113 = vadd.f32 0.0, %v3112
        %v3114 = vpop.f32.mrb[0].mxu0
        %v3115 = vadd.f32 0.0, %v3114
        %v3116 = vpop.f32.mrb[0].mxu0
        %v3117 = vadd.f32 0.0, %v3116
        %3118 = vmatprep.mubr.bf16.mxu0 0
        %3119 = vmatmul.mubr.bf16.gmra.mrb[0].mxu0 %v3018
        %v3120 = vpop.f32.mrb[0].mxu0
        %v3121 = vadd.f32 0.0, %v3120
        %v3122 = vpop.f32.mrb[0].mxu0
        %v3123 = vadd.f32 0.0, %v3122
        %v3124 = vpop.f32.mrb[0].mxu0
        %v3125 = vadd.f32 0.0, %v3124
        %v3126 = vpop.f32.mrb[0].mxu0
        %v3127 = vadd.f32 0.0, %v3126
        %3128 = vmatprep.mubr.bf16.mxu0 0
        %3129 = vmatmul.mubr.bf16.gmra.mrb[0].mxu0 %v3021
        %v3130 = vpop.f32.mrb[0].mxu0
        %v3131 = vadd.f32 0.0, %v3130
        %v3132 = vpop.f32.mrb[0].mxu0
        %v3133 = vadd.f32 0.0, %v3132
        %v3134 = vpop.f32.mrb[0].mxu0
        %v3135 = vadd.f32 0.0, %v3134
        %v3136 = vpop.f32.mrb[0].mxu0
        %v3137 = vadd.f32 0.0, %v3136
        %3138 = vmatprep.mubr.bf16.mxu0 0
        %3139 = vmatmul.mubr.bf16.gmra.mrb[0].mxu0 %v3024
        %v3140 = vpop.f32.mrb[0].mxu0
        %v3141 = vadd.f32 0.0, %v3140
        %v3142 = vpop.f32.mrb[0].mxu0
        %v3143 = vadd.f32 0.0, %v3142
        %v3144 = vpop.f32.mrb[0].mxu0
        %v3145 = vadd.f32 0.0, %v3144
        %v3146 = vpop.f32.mrb[0].mxu0
        %v3147 = vadd.f32 0.0, %v3146
        %3148 = vmatprep.mubr.bf16.mxu0 0
        %3149 = vmatmul.mubr.bf16.gmra.mrb[0].mxu0 %v3027
        %v3150 = vpop.f32.mrb[0].mxu0
        %v3151 = vadd.f32 0.0, %v3150
        %v3152 = vpop.f32.mrb[0].mxu0
        %v3153 = vadd.f32 0.0, %v3152
        %v3154 = vpop.f32.mrb[0].mxu0
        %v3155 = vadd.f32 0.0, %v3154
        %v3156 = vpop.f32.mrb[0].mxu0
        %v3157 = vadd.f32 0.0, %v3156
        %3158 = vmatprep.mubr.bf16.mxu0 0
        %3159 = vmatmul.mubr.bf16.gmra.mrb[0].mxu0 %v3030
        %v3160 = vpop.f32.mrb[0].mxu0
        %v3161 = vadd.f32 0.0, %v3160
        %v3162 = vpop.f32.mrb[0].mxu0
        %v3163 = vadd.f32 0.0, %v3162
        %v3164 = vpop.f32.mrb[0].mxu0
        %v3165 = vadd.f32 0.0, %v3164
        %v3166 = vpop.f32.mrb[0].mxu0
        %v3167 = vadd.f32 0.0, %v3166
        %3168 = vmatprep.mubr.bf16.mxu0 0
        %3169 = vmatmul.mubr.bf16.gmra.mrb[0].mxu0 %v3033
        %v3170 = vpop.f32.mrb[0].mxu0
        %v3171 = vadd.f32 0.0, %v3170
        %v3172 = vpop.f32.mrb[0].mxu0
        %v3173 = vadd.f32 0.0, %v3172
        %v3174 = vpop.f32.mrb[0].mxu0
        %v3175 = vadd.f32 0.0, %v3174
        %v3176 = vpop.f32.mrb[0].mxu0
        %v3177 = vadd.f32 0.0, %v3176
        %3178 = vmatprep.mubr.bf16.mxu0 0
        %3179 = vmatmul.mubr.bf16.gmra.mrb[0].mxu0 %v3036
        %v3180 = vpop.f32.mrb[0].mxu0
        %v3181 = vadd.f32 0.0, %v3180
        %v3182 = vpop.f32.mrb[0].mxu0
        %v3183 = vadd.f32 0.0, %v3182
        %v3184 = vpop.f32.mrb[0].mxu0
        %v3185 = vadd.f32 0.0, %v3184
        %v3186 = vpop.f32.mrb[0].mxu0
        %v3187 = vadd.f32 0.0, %v3186
        %3188 = vmatprep.mubr.bf16.mxu0 0
        %3189 = vmatmul.mubr.bf16.gmra.mrb[0].mxu0 %v3039
        %v3190 = vpop.f32.mrb[0].mxu0
        %v3191 = vadd.f32 0.0, %v3190
        %v3192 = vpop.f32.mrb[0].mxu0
        %v3193 = vadd.f32 0.0, %v3192
        %v3194 = vpop.f32.mrb[0].mxu0
        %v3195 = vadd.f32 0.0, %v3194
        %v3196 = vpop.f32.mrb[0].mxu0
        %v3197 = vadd.f32 0.0, %v3196
        %3198 = vmatprep.mubr.bf16.mxu0 0
        %3199 = vmatmul.mubr.bf16.gmra.mrb[0].mxu0 %v3042
        %v3200 = vpop.f32.mrb[0].mxu0
        %v3201 = vadd.f32 0.0, %v3200
        %v3202 = vpop.f32.mrb[0].mxu0
        %v3203 = vadd.f32 0.0, %v3202
        %v3204 = vpop.f32.mrb[0].mxu0
        %v3205 = vadd.f32 0.0, %v3204
        %v3206 = vpop.f32.mrb[0].mxu0
        %v3207 = vadd.f32 0.0, %v3206
        %3208 = vmatprep.mubr.bf16.mxu0 0
        %3209 = vmatmul.mubr.bf16.gmra.mrb[0].mxu0 %v3045
        %v3210 = vpop.f32.mrb[0].mxu0
        %v3211 = vadd.f32 0.0, %v3210
        %v3212 = vpop.f32.mrb[0].mxu0
        %v3213 = vadd.f32 0.0, %v3212
        %v3214 = vpop.f32.mrb[0].mxu0
        %v3215 = vadd.f32 0.0, %v3214
        %v3216 = vpop.f32.mrb[0].mxu0
        %v3217 = vadd.f32 0.0, %v3216
        %3218 = vmatprep.mubr.bf16.mxu0 0
        %3219 = vmatmul.mubr.bf16.gmra.mrb[0].mxu0 %v3048
        %v3220 = vpop.f32.mrb[0].mxu0
        %v3221 = vadd.f32 0.0, %v3220
        %v3222 = vpop.f32.mrb[0].mxu0
        %v3223 = vadd.f32 0.0, %v3222
        %v3224 = vpop.f32.mrb[0].mxu0
        %v3225 = vadd.f32 0.0, %v3224
        %v3226 = vpop.f32.mrb[0].mxu0
        %v3227 = vadd.f32 0.0, %v3226
        %3228 = vmatprep.mubr.bf16.mxu0 0
        %3229 = vmatmul.mubr.bf16.gmra.mrb[0].mxu0 %v3051
        %v3230 = vpop.f32.mrb[0].mxu0
        %v3231 = vadd.f32 0.0, %v3230
        %v3232 = vpop.f32.mrb[0].mxu0
        %v3233 = vadd.f32 0.0, %v3232
        %v3234 = vpop.f32.mrb[0].mxu0
        %v3235 = vadd.f32 0.0, %v3234
        %v3236 = vpop.f32.mrb[0].mxu0
        %v3237 = vadd.f32 0.0, %v3236
        %3238 = vmatprep.mubr.bf16.mxu0 0
        %3239 = vmatmul.mubr.bf16.gmra.mrb[0].mxu0 %v3054
        %v3240 = vpop.f32.mrb[0].mxu0
        %v3241 = vadd.f32 0.0, %v3240
        %v3242 = vpop.f32.mrb[0].mxu0
        %v3243 = vadd.f32 0.0, %v3242
        %v3244 = vpop.f32.mrb[0].mxu0
        %v3245 = vadd.f32 0.0, %v3244
        %v3246 = vpop.f32.mrb[0].mxu0
        %v3247 = vadd.f32 0.0, %v3246
        %3248 = vdwg.mxu0
        %v3249 = vmax.f32 %v3091, %v3101
        %v3250 = vmax.f32 %v3095, %v3105
        %v3251 = vmax.f32 %v3249, %v3111
        %v3252 = vmax.f32 %v3250, %v3115
        %v3253 = vmax.f32 %v3251, %v3121
        %v3254 = vmax.f32 %v3252, %v3125
        %v3255 = vmax.f32 %v3253, %v3131
        %v3256 = vmax.f32 %v3254, %v3135
        %v3257 = vmax.f32 %v3255, %v3141
        %v3258 = vmax.f32 %v3256, %v3145
        %v3259 = vmax.f32 %v3257, %v3151
        %v3260 = vmax.f32 %v3258, %v3155
        %v3261 = vmax.f32 %v3259, %v3161
        %v3262 = vmax.f32 %v3260, %v3165
        %v3263 = vmax.f32 %v3261, %v3171
        %v3264 = vmax.f32 %v3262, %v3175
        %v3265 = vmax.f32 %v3263, %v3181
        %v3266 = vmax.f32 %v3264, %v3185
        %v3267 = vmax.f32 %v3265, %v3191
        %v3268 = vmax.f32 %v3266, %v3195
        %v3269 = vmax.f32 %v3267, %v3201
        %v3270 = vmax.f32 %v3268, %v3205
        %v3271 = vmax.f32 %v3269, %v3211
        %v3272 = vmax.f32 %v3270, %v3215
        %v3273 = vmax.f32 %v3271, %v3221
        %v3274 = vmax.f32 %v3272, %v3225
        %v3275 = vmax.f32 %v3273, %v3231
        %v3276 = vmax.f32 %v3274, %v3235
        %v3277 = vmax.f32 %v3275, %v3241
        %v3278 = vmax.f32 %v3276, %v3245
        %v3279 = vmax.f32 %v3277, %v3278
        %v3280 = vrot.slane %v3279, 4
        %v3281 = vmax.f32 %v3279, %v3280
        %v3282 = vrot.slane %v3281, 2
        %v3283 = vmax.f32 %v3281, %v3282
        %v3284 = vrot.slane %v3283, 1
        %v3285 = vmax.f32 %v3283, %v3284
        %v3286 = vmax.f32 %v3093, %v3103
        %v3287 = vmax.f32 %v3097, %v3107
        %v3288 = vmax.f32 %v3286, %v3113
        %v3289 = vmax.f32 %v3287, %v3117
        %v3290 = vmax.f32 %v3288, %v3123
        %v3291 = vmax.f32 %v3289, %v3127
        %v3292 = vmax.f32 %v3290, %v3133
        %v3293 = vmax.f32 %v3291, %v3137
        %v3294 = vmax.f32 %v3292, %v3143
        %v3295 = vmax.f32 %v3293, %v3147
        %v3296 = vmax.f32 %v3294, %v3153
        %v3297 = vmax.f32 %v3295, %v3157
        %v3298 = vmax.f32 %v3296, %v3163
        %v3299 = vmax.f32 %v3297, %v3167
        %v3300 = vmax.f32 %v3298, %v3173
        %v3301 = vmax.f32 %v3299, %v3177
        %v3302 = vmax.f32 %v3300, %v3183
        %v3303 = vmax.f32 %v3301, %v3187
        %v3304 = vmax.f32 %v3302, %v3193
        %v3305 = vmax.f32 %v3303, %v3197
        %v3306 = vmax.f32 %v3304, %v3203
        %v3307 = vmax.f32 %v3305, %v3207
        %v3308 = vmax.f32 %v3306, %v3213
        %v3309 = vmax.f32 %v3307, %v3217
        %v3310 = vmax.f32 %v3308, %v3223
        %v3311 = vmax.f32 %v3309, %v3227
        %v3312 = vmax.f32 %v3310, %v3233
        %v3313 = vmax.f32 %v3311, %v3237
        %v3314 = vmax.f32 %v3312, %v3243
        %v3315 = vmax.f32 %v3313, %v3247
        %v3316 = vmax.f32 %v3314, %v3315
        %v3317 = vrot.slane %v3316, 4
        %v3318 = vmax.f32 %v3316, %v3317
        %v3319 = vrot.slane %v3318, 2
        %v3320 = vmax.f32 %v3318, %v3319
        %v3321 = vrot.slane %v3320, 1
        %v3322 = vmax.f32 %v3320, %v3321
        %v3323 = vsub.f32 %v3091, %v3285
        %v3324 = vsub.f32 %v3093, %v3322
        %v3325 = vsub.f32 %v3095, %v3285
        %v3326 = vsub.f32 %v3097, %v3322
        %v3327 = vsub.f32 %v3101, %v3285
        %v3328 = vsub.f32 %v3103, %v3322
        %v3329 = vsub.f32 %v3105, %v3285
        %v3330 = vsub.f32 %v3107, %v3322
        %v3331 = vsub.f32 %v3111, %v3285
        %v3332 = vsub.f32 %v3113, %v3322
        %v3333 = vsub.f32 %v3115, %v3285
        %v3334 = vsub.f32 %v3117, %v3322
        %v3335 = vsub.f32 %v3121, %v3285
        %v3336 = vsub.f32 %v3123, %v3322
        %v3337 = vsub.f32 %v3125, %v3285
        %v3338 = vsub.f32 %v3127, %v3322
        %v3339 = vsub.f32 %v3131, %v3285
        %v3340 = vsub.f32 %v3133, %v3322
        %v3341 = vsub.f32 %v3135, %v3285
        %v3342 = vsub.f32 %v3137, %v3322
        %v3343 = vsub.f32 %v3141, %v3285
        %v3344 = vsub.f32 %v3143, %v3322
        %v3345 = vsub.f32 %v3145, %v3285
        %v3346 = vsub.f32 %v3147, %v3322
        %v3347 = vsub.f32 %v3151, %v3285
        %v3348 = vsub.f32 %v3153, %v3322
        %v3349 = vsub.f32 %v3155, %v3285
        %v3350 = vsub.f32 %v3157, %v3322
        %v3351 = vsub.f32 %v3161, %v3285
        %v3352 = vsub.f32 %v3163, %v3322
        %v3353 = vsub.f32 %v3165, %v3285
        %v3354 = vsub.f32 %v3167, %v3322
        %v3355 = vsub.f32 %v3171, %v3285
        %v3356 = vsub.f32 %v3173, %v3322
        %v3357 = vsub.f32 %v3175, %v3285
        %v3358 = vsub.f32 %v3177, %v3322
        %v3359 = vsub.f32 %v3181, %v3285
        %v3360 = vsub.f32 %v3183, %v3322
        %v3361 = vsub.f32 %v3185, %v3285
        %v3362 = vsub.f32 %v3187, %v3322
        %v3363 = vsub.f32 %v3191, %v3285
        %v3364 = vsub.f32 %v3193, %v3322
        %v3365 = vsub.f32 %v3195, %v3285
        %v3366 = vsub.f32 %v3197, %v3322
        %v3367 = vsub.f32 %v3201, %v3285
        %v3368 = vsub.f32 %v3203, %v3322
        %v3369 = vsub.f32 %v3205, %v3285
        %v3370 = vsub.f32 %v3207, %v3322
        %v3371 = vsub.f32 %v3211, %v3285
        %v3372 = vsub.f32 %v3213, %v3322
        %v3373 = vsub.f32 %v3215, %v3285
        %v3374 = vsub.f32 %v3217, %v3322
        %v3375 = vsub.f32 %v3221, %v3285
        %v3376 = vsub.f32 %v3223, %v3322
        %v3377 = vsub.f32 %v3225, %v3285
        %v3378 = vsub.f32 %v3227, %v3322
        %v3379 = vsub.f32 %v3231, %v3285
        %v3380 = vsub.f32 %v3233, %v3322
        %v3381 = vsub.f32 %v3235, %v3285
        %v3382 = vsub.f32 %v3237, %v3322
        %v3383 = vsub.f32 %v3241, %v3285
        %v3384 = vsub.f32 %v3243, %v3322
        %v3385 = vsub.f32 %v3245, %v3285
        %v3386 = vsub.f32 %v3247, %v3322
        %v3387 = vmul.f32 %v3323, 1.442695
        %v3388 = vpow.pop %v3387
        %v3389 = vmul.f32 %v3324, 1.442695
        %v3390 = vpow.pop %v3389
        %v3391 = vmul.f32 %v3325, 1.442695
        %v3392 = vpow.pop %v3391
        %v3393 = vmul.f32 %v3326, 1.442695
        %v3394 = vpow.pop %v3393
        %v3395 = vmul.f32 %v3327, 1.442695
        %v3396 = vpow.pop %v3395
        %v3397 = vmul.f32 %v3328, 1.442695
        %v3398 = vpow.pop %v3397
        %v3399 = vmul.f32 %v3329, 1.442695
        %v3400 = vpow.pop %v3399
        %v3401 = vmul.f32 %v3330, 1.442695
        %v3402 = vpow.pop %v3401
        %v3403 = vmul.f32 %v3331, 1.442695
        %v3404 = vpow.pop %v3403
        %v3405 = vmul.f32 %v3332, 1.442695
        %v3406 = vpow.pop %v3405
        %v3407 = vmul.f32 %v3333, 1.442695
        %v3408 = vpow.pop %v3407
        %v3409 = vmul.f32 %v3334, 1.442695
        %v3410 = vpow.pop %v3409
        %v3411 = vmul.f32 %v3335, 1.442695
        %v3412 = vpow.pop %v3411
        %v3413 = vmul.f32 %v3336, 1.442695
        %v3414 = vpow.pop %v3413
        %v3415 = vmul.f32 %v3337, 1.442695
        %v3416 = vpow.pop %v3415
        %v3417 = vmul.f32 %v3338, 1.442695
        %v3418 = vpow.pop %v3417
        %v3419 = vmul.f32 %v3339, 1.442695
        %v3420 = vpow.pop %v3419
        %v3421 = vmul.f32 %v3340, 1.442695
        %v3422 = vpow.pop %v3421
        %v3423 = vmul.f32 %v3341, 1.442695
        %v3424 = vpow.pop %v3423
        %v3425 = vmul.f32 %v3342, 1.442695
        %v3426 = vpow.pop %v3425
        %v3427 = vmul.f32 %v3343, 1.442695
        %v3428 = vpow.pop %v3427
        %v3429 = vmul.f32 %v3344, 1.442695
        %v3430 = vpow.pop %v3429
        %v3431 = vmul.f32 %v3345, 1.442695
        %v3432 = vpow.pop %v3431
        %v3433 = vmul.f32 %v3346, 1.442695
        %v3434 = vpow.pop %v3433
        %v3435 = vmul.f32 %v3347, 1.442695
        %v3436 = vpow.pop %v3435
        %v3437 = vmul.f32 %v3348, 1.442695
        %v3438 = vpow.pop %v3437
        %v3439 = vmul.f32 %v3349, 1.442695
        %v3440 = vpow.pop %v3439
        %v3441 = vmul.f32 %v3350, 1.442695
        %v3442 = vpow.pop %v3441
        %v3443 = vmul.f32 %v3351, 1.442695
        %v3444 = vpow.pop %v3443
        %v3445 = vmul.f32 %v3352, 1.442695
        %v3446 = vpow.pop %v3445
        %v3447 = vmul.f32 %v3353, 1.442695
        %v3448 = vpow.pop %v3447
        %v3449 = vmul.f32 %v3354, 1.442695
        %v3450 = vpow.pop %v3449
        %v3451 = vmul.f32 %v3355, 1.442695
        %v3452 = vpow.pop %v3451
        %v3453 = vmul.f32 %v3356, 1.442695
        %v3454 = vpow.pop %v3453
        %v3455 = vmul.f32 %v3357, 1.442695
        %v3456 = vpow.pop %v3455
        %v3457 = vmul.f32 %v3358, 1.442695
        %v3458 = vpow.pop %v3457
        %v3459 = vmul.f32 %v3359, 1.442695
        %v3460 = vpow.pop %v3459
        %v3461 = vmul.f32 %v3360, 1.442695
        %v3462 = vpow.pop %v3461
        %v3463 = vmul.f32 %v3361, 1.442695
        %v3464 = vpow.pop %v3463
        %v3465 = vmul.f32 %v3362, 1.442695
        %v3466 = vpow.pop %v3465
        %v3467 = vmul.f32 %v3363, 1.442695
        %v3468 = vpow.pop %v3467
        %v3469 = vmul.f32 %v3364, 1.442695
        %v3470 = vpow.pop %v3469
        %v3471 = vmul.f32 %v3365, 1.442695
        %v3472 = vpow.pop %v3471
        %v3473 = vmul.f32 %v3366, 1.442695
        %v3474 = vpow.pop %v3473
        %v3475 = vmul.f32 %v3367, 1.442695
        %v3476 = vpow.pop %v3475
        %v3477 = vmul.f32 %v3368, 1.442695
        %v3478 = vpow.pop %v3477
        %v3479 = vmul.f32 %v3369, 1.442695
        %v3480 = vpow.pop %v3479
        %v3481 = vmul.f32 %v3370, 1.442695
        %v3482 = vpow.pop %v3481
        %v3483 = vmul.f32 %v3371, 1.442695
        %v3484 = vpow.pop %v3483
        %v3485 = vmul.f32 %v3372, 1.442695
        %v3486 = vpow.pop %v3485
        %v3487 = vmul.f32 %v3373, 1.442695
        %v3488 = vpow.pop %v3487
        %v3489 = vmul.f32 %v3374, 1.442695
        %v3490 = vpow.pop %v3489
        %v3491 = vmul.f32 %v3375, 1.442695
        %v3492 = vpow.pop %v3491
        %v3493 = vmul.f32 %v3376, 1.442695
        %v3494 = vpow.pop %v3493
        %v3495 = vmul.f32 %v3377, 1.442695
        %v3496 = vpow.pop %v3495
        %v3497 = vmul.f32 %v3378, 1.442695
        %v3498 = vpow.pop %v3497
        %v3499 = vmul.f32 %v3379, 1.442695
        %v3500 = vpow.pop %v3499
        %v3501 = vmul.f32 %v3380, 1.442695
        %v3502 = vpow.pop %v3501
        %v3503 = vmul.f32 %v3381, 1.442695
        %v3504 = vpow.pop %v3503
        %v3505 = vmul.f32 %v3382, 1.442695
        %v3506 = vpow.pop %v3505
        %v3507 = vmul.f32 %v3383, 1.442695
        %v3508 = vpow.pop %v3507
        %v3509 = vmul.f32 %v3384, 1.442695
        %v3510 = vpow.pop %v3509
        %v3511 = vmul.f32 %v3385, 1.442695
        %v3512 = vpow.pop %v3511
        %v3513 = vmul.f32 %v3386, 1.442695
        %v3514 = vpow.pop %v3513
        %v3515 = vadd.f32 %v3388, %v3392
        %v3516 = vadd.f32 %v3515, %v3396
        %v3517 = vadd.f32 %v3516, %v3400
        %v3518 = vadd.f32 %v3517, %v3404
        %v3519 = vadd.f32 %v3518, %v3408
        %v3520 = vadd.f32 %v3519, %v3412
        %v3521 = vadd.f32 %v3520, %v3416
        %v3522 = vadd.f32 %v3521, %v3420
        %v3523 = vadd.f32 %v3522, %v3424
        %v3524 = vadd.f32 %v3523, %v3428
        %v3525 = vadd.f32 %v3524, %v3432
        %v3526 = vadd.f32 %v3525, %v3436
        %v3527 = vadd.f32 %v3526, %v3440
        %v3528 = vadd.f32 %v3527, %v3444
        %v3529 = vadd.f32 %v3528, %v3448
        %v3530 = vadd.f32 %v3529, %v3452
        %v3531 = vadd.f32 %v3530, %v3456
        %v3532 = vadd.f32 %v3531, %v3460
        %v3533 = vadd.f32 %v3532, %v3464
        %v3534 = vadd.f32 %v3533, %v3468
        %v3535 = vadd.f32 %v3534, %v3472
        %v3536 = vadd.f32 %v3535, %v3476
        %v3537 = vadd.f32 %v3536, %v3480
        %v3538 = vadd.f32 %v3537, %v3484
        %v3539 = vadd.f32 %v3538, %v3488
        %v3540 = vadd.f32 %v3539, %v3492
        %v3541 = vadd.f32 %v3540, %v3496
        %v3542 = vadd.f32 %v3541, %v3500
        %v3543 = vadd.f32 %v3542, %v3504
        %v3544 = vadd.f32 %v3543, %v3508
        %v3545 = vadd.f32 %v3544, %v3512
        %v3546 = vrot.slane %v3545, 4
        %v3547 = vadd.f32 %v3545, %v3546
        %v3548 = vrot.slane %v3547, 2
        %v3549 = vadd.f32 %v3547, %v3548
        %v3550 = vrot.slane %v3549, 1
        %v3551 = vadd.f32 %v3549, %v3550
        %v3552 = vadd.f32 %v3390, %v3394
        %v3553 = vadd.f32 %v3552, %v3398
        %v3554 = vadd.f32 %v3553, %v3402
        %v3555 = vadd.f32 %v3554, %v3406
        %v3556 = vadd.f32 %v3555, %v3410
        %v3557 = vadd.f32 %v3556, %v3414
        %v3558 = vadd.f32 %v3557, %v3418
        %v3559 = vadd.f32 %v3558, %v3422
        %v3560 = vadd.f32 %v3559, %v3426
        %v3561 = vadd.f32 %v3560, %v3430
        %v3562 = vadd.f32 %v3561, %v3434
        %v3563 = vadd.f32 %v3562, %v3438
        %v3564 = vadd.f32 %v3563, %v3442
        %v3565 = vadd.f32 %v3564, %v3446
        %v3566 = vadd.f32 %v3565, %v3450
        %v3567 = vadd.f32 %v3566, %v3454
        %v3568 = vadd.f32 %v3567, %v3458
        %v3569 = vadd.f32 %v3568, %v3462
        %v3570 = vadd.f32 %v3569, %v3466
        %v3571 = vadd.f32 %v3570, %v3470
        %v3572 = vadd.f32 %v3571, %v3474
        %v3573 = vadd.f32 %v3572, %v3478
        %v3574 = vadd.f32 %v3573, %v3482
        %v3575 = vadd.f32 %v3574, %v3486
        %v3576 = vadd.f32 %v3575, %v3490
        %v3577 = vadd.f32 %v3576, %v3494
        %v3578 = vadd.f32 %v3577, %v3498
        %v3579 = vadd.f32 %v3578, %v3502
        %v3580 = vadd.f32 %v3579, %v3506
        %v3581 = vadd.f32 %v3580, %v3510
        %v3582 = vadd.f32 %v3581, %v3514
        %v3583 = vrot.slane %v3582, 4
        %v3584 = vadd.f32 %v3582, %v3583
        %v3585 = vrot.slane %v3584, 2
        %v3586 = vadd.f32 %v3584, %v3585
        %v3587 = vrot.slane %v3586, 1
        %v3588 = vadd.f32 %v3586, %v3587
        %v3589 = vrcp.pop %v3551
        %v3590 = vrcp.pop %v3588
        %v3591 = vpack.c.bf16 %v735, %v729
        %v3592 = vpack.c.bf16 %v737, %v731
        %v3593 = vpack.c.bf16 %v747, %v741
        %v3594 = vpack.c.bf16 %v749, %v743
        %v3595 = vpack.c.bf16 %v3392, %v3388
        %v3596 = vpack.c.bf16 %v3394, %v3390
        %v3597 = vpack.c.bf16 %v3400, %v3396
        %v3598 = vpack.c.bf16 %v3402, %v3398
        %v3599 = vpack.c.bf16 %v3408, %v3404
        %v3600 = vpack.c.bf16 %v3410, %v3406
        %v3601 = vpack.c.bf16 %v3416, %v3412
        %v3602 = vpack.c.bf16 %v3418, %v3414
        %v3603 = vpack.c.bf16 %v3424, %v3420
        %v3604 = vpack.c.bf16 %v3426, %v3422
        %v3605 = vpack.c.bf16 %v3432, %v3428
        %v3606 = vpack.c.bf16 %v3434, %v3430
        %v3607 = vpack.c.bf16 %v3440, %v3436
        %v3608 = vpack.c.bf16 %v3442, %v3438
        %v3609 = vpack.c.bf16 %v3448, %v3444
        %v3610 = vpack.c.bf16 %v3450, %v3446
        %v3611 = vpack.c.bf16 %v3456, %v3452
        %v3612 = vpack.c.bf16 %v3458, %v3454
        %v3613 = vpack.c.bf16 %v3464, %v3460
        %v3614 = vpack.c.bf16 %v3466, %v3462
        %v3615 = vpack.c.bf16 %v3472, %v3468
        %v3616 = vpack.c.bf16 %v3474, %v3470
        %v3617 = vpack.c.bf16 %v3480, %v3476
        %v3618 = vpack.c.bf16 %v3482, %v3478
        %v3619 = vpack.c.bf16 %v3488, %v3484
        %v3620 = vpack.c.bf16 %v3490, %v3486
        %v3621 = vpack.c.bf16 %v3496, %v3492
        %v3622 = vpack.c.bf16 %v3498, %v3494
        %v3623 = vpack.c.bf16 %v3504, %v3500
        %v3624 = vpack.c.bf16 %v3506, %v3502
        %v3625 = vpack.c.bf16 %v3512, %v3508
        %v3626 = vpack.c.bf16 %v3514, %v3510
        %3627 = vmatprep.subr.bf16.mxu0 %v3596
        %3628 = vmatpush1.bf16.msra.mxu0 %v3595
        %3629 = vmatprep.subr.bf16.mxu0 %v3598
        %3630 = vmatpush1.bf16.msra.mxu0 %v3597
        %3631 = vmatprep.subr.bf16.mxu0 %v3600
        %3632 = vmatpush1.bf16.msra.mxu0 %v3599
        %3633 = vmatprep.subr.bf16.mxu0 %v3602
        %3634 = vmatpush1.bf16.msra.mxu0 %v3601
        %3635 = vmatprep.subr.bf16.mxu0 %v3604
        %3636 = vmatpush1.bf16.msra.mxu0 %v3603
        %3637 = vmatprep.subr.bf16.mxu0 %v3606
        %3638 = vmatpush1.bf16.msra.mxu0 %v3605
        %3639 = vmatprep.subr.bf16.mxu0 %v3608
        %3640 = vmatpush1.bf16.msra.mxu0 %v3607
        %3641 = vmatprep.subr.bf16.mxu0 %v3610
        %3642 = vmatpush1.bf16.msra.mxu0 %v3609
        %3643 = vmatprep.subr.bf16.mxu0 %v3612
        %3644 = vmatpush1.bf16.msra.mxu0 %v3611
        %3645 = vmatprep.subr.bf16.mxu0 %v3614
        %3646 = vmatpush1.bf16.msra.mxu0 %v3613
        %3647 = vmatprep.subr.bf16.mxu0 %v3616
        %3648 = vmatpush1.bf16.msra.mxu0 %v3615
        %3649 = vmatprep.subr.bf16.mxu0 %v3618
        %3650 = vmatpush1.bf16.msra.mxu0 %v3617
        %3651 = vmatprep.subr.bf16.mxu0 %v3620
        %3652 = vmatpush1.bf16.msra.mxu0 %v3619
        %3653 = vmatprep.subr.bf16.mxu0 %v3622
        %3654 = vmatpush1.bf16.msra.mxu0 %v3621
        %3655 = vmatprep.subr.bf16.mxu0 %v3624
        %3656 = vmatpush1.bf16.msra.mxu0 %v3623
        %3657 = vmatprep.subr.bf16.mxu0 %v3626
        %3658 = vmatpush1.bf16.msra.mxu0 %v3625
        %3659 = vmatprep.mubr.bf16.mxu0 %v3592
        %3660 = vmatmul.mubr.bf16.gmra.mrb[0].mxu0 %v3591
        %v3661 = vpop.f32.mrb[0].mxu0
        %v3662 = vadd.f32 0.0, %v3661
        %v3663 = vpop.f32.mrb[0].mxu0
        %v3664 = vadd.f32 0.0, %v3663
        %v3665 = vpop.f32.mrb[0].mxu0
        %v3666 = vadd.f32 0.0, %v3665
        %v3667 = vpop.f32.mrb[0].mxu0
        %v3668 = vadd.f32 0.0, %v3667
        %3669 = vmatprep.mubr.bf16.mxu0 %v3594
        %3670 = vmatmul.mubr.bf16.gmra.mrb[0].mxu0 %v3593
        %v3671 = vpop.f32.mrb[0].mxu0
        %v3672 = vadd.f32 0.0, %v3671
        %v3673 = vpop.f32.mrb[0].mxu0
        %v3674 = vadd.f32 0.0, %v3673
        %v3675 = vpop.f32.mrb[0].mxu0
        %v3676 = vadd.f32 0.0, %v3675
        %v3677 = vpop.f32.mrb[0].mxu0
        %v3678 = vadd.f32 0.0, %v3677
        %3679 = vdwg.mxu0
        %v3680 = vmul.f32 %v3662, %v3589
        %v3681 = vmul.f32 %v3664, %v3590
        %v3682 = vmul.f32 %v3666, %v3589
        %v3683 = vmul.f32 %v3668, %v3590
        %v3684 = vmul.f32 %v3672, %v3589
        %v3685 = vmul.f32 %v3674, %v3590
        %v3686 = vmul.f32 %v3676, %v3589
        %v3687 = vmul.f32 %v3678, %v3590
        %3688 = vst [vmem:[#allocation2 + $0xc0] sm:$0xff] %v3680
        %3689 = vst [vmem:[#allocation2 + $0xc8] sm:$0xff] %v3681
        %3690 = vst [vmem:[#allocation2 + $0xd0] sm:$0xff] %v3682
        %3691 = vst [vmem:[#allocation2 + $0xd8] sm:$0xff] %v3683
        %3692 = vst [vmem:[#allocation2 + $0xe0] sm:$0xff] %v3684
        %3693 = vst [vmem:[#allocation2 + $0xe8] sm:$0xff] %v3685
        %3694 = vst [vmem:[#allocation2 + $0xf0] sm:$0xff] %v3686
        %3695 = vst [vmem:[#allocation2 + $0xf8] sm:$0xff] %v3687
        %v3696 = vld [vmem:[%s2] sm:$0xf]
        %v3697 = vld [vmem:[%s3] sm:$0xf]
        %v3698 = vld [vmem:[#allocation2] sm:$0xff]
        %v3699 = vld [vmem:[#allocation2 + $0x8] sm:$0xff]
        %v3700 = vld [vmem:[#allocation2 + $0x10] sm:$0xff]
        %v3701 = vld [vmem:[#allocation2 + $0x18] sm:$0xff]
        %v3702 = vld [vmem:[#allocation2 + $0x20] sm:$0xff]
        %v3703 = vld [vmem:[#allocation2 + $0x28] sm:$0xff]
        %v3704 = vld [vmem:[#allocation2 + $0x30] sm:$0xff]
        %v3705 = vld [vmem:[#allocation2 + $0x38] sm:$0xff]
        %v3706 = vld [vmem:[#allocation2 + $0x40] sm:$0xff]
        %v3707 = vld [vmem:[#allocation2 + $0x48] sm:$0xff]
        %v3708 = vld [vmem:[#allocation2 + $0x50] sm:$0xff]
        %v3709 = vld [vmem:[#allocation2 + $0x58] sm:$0xff]
        %v3710 = vld [vmem:[#allocation2 + $0x60] sm:$0xff]
        %v3711 = vld [vmem:[#allocation2 + $0x68] sm:$0xff]
        %v3712 = vld [vmem:[#allocation2 + $0x70] sm:$0xff]
        %v3713 = vld [vmem:[#allocation2 + $0x78] sm:$0xff]
        %v3714 = vld [vmem:[#allocation2 + $0x80] sm:$0xff]
        %v3715 = vld [vmem:[#allocation2 + $0x88] sm:$0xff]
        %v3716 = vld [vmem:[#allocation2 + $0x90] sm:$0xff]
        %v3717 = vld [vmem:[#allocation2 + $0x98] sm:$0xff]
        %v3718 = vld [vmem:[#allocation2 + $0xa0] sm:$0xff]
        %v3719 = vld [vmem:[#allocation2 + $0xa8] sm:$0xff]
        %v3720 = vld [vmem:[#allocation2 + $0xb0] sm:$0xff]
        %v3721 = vld [vmem:[#allocation2 + $0xb8] sm:$0xff]
        %v3722 = vld [vmem:[#allocation2 + $0xc0] sm:$0xff]
        %v3723 = vld [vmem:[#allocation2 + $0xc8] sm:$0xff]
        %v3724 = vld [vmem:[#allocation2 + $0xd0] sm:$0xff]
        %v3725 = vld [vmem:[#allocation2 + $0xd8] sm:$0xff]
        %v3726 = vld [vmem:[#allocation2 + $0xe0] sm:$0xff]
        %v3727 = vld [vmem:[#allocation2 + $0xe8] sm:$0xff]
        %v3728 = vld [vmem:[#allocation2 + $0xf0] sm:$0xff]
        %v3729 = vld [vmem:[#allocation2 + $0xf8] sm:$0xff]
        %3731 = vset.pattern.permute.xlu0 0
        %3732 = vperm.xlu0 %3731, %v3697
        %v3733 = vpop.permute.xlu0 %3732
        %3735 = vmatprep.subr.mxu0 %v3699
        %3736 = vmatpush1.msra.mxu0 %v3698
        %3737 = vmatprep.subr.mxu0 %v3701
        %3738 = vmatpush1.msra.mxu0 %v3700
        %3739 = vmatprep.subr.mxu0 %v3703
        %3740 = vmatpush1.msra.mxu0 %v3702
        %3741 = vmatprep.subr.mxu0 %v3705
        %3742 = vmatpush1.msra.mxu0 %v3704
        %3743 = vmatprep.subr.mxu0 %v3707
        %3744 = vmatpush1.msra.mxu0 %v3706
        %3745 = vmatprep.subr.mxu0 %v3709
        %3746 = vmatpush1.msra.mxu0 %v3708
        %3747 = vmatprep.subr.mxu0 %v3711
        %3748 = vmatpush1.msra.mxu0 %v3710
        %3749 = vmatprep.subr.mxu0 %v3713
        %3750 = vmatpush1.msra.mxu0 %v3712
        %3751 = vmatprep.subr.mxu0 %v3715
        %3752 = vmatpush1.msra.mxu0 %v3714
        %3753 = vmatprep.subr.mxu0 %v3717
        %3754 = vmatpush1.msra.mxu0 %v3716
        %3755 = vmatprep.subr.mxu0 %v3719
        %3756 = vmatpush1.msra.mxu0 %v3718
        %3757 = vmatprep.subr.mxu0 %v3721
        %3758 = vmatpush1.msra.mxu0 %v3720
        %3759 = vmatprep.subr.mxu0 %v3723
        %3760 = vmatpush1.msra.mxu0 %v3722
        %3761 = vmatprep.subr.mxu0 %v3725
        %3762 = vmatpush1.msra.mxu0 %v3724
        %3763 = vmatprep.subr.mxu0 %v3727
        %3764 = vmatpush1.msra.mxu0 %v3726
        %3765 = vmatprep.subr.mxu0 %v3729
        %3766 = vmatpush1.msra.mxu0 %v3728
        %3767 = vmatprep.subr.mxu0 0.0
        %3768 = vmatpush1.msra.mxu0 0.0
        %3769 = vmatprep.subr.mxu0 0.0
        %3770 = vmatpush1.msra.mxu0 0.0
        %3771 = vmatprep.subr.mxu0 0.0
        %3772 = vmatpush1.msra.mxu0 0.0
        %3773 = vmatprep.subr.mxu0 0.0
        %3774 = vmatpush1.msra.mxu0 0.0
        %3775 = vmatprep.subr.mxu0 0.0
        %3776 = vmatpush1.msra.mxu0 0.0
        %3777 = vmatprep.subr.mxu0 0.0
        %3778 = vmatpush1.msra.mxu0 0.0
        %3779 = vmatprep.subr.mxu0 0.0
        %3780 = vmatpush1.msra.mxu0 0.0
        %3781 = vmatprep.subr.mxu0 0.0
        %3782 = vmatpush1.msra.mxu0 0.0
        %3783 = vmatprep.subr.mxu0 0.0
        %3784 = vmatpush1.msra.mxu0 0.0
        %3785 = vmatprep.subr.mxu0 0.0
        %3786 = vmatpush1.msra.mxu0 0.0
        %3787 = vmatprep.subr.mxu0 0.0
        %3788 = vmatpush1.msra.mxu0 0.0
        %3789 = vmatprep.subr.mxu0 0.0
        %3790 = vmatpush1.msra.mxu0 0.0
        %3791 = vmatprep.subr.mxu0 0.0
        %3792 = vmatpush1.msra.mxu0 0.0
        %3793 = vmatprep.subr.mxu0 0.0
        %3794 = vmatpush1.msra.mxu0 0.0
        %3795 = vmatprep.subr.mxu0 0.0
        %3796 = vmatpush1.msra.mxu0 0.0
        %3797 = vmatprep.subr.mxu0 0.0
        %3798 = vmatpush1.msra.mxu0 0.0
        %3799 = vmatprep.mubr.f32.mxu0 0.0
        %3800 = vmatmul.mubr.f32.gmra.mrb[0].mxu0 %v3696
        %v3801 = vpop.f32.mrb[0].mxu0
        %v3802 = vadd.f32 %v3733, %v3801
        %v3803 = vpop.f32.mrb[0].mxu0
        %v3804 = vadd.f32 %v3733, %v3803
        %3805 = vdwg.mxu0
        %v3808 = vcombine.low %v3802, %v3804
        %3810 = vst [vmem:[%s190] sm:$0xff] %v3808
        %s3811 = sand.u32 %s115, 1
        %s3812 = scalar_lea.sflag [#allocation4], %s3811
        %s3813 = sand.u32 %s115, 1
        %s3814 = smul.addr %s3813, 8
        %s3815 = scalar_lea.vmem [#allocation3], %s3814
        // Predicated region
        $region37: #{tpu_custom_call.1} parent=35 // pred_check
          %p3816 = pneg %p125
        $region38: #{tpu_custom_call.1} parent=35 // pred_check_branch
          %3818 = sbr.rel (%p3816) target = $region40
        $region39: #{tpu_custom_call.1} parent=35 // pred_region
          %s3820 = ssub.s32 128, 128
          %3821 = vsyncadd %s3812, %s3820
          %s3822 = smul.addr %s18, 2
          %s3823 = smul.addr %s3822, 64
          %s3824 = scalar_lea.hbm %s4, %s3823
          %s3826 = sshll.u32 %s3815, 4
          %s3827 = int_to_ptr.vmem [resolvable:$true] %s3826
          %3829 = dma.vmem_to_hbm [thread:$0]  %s3827, 128, %s3824, %s3812
        $region40: #{tpu_custom_call.1} parent=35 // pred_fallthru
          _
      $region36: #{tpu_custom_call.1} parent=5 // pred_fallthru
        _
      %p3830 = scmp.le.s32.totalorder 2, %s13
      // Predicated region
      $region41: #{tpu_custom_call.1} parent=5 // pred_check
        %p3831 = pneg %p3830
      $region42: #{tpu_custom_call.1} parent=5 // pred_check_branch
        %3833 = sbr.rel (%p3831) target = $region44
      $region43: #{tpu_custom_call.1} parent=5 // pred_region
        %s3834 = ssub.s32 %s13, 2
        // Predicated region
        $region45: #{tpu_custom_call.1} parent=43 // pred_check
          %p3835 = pneg %p131
        $region46: #{tpu_custom_call.1} parent=43 // pred_check_branch
          %3837 = sbr.rel (%p3835) target = $region48
        $region47: #{tpu_custom_call.1} parent=43 // pred_region
          %s3838 = sand.u32 %s116, 1
          %s3839 = scalar_lea.sflag [#allocation4], %s3838
          %s3840 = sand.u32 %s116, 1
          %s3841 = smul.addr %s3840, 8
          %s3842 = scalar_lea.vmem [#allocation3], %s3841
          %3843 = dma.done %s3839, 128
        $region48: #{tpu_custom_call.1} parent=43 // pred_fallthru
          _
      $region44: #{tpu_custom_call.1} parent=5 // pred_fallthru
        _
    $region6: #{tpu_custom_call.1} parent=1 // loop_footer
      %s17 = sadd.s32 1, %s13
    $region7: #{tpu_custom_call.1} parent=1 // loop_footer_branch
      %12 = sbr.rel target = $region3
    $region8: #{tpu_custom_call.1} parent=1 // loop_exit
      _
    %3844 = vsyncpa [#allocation4], 1
    %s3845 = scalar_lea.sflag [#allocation4], 1
    %3846 = vsyncpa %s3845, 1

</llo_original>
